<compile_context>
chip_gen: v7x
topology: tpu7x:2x2x1
jax: 0.10.0
libtpu: 0.0.40
codegen_flags: <defaults>
</compile_context>

<pallas_src>
import functools
import math

import jax
import jax.numpy as jnp
from jax.experimental import pallas as pl
from jax.experimental.pallas import tpu as pltpu


# --------------------------------------------------------------------------- #
# Pass A: Ssum = merged-5x5 conv(cat(x, x_other)) + (b3+b5); pooled mean.
# --------------------------------------------------------------------------- #
def _split_pool_kernel(x_ref, xo_ref, wflat_ref, bsum_ref, mask_ref,
                       ssum_ref, mean_ref, xin_ref, stack_ref, *, width, k):
    c = x_ref.shape[1]
    c2 = 2 * c
    hw = x_ref.shape[2]
    pad = (k - 1) // 2

    # Build the concatenated input (2C, HW) once in VMEM scratch.
    xin_ref[pl.ds(0, c), :] = x_ref[0]
    xin_ref[pl.ds(c, c), :] = xo_ref[0]
    xin = xin_ref[...]                                         # (2C, HW)

    # Stack all k*k shifted+masked taps as rows: (k*k*2C, HW).
    for dy in range(-pad, pad + 1):
        for dx in range(-pad, pad + 1):
            t = (dy + pad) * k + (dx + pad)
            shift = dy * width + dx
            shifted = xin if shift == 0 else jnp.roll(xin, -shift, axis=1)
            stack_ref[pl.ds(t * c2, c2), :] = shifted * mask_ref[t]

    # Entire conv as one MXU contraction over (taps x input channels).
    ssum = jnp.dot(wflat_ref[...], stack_ref[...],
                   preferred_element_type=jnp.float32) + bsum_ref[...]
    ssum_ref[0] = ssum
    mean_ref[0] = jnp.sum(ssum, axis=1, keepdims=True) * (1.0 / hw)


# --------------------------------------------------------------------------- #
# Pass B (fused): gates = softmax_batch(BN(Wf_c @ (W1 @ mean + b1) + bf));
#                 out = x + conv_V(gate * Ssum).
# --------------------------------------------------------------------------- #
def _gate_scale_conv_kernel(x_ref, ssum_ref, pooledt_ref, w1_ref, b1_ref,
                            wf_ref, bf_ref, bns_ref, bnb_ref, wv_ref, bv_ref,
                            mask_ref, o_ref, stack_ref, *, width):
    b = pl.program_id(0)
    c2 = ssum_ref.shape[1]
    nb = pooledt_ref.shape[1]

    # --- gates for all batches (tiny; channels on sublanes, batch on lanes) --
    m = pooledt_ref[...]                                       # (2C, B)
    # 1x1 conv on the pooled map.
    t1 = jnp.sum(w1_ref[...][:, :, None] * m[None, :, :], axis=1) + b1_ref[...]
    # F_fc 3x3 conv applied to a 1x1 spatial map == its center tap only.
    u = jnp.sum(wf_ref[...][:, :, None] * t1[None, :, :], axis=1) + bf_ref[...]
    # BatchNorm folded to scale/bias (inference semantics).
    v = u * bns_ref[...] + bnb_ref[...]
    # Softmax over the batch axis (dim=0 in the PyTorch module) -> lane axis.
    v = v - jnp.max(v, axis=1, keepdims=True)
    e = jnp.exp(v)
    att = e / jnp.sum(e, axis=1, keepdims=True)                # (2C, B)
    # Select this grid step's batch column as a (2C, 1) gate.
    lane = jax.lax.broadcasted_iota(jnp.int32, (c2, nb), 1)
    gate = jnp.sum(jnp.where(lane == b, att, 0.0), axis=1, keepdims=True)

    # --- Z = gate * Ssum; conv_V as stacked-tap MXU matmul; residual add -----
    z = ssum_ref[0] * gate                                     # (2C, HW)
    k, pad = 3, 1
    for dy in range(-pad, pad + 1):
        for dx in range(-pad, pad + 1):
            t = (dy + pad) * k + (dx + pad)
            shift = dy * width + dx
            shifted = z if shift == 0 else jnp.roll(z, -shift, axis=1)
            stack_ref[pl.ds(t * c2, c2), :] = shifted * mask_ref[t]
    vout = jnp.dot(wv_ref[...], stack_ref[...],
                   preferred_element_type=jnp.float32) + bv_ref[...]
    o_ref[0] = x_ref[0] + vout


# --------------------------------------------------------------------------- #
# Host-side helpers + wrapper
# --------------------------------------------------------------------------- #
def _same_conv_masks(height, width, k, dtype=jnp.float32):
    """(k*k, 1, H*W) multiplicative 0/1 masks: tap (dy,dx) stays inside image."""
    pad = (k - 1) // 2
    hh, ww = jnp.meshgrid(jnp.arange(height), jnp.arange(width), indexing="ij")
    masks = []
    for dy in range(-pad, pad + 1):
        for dx in range(-pad, pad + 1):
            valid = ((hh + dy >= 0) & (hh + dy < height) &
                     (ww + dx >= 0) & (ww + dx < width))
            masks.append(valid.reshape(1, height * width))
    return jnp.stack(masks, axis=0).astype(dtype)


def _tap_flat(w):
    """(Cout, Cin, k, k) -> (Cout, k*k*Cin), tap-major rows matching the stack."""
    cout, cin, k, _ = w.shape
    return jnp.transpose(w, (0, 2, 3, 1)).reshape(cout, k * k * cin)


@jax.jit
def msk_forward(x, x_other, p):
    eps = 1e-5
    B, C, H, W = x.shape
    C2 = 2 * C
    HW = H * W
    xf = x.reshape(B, C, HW)
    xof = x_other.reshape(B, C, HW)

    # One-time parameter repack.  conv3 is folded into conv5's central 3x3
    # taps (only S1+S2 is needed downstream); weights are flattened tap-major
    # so each spatial conv becomes a single matmul against the tap stack.
    wm = p["w5"] + jnp.pad(p["w3"], ((0, 0), (0, 0), (1, 1), (1, 1)))
    wflat5 = _tap_flat(wm)                                     # (2C, 25*2C)
    bsum = (p["b3"] + p["b5"]).reshape(C2, 1)
    wvflat = _tap_flat(p["wv"])                                # (C, 9*2C)
    bv_col = p["bv"].reshape(C, 1)

    w1_2d = p["w1"][:, :, 0, 0]                                # (2C, 2C)
    wf_2d = p["wf"][:, :, 1, 1]                                # center tap only
    b1_col = p["b1"].reshape(C2, 1)
    bf_col = p["bf"].reshape(C2, 1)
    bn_scale = (p["bn_gamma"] / jnp.sqrt(p["bn_var"] + eps)).reshape(C2, 1)
    bn_bias = p["bn_beta"].reshape(C2, 1) - p["bn_mean"].reshape(C2, 1) * bn_scale

    mask3 = _same_conv_masks(H, W, 3, jnp.float32)
    mask5 = _same_conv_masks(H, W, 5, jnp.float32)

    # ---- Pass A: Ssum and its pooled mean, one batch element per grid step --
    ssum, pooled = pl.pallas_call(
        functools.partial(_split_pool_kernel, width=W, k=5),
        out_shape=(jax.ShapeDtypeStruct((B, C2, HW), jnp.float32),
                   jax.ShapeDtypeStruct((B, C2, 1), jnp.float32)),
        grid=(B,),
        in_specs=[
            pl.BlockSpec((1, C, HW), lambda b: (b, 0, 0)),      # x
            pl.BlockSpec((1, C, HW), lambda b: (b, 0, 0)),      # x_other
            pl.BlockSpec((C2, 25 * C2), lambda b: (0, 0)),      # merged 5x5 taps
            pl.BlockSpec((C2, 1), lambda b: (0, 0)),            # b3 + b5
            pl.BlockSpec((25, 1, HW), lambda b: (0, 0, 0)),     # 5x5 border masks
        ],
        out_specs=(pl.BlockSpec((1, C2, HW), lambda b: (b, 0, 0)),
                   pl.BlockSpec((1, C2, 1), lambda b: (b, 0, 0))),
        scratch_shapes=[pltpu.VMEM((C2, HW), jnp.float32),       # cat(x, xo)
                        pltpu.VMEM((25 * C2, HW), jnp.float32)], # tap stack
        compiler_params=pltpu.CompilerParams(
            dimension_semantics=("parallel",)),
    )(xf, xof, wflat5, bsum, mask5)

    # Tiny (B, 2C) -> (2C, B) transpose so the in-kernel gate math keeps
    # channels on sublanes and the batch softmax on the lane axis.
    pooled_t = pooled[:, :, 0].T

    # ---- Pass B: gates (recomputed per step) + out = x + conv_V(gate*Ssum) --
    out = pl.pallas_call(
        functools.partial(_gate_scale_conv_kernel, width=W),
        out_shape=jax.ShapeDtypeStruct((B, C, HW), x.dtype),
        grid=(B,),
        in_specs=[
            pl.BlockSpec((1, C, HW), lambda b: (b, 0, 0)),      # x (residual)
            pl.BlockSpec((1, C2, HW), lambda b: (b, 0, 0)),     # Ssum
            pl.BlockSpec((C2, B), lambda b: (0, 0)),            # pooled means^T
            pl.BlockSpec((C2, C2), lambda b: (0, 0)),           # conv1x1 weight
            pl.BlockSpec((C2, 1), lambda b: (0, 0)),            # conv1x1 bias
            pl.BlockSpec((C2, C2), lambda b: (0, 0)),           # F_fc center tap
            pl.BlockSpec((C2, 1), lambda b: (0, 0)),            # F_fc bias
            pl.BlockSpec((C2, 1), lambda b: (0, 0)),            # BN scale
            pl.BlockSpec((C2, 1), lambda b: (0, 0)),            # BN bias
            pl.BlockSpec((C, 9 * C2), lambda b: (0, 0)),        # conv_V taps
            pl.BlockSpec((C, 1), lambda b: (0, 0)),             # conv_V bias
            pl.BlockSpec((9, 1, HW), lambda b: (0, 0, 0)),      # 3x3 border masks
        ],
        out_specs=pl.BlockSpec((1, C, HW), lambda b: (b, 0, 0)),
        scratch_shapes=[pltpu.VMEM((9 * C2, HW), jnp.float32)],  # tap stack
        compiler_params=pltpu.CompilerParams(
            dimension_semantics=("parallel",)),
    )(xf, ssum, pooled_t, w1_2d, b1_col, wf_2d, bf_col, bn_scale, bn_bias,
      wvflat, bv_col, mask3)

    return out.reshape(B, C, H, W)


# --------------------------------------------------------------------------- #
# Pure-JAX reference (mirrors the PyTorch forward, BN in inference mode)
# --------------------------------------------------------------------------- #
def msk_ref(x, x_other, p, eps=1e-5):
    def conv(inp, w, b, pad):
        out = jax.lax.conv_general_dilated(
            inp, w, (1, 1), [(pad, pad), (pad, pad)],
            dimension_numbers=("NCHW", "OIHW", "NCHW"),
            precision=jax.lax.Precision.HIGHEST)
        return out + b[None, :, None, None]

    inp = jnp.concatenate([x, x_other], axis=1)
    s1 = conv(inp, p["w3"], p["b3"], 1)
    s2 = conv(inp, p["w5"], p["b5"], 2)
    s = conv(s1 + s2, p["w1"], p["b1"], 0)
    fgp = jnp.mean(s, axis=(2, 3), keepdims=True)
    att = conv(fgp, p["wf"], p["bf"], 1)
    att = ((att - p["bn_mean"][None, :, None, None])
           / jnp.sqrt(p["bn_var"] + eps)[None, :, None, None]
           * p["bn_gamma"][None, :, None, None]
           + p["bn_beta"][None, :, None, None])
    att = jax.nn.softmax(att, axis=0)
    z = s1 * att + s2 * att
    v = conv(z, p["wv"], p["bv"], 1)
    return x + v


if __name__ == "__main__":
    key = jax.random.PRNGKey(0)
    B, C, H, W = 2, 4, 16, 16
    C2 = 2 * C
    keys = jax.random.split(key, 16)

    def uinit(k, shape, fan_in):
        bound = 1.0 / math.sqrt(fan_in)
        return jax.random.uniform(k, shape, jnp.float32, -bound, bound)

    p = {
        "w3": uinit(keys[0], (C2, C2, 3, 3), C2 * 9),
        "b3": uinit(keys[1], (C2,), C2 * 9),
        "w5": uinit(keys[2], (C2, C2, 5, 5), C2 * 25),
        "b5": uinit(keys[3], (C2,), C2 * 25),
        "w1": uinit(keys[4], (C2, C2, 1, 1), C2),
        "b1": uinit(keys[5], (C2,), C2),
        "wf": uinit(keys[6], (C2, C2, 3, 3), C2 * 9),
        "bf": uinit(keys[7], (C2,), C2 * 9),
        "bn_gamma": 1.0 + 0.1 * jax.random.normal(keys[8], (C2,), jnp.float32),
        "bn_beta": 0.1 * jax.random.normal(keys[9], (C2,), jnp.float32),
        "bn_mean": 0.1 * jax.random.normal(keys[10], (C2,), jnp.float32),
        "bn_var": jax.random.uniform(keys[11], (C2,), jnp.float32, 0.5, 1.5),
        "wv": uinit(keys[12], (C, C2, 3, 3), C2 * 9),
        "bv": uinit(keys[13], (C,), C2 * 9),
    }
    x = jax.random.normal(keys[14], (B, C, H, W), dtype=jnp.float32)
    x_other = jax.random.normal(keys[15], (B, C, H, W), dtype=jnp.float32)

    out = jax.block_until_ready(msk_forward(x, x_other, p))

    ref = msk_ref(x, x_other, p)
    assert out.shape == x.shape
    err = float(jnp.max(jnp.abs(out - ref)))
    assert err < 1e-3, f"max abs err {err}"
    print("KERNEL_OK")
</pallas_src>

<mosaic_0001>
module attributes {stable_mosaic.version = 11 : i64} {
  func.func @_split_pool_kernel(%arg0: i32, %arg1: memref<1x4x256xf32, #tpu.memory_space<vmem>>, %arg2: memref<1x4x256xf32, #tpu.memory_space<vmem>>, %arg3: memref<8x200xf32, #tpu.memory_space<vmem>>, %arg4: memref<8x1xf32, #tpu.memory_space<vmem>>, %arg5: memref<25x1x256xf32, #tpu.memory_space<vmem>>, %arg6: memref<1x8x256xf32, #tpu.memory_space<vmem>>, %arg7: memref<1x8x1xf32, #tpu.memory_space<vmem>>, %arg8: memref<8x256xf32, #tpu.memory_space<vmem>>, %arg9: memref<200x256xf32, #tpu.memory_space<vmem>>) attributes {dimension_semantics = [#tpu.dimension_semantics<parallel>], iteration_bounds = array<i64: 2>, scalar_prefetch = 0 : i64, scratch_operands = 2 : i64, tpu.core_type = #tpu.core_type<tc>, window_params = [{transform_indices = @transform_0, window_bounds = array<i64: 1, 4, 256>}, {transform_indices = @transform_1, window_bounds = array<i64: 1, 4, 256>}, {pipeline_mode = #tpu.pipeline_mode<synchronous>, transform_indices = @transform_2, window_bounds = array<i64: 8, 200>}, {pipeline_mode = #tpu.pipeline_mode<synchronous>, transform_indices = @transform_3, window_bounds = array<i64: 8, 1>}, {pipeline_mode = #tpu.pipeline_mode<synchronous>, transform_indices = @transform_4, window_bounds = array<i64: 25, 1, 256>}, {transform_indices = @transform_5, window_bounds = array<i64: 1, 8, 256>}, {transform_indices = @transform_6, window_bounds = array<i64: 1, 8, 1>}]} {
    %c0 = arith.constant 0 : index
    %c0_0 = arith.constant 0 : index
    %c0_1 = arith.constant 0 : index
    %0 = vector.load %arg1[%c0, %c0_0, %c0_1] : memref<1x4x256xf32, #tpu.memory_space<vmem>>, vector<1x4x256xf32>
    %1 = vector.shape_cast %0 : vector<1x4x256xf32> to vector<4x256xf32>
    %c0_2 = arith.constant 0 : index
    %c0_3 = arith.constant 0 : index
    %2 = vector.load %arg8[%c0_2, %c0_3] : memref<8x256xf32, #tpu.memory_space<vmem>>, vector<4x256xf32>
    tpu.vector_store %arg8[%c0_2, %c0_3], %1 {strides = array<i32>} : memref<8x256xf32, #tpu.memory_space<vmem>>, vector<4x256xf32>,
    %c0_4 = arith.constant 0 : index
    %c0_5 = arith.constant 0 : index
    %c0_6 = arith.constant 0 : index
    %3 = vector.load %arg2[%c0_4, %c0_5, %c0_6] : memref<1x4x256xf32, #tpu.memory_space<vmem>>, vector<1x4x256xf32>
    %4 = vector.shape_cast %3 : vector<1x4x256xf32> to vector<4x256xf32>
    %c4 = arith.constant 4 : index
    %c0_7 = arith.constant 0 : index
    %5 = vector.load %arg8[%c4, %c0_7] : memref<8x256xf32, #tpu.memory_space<vmem>>, vector<4x256xf32>
    tpu.vector_store %arg8[%c4, %c0_7], %4 {strides = array<i32>} : memref<8x256xf32, #tpu.memory_space<vmem>>, vector<4x256xf32>,
    %c0_8 = arith.constant 0 : index
    %c0_9 = arith.constant 0 : index
    %6 = vector.load %arg8[%c0_8, %c0_9] : memref<8x256xf32, #tpu.memory_space<vmem>>, vector<8x256xf32>
    %7 = vector.extract_strided_slice %6 {offsets = [0, 222], sizes = [8, 34], strides = [1, 1]} : vector<8x256xf32> to vector<8x34xf32>
    %8 = vector.extract_strided_slice %6 {offsets = [0, 0], sizes = [8, 222], strides = [1, 1]} : vector<8x256xf32> to vector<8x222xf32>
    %9 = tpu.concatenate %7, %8 in 1 : vector<8x34xf32>, vector<8x222xf32> -> vector<8x256xf32>
    %c0_10 = arith.constant 0 : index
    %c0_11 = arith.constant 0 : index
    %c0_12 = arith.constant 0 : index
    %10 = vector.load %arg5[%c0_10, %c0_11, %c0_12] : memref<25x1x256xf32, #tpu.memory_space<vmem>>, vector<1x1x256xf32>
    %11 = vector.shape_cast %10 : vector<1x1x256xf32> to vector<1x256xf32>
    %12 = vector.broadcast %11 : vector<1x256xf32> to vector<8x256xf32>
    %13 = arith.mulf %9, %12 : vector<8x256xf32>
    %c0_13 = arith.constant 0 : index
    %c0_14 = arith.constant 0 : index
    %14 = vector.load %arg9[%c0_13, %c0_14] : memref<200x256xf32, #tpu.memory_space<vmem>>, vector<8x256xf32>
    tpu.vector_store %arg9[%c0_13, %c0_14], %13 {strides = array<i32>} : memref<200x256xf32, #tpu.memory_space<vmem>>, vector<8x256xf32>,
    %15 = vector.extract_strided_slice %6 {offsets = [0, 223], sizes = [8, 33], strides = [1, 1]} : vector<8x256xf32> to vector<8x33xf32>
    %16 = vector.extract_strided_slice %6 {offsets = [0, 0], sizes = [8, 223], strides = [1, 1]} : vector<8x256xf32> to vector<8x223xf32>
    %17 = tpu.concatenate %15, %16 in 1 : vector<8x33xf32>, vector<8x223xf32> -> vector<8x256xf32>
    %c1 = arith.constant 1 : index
    %c0_15 = arith.constant 0 : index
    %c0_16 = arith.constant 0 : index
    %18 = vector.load %arg5[%c1, %c0_15, %c0_16] : memref<25x1x256xf32, #tpu.memory_space<vmem>>, vector<1x1x256xf32>
    %19 = vector.shape_cast %18 : vector<1x1x256xf32> to vector<1x256xf32>
    %20 = vector.broadcast %19 : vector<1x256xf32> to vector<8x256xf32>
    %21 = arith.mulf %17, %20 : vector<8x256xf32>
    %c8 = arith.constant 8 : index
    %c0_17 = arith.constant 0 : index
    %22 = vector.load %arg9[%c8, %c0_17] : memref<200x256xf32, #tpu.memory_space<vmem>>, vector<8x256xf32>
    tpu.vector_store %arg9[%c8, %c0_17], %21 {strides = array<i32>} : memref<200x256xf32, #tpu.memory_space<vmem>>, vector<8x256xf32>,
    %23 = vector.extract_strided_slice %6 {offsets = [0, 224], sizes = [8, 32], strides = [1, 1]} : vector<8x256xf32> to vector<8x32xf32>
    %24 = vector.extract_strided_slice %6 {offsets = [0, 0], sizes = [8, 224], strides = [1, 1]} : vector<8x256xf32> to vector<8x224xf32>
    %25 = tpu.concatenate %23, %24 in 1 : vector<8x32xf32>, vector<8x224xf32> -> vector<8x256xf32>
    %c2 = arith.constant 2 : index
    %c0_18 = arith.constant 0 : index
    %c0_19 = arith.constant 0 : index
    %26 = vector.load %arg5[%c2, %c0_18, %c0_19] : memref<25x1x256xf32, #tpu.memory_space<vmem>>, vector<1x1x256xf32>
    %27 = vector.shape_cast %26 : vector<1x1x256xf32> to vector<1x256xf32>
    %28 = vector.broadcast %27 : vector<1x256xf32> to vector<8x256xf32>
    %29 = arith.mulf %25, %28 : vector<8x256xf32>
    %c16 = arith.constant 16 : index
    %c0_20 = arith.constant 0 : index
    %30 = vector.load %arg9[%c16, %c0_20] : memref<200x256xf32, #tpu.memory_space<vmem>>, vector<8x256xf32>
    tpu.vector_store %arg9[%c16, %c0_20], %29 {strides = array<i32>} : memref<200x256xf32, #tpu.memory_space<vmem>>, vector<8x256xf32>,
    %31 = vector.extract_strided_slice %6 {offsets = [0, 225], sizes = [8, 31], strides = [1, 1]} : vector<8x256xf32> to vector<8x31xf32>
    %32 = vector.extract_strided_slice %6 {offsets = [0, 0], sizes = [8, 225], strides = [1, 1]} : vector<8x256xf32> to vector<8x225xf32>
    %33 = tpu.concatenate %31, %32 in 1 : vector<8x31xf32>, vector<8x225xf32> -> vector<8x256xf32>
    %c3 = arith.constant 3 : index
    %c0_21 = arith.constant 0 : index
    %c0_22 = arith.constant 0 : index
    %34 = vector.load %arg5[%c3, %c0_21, %c0_22] : memref<25x1x256xf32, #tpu.memory_space<vmem>>, vector<1x1x256xf32>
    %35 = vector.shape_cast %34 : vector<1x1x256xf32> to vector<1x256xf32>
    %36 = vector.broadcast %35 : vector<1x256xf32> to vector<8x256xf32>
    %37 = arith.mulf %33, %36 : vector<8x256xf32>
    %c24 = arith.constant 24 : index
    %c0_23 = arith.constant 0 : index
    %38 = vector.load %arg9[%c24, %c0_23] : memref<200x256xf32, #tpu.memory_space<vmem>>, vector<8x256xf32>
    tpu.vector_store %arg9[%c24, %c0_23], %37 {strides = array<i32>} : memref<200x256xf32, #tpu.memory_space<vmem>>, vector<8x256xf32>,
    %39 = vector.extract_strided_slice %6 {offsets = [0, 226], sizes = [8, 30], strides = [1, 1]} : vector<8x256xf32> to vector<8x30xf32>
    %40 = vector.extract_strided_slice %6 {offsets = [0, 0], sizes = [8, 226], strides = [1, 1]} : vector<8x256xf32> to vector<8x226xf32>
    %41 = tpu.concatenate %39, %40 in 1 : vector<8x30xf32>, vector<8x226xf32> -> vector<8x256xf32>
    %c4_24 = arith.constant 4 : index
    %c0_25 = arith.constant 0 : index
    %c0_26 = arith.constant 0 : index
    %42 = vector.load %arg5[%c4_24, %c0_25, %c0_26] : memref<25x1x256xf32, #tpu.memory_space<vmem>>, vector<1x1x256xf32>
    %43 = vector.shape_cast %42 : vector<1x1x256xf32> to vector<1x256xf32>
    %44 = vector.broadcast %43 : vector<1x256xf32> to vector<8x256xf32>
    %45 = arith.mulf %41, %44 : vector<8x256xf32>
    %c32 = arith.constant 32 : index
    %c0_27 = arith.constant 0 : index
    %46 = vector.load %arg9[%c32, %c0_27] : memref<200x256xf32, #tpu.memory_space<vmem>>, vector<8x256xf32>
    tpu.vector_store %arg9[%c32, %c0_27], %45 {strides = array<i32>} : memref<200x256xf32, #tpu.memory_space<vmem>>, vector<8x256xf32>,
    %47 = vector.extract_strided_slice %6 {offsets = [0, 238], sizes = [8, 18], strides = [1, 1]} : vector<8x256xf32> to vector<8x18xf32>
    %48 = vector.extract_strided_slice %6 {offsets = [0, 0], sizes = [8, 238], strides = [1, 1]} : vector<8x256xf32> to vector<8x238xf32>
    %49 = tpu.concatenate %47, %48 in 1 : vector<8x18xf32>, vector<8x238xf32> -> vector<8x256xf32>
    %c5 = arith.constant 5 : index
    %c0_28 = arith.constant 0 : index
    %c0_29 = arith.constant 0 : index
    %50 = vector.load %arg5[%c5, %c0_28, %c0_29] : memref<25x1x256xf32, #tpu.memory_space<vmem>>, vector<1x1x256xf32>
    %51 = vector.shape_cast %50 : vector<1x1x256xf32> to vector<1x256xf32>
    %52 = vector.broadcast %51 : vector<1x256xf32> to vector<8x256xf32>
    %53 = arith.mulf %49, %52 : vector<8x256xf32>
    %c40 = arith.constant 40 : index
    %c0_30 = arith.constant 0 : index
    %54 = vector.load %arg9[%c40, %c0_30] : memref<200x256xf32, #tpu.memory_space<vmem>>, vector<8x256xf32>
    tpu.vector_store %arg9[%c40, %c0_30], %53 {strides = array<i32>} : memref<200x256xf32, #tpu.memory_space<vmem>>, vector<8x256xf32>,
    %55 = vector.extract_strided_slice %6 {offsets = [0, 239], sizes = [8, 17], strides = [1, 1]} : vector<8x256xf32> to vector<8x17xf32>
    %56 = vector.extract_strided_slice %6 {offsets = [0, 0], sizes = [8, 239], strides = [1, 1]} : vector<8x256xf32> to vector<8x239xf32>
    %57 = tpu.concatenate %55, %56 in 1 : vector<8x17xf32>, vector<8x239xf32> -> vector<8x256xf32>
    %c6 = arith.constant 6 : index
    %c0_31 = arith.constant 0 : index
    %c0_32 = arith.constant 0 : index
    %58 = vector.load %arg5[%c6, %c0_31, %c0_32] : memref<25x1x256xf32, #tpu.memory_space<vmem>>, vector<1x1x256xf32>
    %59 = vector.shape_cast %58 : vector<1x1x256xf32> to vector<1x256xf32>
    %60 = vector.broadcast %59 : vector<1x256xf32> to vector<8x256xf32>
    %61 = arith.mulf %57, %60 : vector<8x256xf32>
    %c48 = arith.constant 48 : index
    %c0_33 = arith.constant 0 : index
    %62 = vector.load %arg9[%c48, %c0_33] : memref<200x256xf32, #tpu.memory_space<vmem>>, vector<8x256xf32>
    tpu.vector_store %arg9[%c48, %c0_33], %61 {strides = array<i32>} : memref<200x256xf32, #tpu.memory_space<vmem>>, vector<8x256xf32>,
    %63 = vector.extract_strided_slice %6 {offsets = [0, 240], sizes = [8, 16], strides = [1, 1]} : vector<8x256xf32> to vector<8x16xf32>
    %64 = vector.extract_strided_slice %6 {offsets = [0, 0], sizes = [8, 240], strides = [1, 1]} : vector<8x256xf32> to vector<8x240xf32>
    %65 = tpu.concatenate %63, %64 in 1 : vector<8x16xf32>, vector<8x240xf32> -> vector<8x256xf32>
    %c7 = arith.constant 7 : index
    %c0_34 = arith.constant 0 : index
    %c0_35 = arith.constant 0 : index
    %66 = vector.load %arg5[%c7, %c0_34, %c0_35] : memref<25x1x256xf32, #tpu.memory_space<vmem>>, vector<1x1x256xf32>
    %67 = vector.shape_cast %66 : vector<1x1x256xf32> to vector<1x256xf32>
    %68 = vector.broadcast %67 : vector<1x256xf32> to vector<8x256xf32>
    %69 = arith.mulf %65, %68 : vector<8x256xf32>
    %c56 = arith.constant 56 : index
    %c0_36 = arith.constant 0 : index
    %70 = vector.load %arg9[%c56, %c0_36] : memref<200x256xf32, #tpu.memory_space<vmem>>, vector<8x256xf32>
    tpu.vector_store %arg9[%c56, %c0_36], %69 {strides = array<i32>} : memref<200x256xf32, #tpu.memory_space<vmem>>, vector<8x256xf32>,
    %71 = vector.extract_strided_slice %6 {offsets = [0, 241], sizes = [8, 15], strides = [1, 1]} : vector<8x256xf32> to vector<8x15xf32>
    %72 = vector.extract_strided_slice %6 {offsets = [0, 0], sizes = [8, 241], strides = [1, 1]} : vector<8x256xf32> to vector<8x241xf32>
    %73 = tpu.concatenate %71, %72 in 1 : vector<8x15xf32>, vector<8x241xf32> -> vector<8x256xf32>
    %c8_37 = arith.constant 8 : index
    %c0_38 = arith.constant 0 : index
    %c0_39 = arith.constant 0 : index
    %74 = vector.load %arg5[%c8_37, %c0_38, %c0_39] : memref<25x1x256xf32, #tpu.memory_space<vmem>>, vector<1x1x256xf32>
    %75 = vector.shape_cast %74 : vector<1x1x256xf32> to vector<1x256xf32>
    %76 = vector.broadcast %75 : vector<1x256xf32> to vector<8x256xf32>
    %77 = arith.mulf %73, %76 : vector<8x256xf32>
    %c64 = arith.constant 64 : index
    %c0_40 = arith.constant 0 : index
    %78 = vector.load %arg9[%c64, %c0_40] : memref<200x256xf32, #tpu.memory_space<vmem>>, vector<8x256xf32>
    tpu.vector_store %arg9[%c64, %c0_40], %77 {strides = array<i32>} : memref<200x256xf32, #tpu.memory_space<vmem>>, vector<8x256xf32>,
    %79 = vector.extract_strided_slice %6 {offsets = [0, 242], sizes = [8, 14], strides = [1, 1]} : vector<8x256xf32> to vector<8x14xf32>
    %80 = vector.extract_strided_slice %6 {offsets = [0, 0], sizes = [8, 242], strides = [1, 1]} : vector<8x256xf32> to vector<8x242xf32>
    %81 = tpu.concatenate %79, %80 in 1 : vector<8x14xf32>, vector<8x242xf32> -> vector<8x256xf32>
    %c9 = arith.constant 9 : index
    %c0_41 = arith.constant 0 : index
    %c0_42 = arith.constant 0 : index
    %82 = vector.load %arg5[%c9, %c0_41, %c0_42] : memref<25x1x256xf32, #tpu.memory_space<vmem>>, vector<1x1x256xf32>
    %83 = vector.shape_cast %82 : vector<1x1x256xf32> to vector<1x256xf32>
    %84 = vector.broadcast %83 : vector<1x256xf32> to vector<8x256xf32>
    %85 = arith.mulf %81, %84 : vector<8x256xf32>
    %c72 = arith.constant 72 : index
    %c0_43 = arith.constant 0 : index
    %86 = vector.load %arg9[%c72, %c0_43] : memref<200x256xf32, #tpu.memory_space<vmem>>, vector<8x256xf32>
    tpu.vector_store %arg9[%c72, %c0_43], %85 {strides = array<i32>} : memref<200x256xf32, #tpu.memory_space<vmem>>, vector<8x256xf32>,
    %87 = vector.extract_strided_slice %6 {offsets = [0, 254], sizes = [8, 2], strides = [1, 1]} : vector<8x256xf32> to vector<8x2xf32>
    %88 = vector.extract_strided_slice %6 {offsets = [0, 0], sizes = [8, 254], strides = [1, 1]} : vector<8x256xf32> to vector<8x254xf32>
    %89 = tpu.concatenate %87, %88 in 1 : vector<8x2xf32>, vector<8x254xf32> -> vector<8x256xf32>
    %c10 = arith.constant 10 : index
    %c0_44 = arith.constant 0 : index
    %c0_45 = arith.constant 0 : index
    %90 = vector.load %arg5[%c10, %c0_44, %c0_45] : memref<25x1x256xf32, #tpu.memory_space<vmem>>, vector<1x1x256xf32>
    %91 = vector.shape_cast %90 : vector<1x1x256xf32> to vector<1x256xf32>
    %92 = vector.broadcast %91 : vector<1x256xf32> to vector<8x256xf32>
    %93 = arith.mulf %89, %92 : vector<8x256xf32>
    %c80 = arith.constant 80 : index
    %c0_46 = arith.constant 0 : index
    %94 = vector.load %arg9[%c80, %c0_46] : memref<200x256xf32, #tpu.memory_space<vmem>>, vector<8x256xf32>
    tpu.vector_store %arg9[%c80, %c0_46], %93 {strides = array<i32>} : memref<200x256xf32, #tpu.memory_space<vmem>>, vector<8x256xf32>,
    %95 = vector.extract_strided_slice %6 {offsets = [0, 255], sizes = [8, 1], strides = [1, 1]} : vector<8x256xf32> to vector<8x1xf32>
    %96 = vector.extract_strided_slice %6 {offsets = [0, 0], sizes = [8, 255], strides = [1, 1]} : vector<8x256xf32> to vector<8x255xf32>
    %97 = tpu.concatenate %95, %96 in 1 : vector<8x1xf32>, vector<8x255xf32> -> vector<8x256xf32>
    %c11 = arith.constant 11 : index
    %c0_47 = arith.constant 0 : index
    %c0_48 = arith.constant 0 : index
    %98 = vector.load %arg5[%c11, %c0_47, %c0_48] : memref<25x1x256xf32, #tpu.memory_space<vmem>>, vector<1x1x256xf32>
    %99 = vector.shape_cast %98 : vector<1x1x256xf32> to vector<1x256xf32>
    %100 = vector.broadcast %99 : vector<1x256xf32> to vector<8x256xf32>
    %101 = arith.mulf %97, %100 : vector<8x256xf32>
    %c88 = arith.constant 88 : index
    %c0_49 = arith.constant 0 : index
    %102 = vector.load %arg9[%c88, %c0_49] : memref<200x256xf32, #tpu.memory_space<vmem>>, vector<8x256xf32>
    tpu.vector_store %arg9[%c88, %c0_49], %101 {strides = array<i32>} : memref<200x256xf32, #tpu.memory_space<vmem>>, vector<8x256xf32>,
    %c12 = arith.constant 12 : index
    %c0_50 = arith.constant 0 : index
    %c0_51 = arith.constant 0 : index
    %103 = vector.load %arg5[%c12, %c0_50, %c0_51] : memref<25x1x256xf32, #tpu.memory_space<vmem>>, vector<1x1x256xf32>
    %104 = vector.shape_cast %103 : vector<1x1x256xf32> to vector<1x256xf32>
    %105 = vector.broadcast %104 : vector<1x256xf32> to vector<8x256xf32>
    %106 = arith.mulf %6, %105 : vector<8x256xf32>
    %c96 = arith.constant 96 : index
    %c0_52 = arith.constant 0 : index
    %107 = vector.load %arg9[%c96, %c0_52] : memref<200x256xf32, #tpu.memory_space<vmem>>, vector<8x256xf32>
    tpu.vector_store %arg9[%c96, %c0_52], %106 {strides = array<i32>} : memref<200x256xf32, #tpu.memory_space<vmem>>, vector<8x256xf32>,
    %108 = vector.extract_strided_slice %6 {offsets = [0, 1], sizes = [8, 255], strides = [1, 1]} : vector<8x256xf32> to vector<8x255xf32>
    %109 = vector.extract_strided_slice %6 {offsets = [0, 0], sizes = [8, 1], strides = [1, 1]} : vector<8x256xf32> to vector<8x1xf32>
    %110 = tpu.concatenate %108, %109 in 1 : vector<8x255xf32>, vector<8x1xf32> -> vector<8x256xf32>
    %c13 = arith.constant 13 : index
    %c0_53 = arith.constant 0 : index
    %c0_54 = arith.constant 0 : index
    %111 = vector.load %arg5[%c13, %c0_53, %c0_54] : memref<25x1x256xf32, #tpu.memory_space<vmem>>, vector<1x1x256xf32>
    %112 = vector.shape_cast %111 : vector<1x1x256xf32> to vector<1x256xf32>
    %113 = vector.broadcast %112 : vector<1x256xf32> to vector<8x256xf32>
    %114 = arith.mulf %110, %113 : vector<8x256xf32>
    %c104 = arith.constant 104 : index
    %c0_55 = arith.constant 0 : index
    %115 = vector.load %arg9[%c104, %c0_55] : memref<200x256xf32, #tpu.memory_space<vmem>>, vector<8x256xf32>
    tpu.vector_store %arg9[%c104, %c0_55], %114 {strides = array<i32>} : memref<200x256xf32, #tpu.memory_space<vmem>>, vector<8x256xf32>,
    %116 = vector.extract_strided_slice %6 {offsets = [0, 2], sizes = [8, 254], strides = [1, 1]} : vector<8x256xf32> to vector<8x254xf32>
    %117 = vector.extract_strided_slice %6 {offsets = [0, 0], sizes = [8, 2], strides = [1, 1]} : vector<8x256xf32> to vector<8x2xf32>
    %118 = tpu.concatenate %116, %117 in 1 : vector<8x254xf32>, vector<8x2xf32> -> vector<8x256xf32>
    %c14 = arith.constant 14 : index
    %c0_56 = arith.constant 0 : index
    %c0_57 = arith.constant 0 : index
    %119 = vector.load %arg5[%c14, %c0_56, %c0_57] : memref<25x1x256xf32, #tpu.memory_space<vmem>>, vector<1x1x256xf32>
    %120 = vector.shape_cast %119 : vector<1x1x256xf32> to vector<1x256xf32>
    %121 = vector.broadcast %120 : vector<1x256xf32> to vector<8x256xf32>
    %122 = arith.mulf %118, %121 : vector<8x256xf32>
    %c112 = arith.constant 112 : index
    %c0_58 = arith.constant 0 : index
    %123 = vector.load %arg9[%c112, %c0_58] : memref<200x256xf32, #tpu.memory_space<vmem>>, vector<8x256xf32>
    tpu.vector_store %arg9[%c112, %c0_58], %122 {strides = array<i32>} : memref<200x256xf32, #tpu.memory_space<vmem>>, vector<8x256xf32>,
    %124 = vector.extract_strided_slice %6 {offsets = [0, 14], sizes = [8, 242], strides = [1, 1]} : vector<8x256xf32> to vector<8x242xf32>
    %125 = vector.extract_strided_slice %6 {offsets = [0, 0], sizes = [8, 14], strides = [1, 1]} : vector<8x256xf32> to vector<8x14xf32>
    %126 = tpu.concatenate %124, %125 in 1 : vector<8x242xf32>, vector<8x14xf32> -> vector<8x256xf32>
    %c15 = arith.constant 15 : index
    %c0_59 = arith.constant 0 : index
    %c0_60 = arith.constant 0 : index
    %127 = vector.load %arg5[%c15, %c0_59, %c0_60] : memref<25x1x256xf32, #tpu.memory_space<vmem>>, vector<1x1x256xf32>
    %128 = vector.shape_cast %127 : vector<1x1x256xf32> to vector<1x256xf32>
    %129 = vector.broadcast %128 : vector<1x256xf32> to vector<8x256xf32>
    %130 = arith.mulf %126, %129 : vector<8x256xf32>
    %c120 = arith.constant 120 : index
    %c0_61 = arith.constant 0 : index
    %131 = vector.load %arg9[%c120, %c0_61] : memref<200x256xf32, #tpu.memory_space<vmem>>, vector<8x256xf32>
    tpu.vector_store %arg9[%c120, %c0_61], %130 {strides = array<i32>} : memref<200x256xf32, #tpu.memory_space<vmem>>, vector<8x256xf32>,
    %132 = vector.extract_strided_slice %6 {offsets = [0, 15], sizes = [8, 241], strides = [1, 1]} : vector<8x256xf32> to vector<8x241xf32>
    %133 = vector.extract_strided_slice %6 {offsets = [0, 0], sizes = [8, 15], strides = [1, 1]} : vector<8x256xf32> to vector<8x15xf32>
    %134 = tpu.concatenate %132, %133 in 1 : vector<8x241xf32>, vector<8x15xf32> -> vector<8x256xf32>
    %c16_62 = arith.constant 16 : index
    %c0_63 = arith.constant 0 : index
    %c0_64 = arith.constant 0 : index
    %135 = vector.load %arg5[%c16_62, %c0_63, %c0_64] : memref<25x1x256xf32, #tpu.memory_space<vmem>>, vector<1x1x256xf32>
    %136 = vector.shape_cast %135 : vector<1x1x256xf32> to vector<1x256xf32>
    %137 = vector.broadcast %136 : vector<1x256xf32> to vector<8x256xf32>
    %138 = arith.mulf %134, %137 : vector<8x256xf32>
    %c128 = arith.constant 128 : index
    %c0_65 = arith.constant 0 : index
    %139 = vector.load %arg9[%c128, %c0_65] : memref<200x256xf32, #tpu.memory_space<vmem>>, vector<8x256xf32>
    tpu.vector_store %arg9[%c128, %c0_65], %138 {strides = array<i32>} : memref<200x256xf32, #tpu.memory_space<vmem>>, vector<8x256xf32>,
    %140 = vector.extract_strided_slice %6 {offsets = [0, 16], sizes = [8, 240], strides = [1, 1]} : vector<8x256xf32> to vector<8x240xf32>
    %141 = vector.extract_strided_slice %6 {offsets = [0, 0], sizes = [8, 16], strides = [1, 1]} : vector<8x256xf32> to vector<8x16xf32>
    %142 = tpu.concatenate %140, %141 in 1 : vector<8x240xf32>, vector<8x16xf32> -> vector<8x256xf32>
    %c17 = arith.constant 17 : index
    %c0_66 = arith.constant 0 : index
    %c0_67 = arith.constant 0 : index
    %143 = vector.load %arg5[%c17, %c0_66, %c0_67] : memref<25x1x256xf32, #tpu.memory_space<vmem>>, vector<1x1x256xf32>
    %144 = vector.shape_cast %143 : vector<1x1x256xf32> to vector<1x256xf32>
    %145 = vector.broadcast %144 : vector<1x256xf32> to vector<8x256xf32>
    %146 = arith.mulf %142, %145 : vector<8x256xf32>
    %c136 = arith.constant 136 : index
    %c0_68 = arith.constant 0 : index
    %147 = vector.load %arg9[%c136, %c0_68] : memref<200x256xf32, #tpu.memory_space<vmem>>, vector<8x256xf32>
    tpu.vector_store %arg9[%c136, %c0_68], %146 {strides = array<i32>} : memref<200x256xf32, #tpu.memory_space<vmem>>, vector<8x256xf32>,
    %148 = vector.extract_strided_slice %6 {offsets = [0, 17], sizes = [8, 239], strides = [1, 1]} : vector<8x256xf32> to vector<8x239xf32>
    %149 = vector.extract_strided_slice %6 {offsets = [0, 0], sizes = [8, 17], strides = [1, 1]} : vector<8x256xf32> to vector<8x17xf32>
    %150 = tpu.concatenate %148, %149 in 1 : vector<8x239xf32>, vector<8x17xf32> -> vector<8x256xf32>
    %c18 = arith.constant 18 : index
    %c0_69 = arith.constant 0 : index
    %c0_70 = arith.constant 0 : index
    %151 = vector.load %arg5[%c18, %c0_69, %c0_70] : memref<25x1x256xf32, #tpu.memory_space<vmem>>, vector<1x1x256xf32>
    %152 = vector.shape_cast %151 : vector<1x1x256xf32> to vector<1x256xf32>
    %153 = vector.broadcast %152 : vector<1x256xf32> to vector<8x256xf32>
    %154 = arith.mulf %150, %153 : vector<8x256xf32>
    %c144 = arith.constant 144 : index
    %c0_71 = arith.constant 0 : index
    %155 = vector.load %arg9[%c144, %c0_71] : memref<200x256xf32, #tpu.memory_space<vmem>>, vector<8x256xf32>
    tpu.vector_store %arg9[%c144, %c0_71], %154 {strides = array<i32>} : memref<200x256xf32, #tpu.memory_space<vmem>>, vector<8x256xf32>,
    %156 = vector.extract_strided_slice %6 {offsets = [0, 18], sizes = [8, 238], strides = [1, 1]} : vector<8x256xf32> to vector<8x238xf32>
    %157 = vector.extract_strided_slice %6 {offsets = [0, 0], sizes = [8, 18], strides = [1, 1]} : vector<8x256xf32> to vector<8x18xf32>
    %158 = tpu.concatenate %156, %157 in 1 : vector<8x238xf32>, vector<8x18xf32> -> vector<8x256xf32>
    %c19 = arith.constant 19 : index
    %c0_72 = arith.constant 0 : index
    %c0_73 = arith.constant 0 : index
    %159 = vector.load %arg5[%c19, %c0_72, %c0_73] : memref<25x1x256xf32, #tpu.memory_space<vmem>>, vector<1x1x256xf32>
    %160 = vector.shape_cast %159 : vector<1x1x256xf32> to vector<1x256xf32>
    %161 = vector.broadcast %160 : vector<1x256xf32> to vector<8x256xf32>
    %162 = arith.mulf %158, %161 : vector<8x256xf32>
    %c152 = arith.constant 152 : index
    %c0_74 = arith.constant 0 : index
    %163 = vector.load %arg9[%c152, %c0_74] : memref<200x256xf32, #tpu.memory_space<vmem>>, vector<8x256xf32>
    tpu.vector_store %arg9[%c152, %c0_74], %162 {strides = array<i32>} : memref<200x256xf32, #tpu.memory_space<vmem>>, vector<8x256xf32>,
    %164 = vector.extract_strided_slice %6 {offsets = [0, 30], sizes = [8, 226], strides = [1, 1]} : vector<8x256xf32> to vector<8x226xf32>
    %165 = vector.extract_strided_slice %6 {offsets = [0, 0], sizes = [8, 30], strides = [1, 1]} : vector<8x256xf32> to vector<8x30xf32>
    %166 = tpu.concatenate %164, %165 in 1 : vector<8x226xf32>, vector<8x30xf32> -> vector<8x256xf32>
    %c20 = arith.constant 20 : index
    %c0_75 = arith.constant 0 : index
    %c0_76 = arith.constant 0 : index
    %167 = vector.load %arg5[%c20, %c0_75, %c0_76] : memref<25x1x256xf32, #tpu.memory_space<vmem>>, vector<1x1x256xf32>
    %168 = vector.shape_cast %167 : vector<1x1x256xf32> to vector<1x256xf32>
    %169 = vector.broadcast %168 : vector<1x256xf32> to vector<8x256xf32>
    %170 = arith.mulf %166, %169 : vector<8x256xf32>
    %c160 = arith.constant 160 : index
    %c0_77 = arith.constant 0 : index
    %171 = vector.load %arg9[%c160, %c0_77] : memref<200x256xf32, #tpu.memory_space<vmem>>, vector<8x256xf32>
    tpu.vector_store %arg9[%c160, %c0_77], %170 {strides = array<i32>} : memref<200x256xf32, #tpu.memory_space<vmem>>, vector<8x256xf32>,
    %172 = vector.extract_strided_slice %6 {offsets = [0, 31], sizes = [8, 225], strides = [1, 1]} : vector<8x256xf32> to vector<8x225xf32>
    %173 = vector.extract_strided_slice %6 {offsets = [0, 0], sizes = [8, 31], strides = [1, 1]} : vector<8x256xf32> to vector<8x31xf32>
    %174 = tpu.concatenate %172, %173 in 1 : vector<8x225xf32>, vector<8x31xf32> -> vector<8x256xf32>
    %c21 = arith.constant 21 : index
    %c0_78 = arith.constant 0 : index
    %c0_79 = arith.constant 0 : index
    %175 = vector.load %arg5[%c21, %c0_78, %c0_79] : memref<25x1x256xf32, #tpu.memory_space<vmem>>, vector<1x1x256xf32>
    %176 = vector.shape_cast %175 : vector<1x1x256xf32> to vector<1x256xf32>
    %177 = vector.broadcast %176 : vector<1x256xf32> to vector<8x256xf32>
    %178 = arith.mulf %174, %177 : vector<8x256xf32>
    %c168 = arith.constant 168 : index
    %c0_80 = arith.constant 0 : index
    %179 = vector.load %arg9[%c168, %c0_80] : memref<200x256xf32, #tpu.memory_space<vmem>>, vector<8x256xf32>
    tpu.vector_store %arg9[%c168, %c0_80], %178 {strides = array<i32>} : memref<200x256xf32, #tpu.memory_space<vmem>>, vector<8x256xf32>,
    %180 = vector.extract_strided_slice %6 {offsets = [0, 32], sizes = [8, 224], strides = [1, 1]} : vector<8x256xf32> to vector<8x224xf32>
    %181 = vector.extract_strided_slice %6 {offsets = [0, 0], sizes = [8, 32], strides = [1, 1]} : vector<8x256xf32> to vector<8x32xf32>
    %182 = tpu.concatenate %180, %181 in 1 : vector<8x224xf32>, vector<8x32xf32> -> vector<8x256xf32>
    %c22 = arith.constant 22 : index
    %c0_81 = arith.constant 0 : index
    %c0_82 = arith.constant 0 : index
    %183 = vector.load %arg5[%c22, %c0_81, %c0_82] : memref<25x1x256xf32, #tpu.memory_space<vmem>>, vector<1x1x256xf32>
    %184 = vector.shape_cast %183 : vector<1x1x256xf32> to vector<1x256xf32>
    %185 = vector.broadcast %184 : vector<1x256xf32> to vector<8x256xf32>
    %186 = arith.mulf %182, %185 : vector<8x256xf32>
    %c176 = arith.constant 176 : index
    %c0_83 = arith.constant 0 : index
    %187 = vector.load %arg9[%c176, %c0_83] : memref<200x256xf32, #tpu.memory_space<vmem>>, vector<8x256xf32>
    tpu.vector_store %arg9[%c176, %c0_83], %186 {strides = array<i32>} : memref<200x256xf32, #tpu.memory_space<vmem>>, vector<8x256xf32>,
    %188 = vector.extract_strided_slice %6 {offsets = [0, 33], sizes = [8, 223], strides = [1, 1]} : vector<8x256xf32> to vector<8x223xf32>
    %189 = vector.extract_strided_slice %6 {offsets = [0, 0], sizes = [8, 33], strides = [1, 1]} : vector<8x256xf32> to vector<8x33xf32>
    %190 = tpu.concatenate %188, %189 in 1 : vector<8x223xf32>, vector<8x33xf32> -> vector<8x256xf32>
    %c23 = arith.constant 23 : index
    %c0_84 = arith.constant 0 : index
    %c0_85 = arith.constant 0 : index
    %191 = vector.load %arg5[%c23, %c0_84, %c0_85] : memref<25x1x256xf32, #tpu.memory_space<vmem>>, vector<1x1x256xf32>
    %192 = vector.shape_cast %191 : vector<1x1x256xf32> to vector<1x256xf32>
    %193 = vector.broadcast %192 : vector<1x256xf32> to vector<8x256xf32>
    %194 = arith.mulf %190, %193 : vector<8x256xf32>
    %c184 = arith.constant 184 : index
    %c0_86 = arith.constant 0 : index
    %195 = vector.load %arg9[%c184, %c0_86] : memref<200x256xf32, #tpu.memory_space<vmem>>, vector<8x256xf32>
    tpu.vector_store %arg9[%c184, %c0_86], %194 {strides = array<i32>} : memref<200x256xf32, #tpu.memory_space<vmem>>, vector<8x256xf32>,
    %196 = vector.extract_strided_slice %6 {offsets = [0, 34], sizes = [8, 222], strides = [1, 1]} : vector<8x256xf32> to vector<8x222xf32>
    %197 = vector.extract_strided_slice %6 {offsets = [0, 0], sizes = [8, 34], strides = [1, 1]} : vector<8x256xf32> to vector<8x34xf32>
    %198 = tpu.concatenate %196, %197 in 1 : vector<8x222xf32>, vector<8x34xf32> -> vector<8x256xf32>
    %c24_87 = arith.constant 24 : index
    %c0_88 = arith.constant 0 : index
    %c0_89 = arith.constant 0 : index
    %199 = vector.load %arg5[%c24_87, %c0_88, %c0_89] : memref<25x1x256xf32, #tpu.memory_space<vmem>>, vector<1x1x256xf32>
    %200 = vector.shape_cast %199 : vector<1x1x256xf32> to vector<1x256xf32>
    %201 = vector.broadcast %200 : vector<1x256xf32> to vector<8x256xf32>
    %202 = arith.mulf %198, %201 : vector<8x256xf32>
    %c192 = arith.constant 192 : index
    %c0_90 = arith.constant 0 : index
    %203 = vector.load %arg9[%c192, %c0_90] : memref<200x256xf32, #tpu.memory_space<vmem>>, vector<8x256xf32>
    tpu.vector_store %arg9[%c192, %c0_90], %202 {strides = array<i32>} : memref<200x256xf32, #tpu.memory_space<vmem>>, vector<8x256xf32>,
    %c0_91 = arith.constant 0 : index
    %c0_92 = arith.constant 0 : index
    %204 = vector.load %arg3[%c0_91, %c0_92] : memref<8x200xf32, #tpu.memory_space<vmem>>, vector<8x200xf32>
    %c0_93 = arith.constant 0 : index
    %c0_94 = arith.constant 0 : index
    %205 = vector.load %arg9[%c0_93, %c0_94] : memref<200x256xf32, #tpu.memory_space<vmem>>, vector<200x256xf32>
    %cst = arith.constant dense<0.000000e+00> : vector<8x256xf32>
    %206 = tpu.matmul %204, %205, %cst {dimension_numbers = #tpu.dot_dimension_numbers<[1], [0], [0], [1], [0, 0, 1, 1], [], []>} : vector<8x200xf32>, vector<200x256xf32>, vector<8x256xf32> -> vector<8x256xf32>
    %c0_95 = arith.constant 0 : index
    %c0_96 = arith.constant 0 : index
    %207 = vector.load %arg4[%c0_95, %c0_96] : memref<8x1xf32, #tpu.memory_space<vmem>>, vector<8x1xf32>
    %208 = vector.broadcast %207 : vector<8x1xf32> to vector<8x256xf32>
    %209 = arith.addf %206, %208 : vector<8x256xf32>
    %c0_97 = arith.constant 0 : index
    %c0_98 = arith.constant 0 : index
    %c0_99 = arith.constant 0 : index
    %210 = vector.load %arg6[%c0_97, %c0_98, %c0_99] : memref<1x8x256xf32, #tpu.memory_space<vmem>>, vector<1x8x256xf32>
    %211 = vector.shape_cast %210 : vector<1x8x256xf32> to vector<8x256xf32>
    %212 = vector.shape_cast %209 : vector<8x256xf32> to vector<1x8x256xf32>
    tpu.vector_store %arg6[%c0_97, %c0_98, %c0_99], %212 {strides = array<i32>} : memref<1x8x256xf32, #tpu.memory_space<vmem>>, vector<1x8x256xf32>,
    %cst_100 = arith.constant dense<0.000000e+00> : vector<8xf32>
    %213 = vector.multi_reduction <add>, %209, %cst_100 [1] : vector<8x256xf32> to vector<8xf32>
    %214 = vector.shape_cast %213 : vector<8xf32> to vector<8x1xf32>
    %cst_101 = arith.constant 3.906250e-03 : f32
    %215 = vector.broadcast %cst_101 : f32 to vector<8x1xf32>
    %216 = arith.mulf %214, %215 : vector<8x1xf32>
    %c0_102 = arith.constant 0 : index
    %c0_103 = arith.constant 0 : index
    %c0_104 = arith.constant 0 : index
    %217 = vector.load %arg7[%c0_102, %c0_103, %c0_104] : memref<1x8x1xf32, #tpu.memory_space<vmem>>, vector<1x8x1xf32>
    %218 = vector.shape_cast %217 : vector<1x8x1xf32> to vector<8x1xf32>
    %219 = vector.shape_cast %216 : vector<8x1xf32> to vector<1x8x1xf32>
    tpu.vector_store %arg7[%c0_102, %c0_103, %c0_104], %219 {strides = array<i32>} : memref<1x8x1xf32, #tpu.memory_space<vmem>>, vector<1x8x1xf32>,
    return
  }
  func.func @transform_0(%arg0: i32) -> (i32, i32, i32) {
    %c0_i32 = arith.constant 0 : i32
    %c0_i32_0 = arith.constant 0 : i32
    %c0_i32_1 = arith.constant 0 : i32
    return %arg0, %c0_i32, %c0_i32_0 : i32, i32, i32
  }
  func.func @transform_1(%arg0: i32) -> (i32, i32, i32) {
    %c0_i32 = arith.constant 0 : i32
    %c0_i32_0 = arith.constant 0 : i32
    %c0_i32_1 = arith.constant 0 : i32
    return %arg0, %c0_i32, %c0_i32_0 : i32, i32, i32
  }
  func.func @transform_2(%arg0: i32) -> (i32, i32) {
    %c0_i32 = arith.constant 0 : i32
    %c0_i32_0 = arith.constant 0 : i32
    %c0_i32_1 = arith.constant 0 : i32
    return %c0_i32, %c0_i32_0 : i32, i32
  }
  func.func @transform_3(%arg0: i32) -> (i32, i32) {
    %c0_i32 = arith.constant 0 : i32
    %c0_i32_0 = arith.constant 0 : i32
    %c0_i32_1 = arith.constant 0 : i32
    return %c0_i32, %c0_i32_0 : i32, i32
  }
  func.func @transform_4(%arg0: i32) -> (i32, i32, i32) {
    %c0_i32 = arith.constant 0 : i32
    %c0_i32_0 = arith.constant 0 : i32
    %c0_i32_1 = arith.constant 0 : i32
    %c0_i32_2 = arith.constant 0 : i32
    return %c0_i32, %c0_i32_0, %c0_i32_1 : i32, i32, i32
  }
  func.func @transform_5(%arg0: i32) -> (i32, i32, i32) {
    %c0_i32 = arith.constant 0 : i32
    %c0_i32_0 = arith.constant 0 : i32
    %c0_i32_1 = arith.constant 0 : i32
    return %arg0, %c0_i32, %c0_i32_0 : i32, i32, i32
  }
  func.func @transform_6(%arg0: i32) -> (i32, i32, i32) {
    %c0_i32 = arith.constant 0 : i32
    %c0_i32_0 = arith.constant 0 : i32
    %c0_i32_1 = arith.constant 0 : i32
    return %arg0, %c0_i32, %c0_i32_0 : i32, i32, i32
  }
}

module attributes {stable_mosaic.version = 11 : i64} {
  func.func @_gate_scale_conv_kernel(%arg0: i32, %arg1: memref<1x4x256xf32, #tpu.memory_space<vmem>>, %arg2: memref<1x8x256xf32, #tpu.memory_space<vmem>>, %arg3: memref<8x2xf32, #tpu.memory_space<vmem>>, %arg4: memref<8x8xf32, #tpu.memory_space<vmem>>, %arg5: memref<8x1xf32, #tpu.memory_space<vmem>>, %arg6: memref<8x8xf32, #tpu.memory_space<vmem>>, %arg7: memref<8x1xf32, #tpu.memory_space<vmem>>, %arg8: memref<8x1xf32, #tpu.memory_space<vmem>>, %arg9: memref<8x1xf32, #tpu.memory_space<vmem>>, %arg10: memref<4x72xf32, #tpu.memory_space<vmem>>, %arg11: memref<4x1xf32, #tpu.memory_space<vmem>>, %arg12: memref<9x1x256xf32, #tpu.memory_space<vmem>>, %arg13: memref<1x4x256xf32, #tpu.memory_space<vmem>>, %arg14: memref<72x256xf32, #tpu.memory_space<vmem>>) attributes {dimension_semantics = [#tpu.dimension_semantics<parallel>], iteration_bounds = array<i64: 2>, scalar_prefetch = 0 : i64, scratch_operands = 1 : i64, tpu.core_type = #tpu.core_type<tc>, window_params = [{transform_indices = @transform_0, window_bounds = array<i64: 1, 4, 256>}, {transform_indices = @transform_1, window_bounds = array<i64: 1, 8, 256>}, {pipeline_mode = #tpu.pipeline_mode<synchronous>, transform_indices = @transform_2, window_bounds = array<i64: 8, 2>}, {pipeline_mode = #tpu.pipeline_mode<synchronous>, transform_indices = @transform_3, window_bounds = array<i64: 8, 8>}, {pipeline_mode = #tpu.pipeline_mode<synchronous>, transform_indices = @transform_4, window_bounds = array<i64: 8, 1>}, {pipeline_mode = #tpu.pipeline_mode<synchronous>, transform_indices = @transform_5, window_bounds = array<i64: 8, 8>}, {pipeline_mode = #tpu.pipeline_mode<synchronous>, transform_indices = @transform_6, window_bounds = array<i64: 8, 1>}, {pipeline_mode = #tpu.pipeline_mode<synchronous>, transform_indices = @transform_7, window_bounds = array<i64: 8, 1>}, {pipeline_mode = #tpu.pipeline_mode<synchronous>, transform_indices = @transform_8, window_bounds = array<i64: 8, 1>}, {pipeline_mode = #tpu.pipeline_mode<synchronous>, transform_indices = @transform_9, window_bounds = array<i64: 4, 72>}, {pipeline_mode = #tpu.pipeline_mode<synchronous>, transform_indices = @transform_10, window_bounds = array<i64: 4, 1>}, {pipeline_mode = #tpu.pipeline_mode<synchronous>, transform_indices = @transform_11, window_bounds = array<i64: 9, 1, 256>}, {transform_indices = @transform_12, window_bounds = array<i64: 1, 4, 256>}]} {
    %c0 = arith.constant 0 : index
    %c0_0 = arith.constant 0 : index
    %0 = vector.load %arg3[%c0, %c0_0] : memref<8x2xf32, #tpu.memory_space<vmem>>, vector<8x2xf32>
    %c0_1 = arith.constant 0 : index
    %c0_2 = arith.constant 0 : index
    %1 = vector.load %arg4[%c0_1, %c0_2] : memref<8x8xf32, #tpu.memory_space<vmem>>, vector<8x8xf32>
    %2 = vector.shape_cast %1 : vector<8x8xf32> to vector<8x8x1xf32>
    %3 = vector.shape_cast %0 : vector<8x2xf32> to vector<1x8x2xf32>
    %4 = vector.broadcast %2 : vector<8x8x1xf32> to vector<8x8x2xf32>
    %5 = vector.broadcast %3 : vector<1x8x2xf32> to vector<8x8x2xf32>
    %6 = arith.mulf %4, %5 : vector<8x8x2xf32>
    %cst = arith.constant dense<0.000000e+00> : vector<8x2xf32>
    %7 = vector.multi_reduction <add>, %6, %cst [1] : vector<8x8x2xf32> to vector<8x2xf32>
    %c0_3 = arith.constant 0 : index
    %c0_4 = arith.constant 0 : index
    %8 = vector.load %arg5[%c0_3, %c0_4] : memref<8x1xf32, #tpu.memory_space<vmem>>, vector<8x1xf32>
    %9 = vector.broadcast %8 : vector<8x1xf32> to vector<8x2xf32>
    %10 = arith.addf %7, %9 : vector<8x2xf32>
    %c0_5 = arith.constant 0 : index
    %c0_6 = arith.constant 0 : index
    %11 = vector.load %arg6[%c0_5, %c0_6] : memref<8x8xf32, #tpu.memory_space<vmem>>, vector<8x8xf32>
    %12 = vector.shape_cast %11 : vector<8x8xf32> to vector<8x8x1xf32>
    %13 = vector.shape_cast %10 : vector<8x2xf32> to vector<1x8x2xf32>
    %14 = vector.broadcast %12 : vector<8x8x1xf32> to vector<8x8x2xf32>
    %15 = vector.broadcast %13 : vector<1x8x2xf32> to vector<8x8x2xf32>
    %16 = arith.mulf %14, %15 : vector<8x8x2xf32>
    %cst_7 = arith.constant dense<0.000000e+00> : vector<8x2xf32>
    %17 = vector.multi_reduction <add>, %16, %cst_7 [1] : vector<8x8x2xf32> to vector<8x2xf32>
    %c0_8 = arith.constant 0 : index
    %c0_9 = arith.constant 0 : index
    %18 = vector.load %arg7[%c0_8, %c0_9] : memref<8x1xf32, #tpu.memory_space<vmem>>, vector<8x1xf32>
    %19 = vector.broadcast %18 : vector<8x1xf32> to vector<8x2xf32>
    %20 = arith.addf %17, %19 : vector<8x2xf32>
    %c0_10 = arith.constant 0 : index
    %c0_11 = arith.constant 0 : index
    %21 = vector.load %arg8[%c0_10, %c0_11] : memref<8x1xf32, #tpu.memory_space<vmem>>, vector<8x1xf32>
    %22 = vector.broadcast %21 : vector<8x1xf32> to vector<8x2xf32>
    %23 = arith.mulf %20, %22 : vector<8x2xf32>
    %c0_12 = arith.constant 0 : index
    %c0_13 = arith.constant 0 : index
    %24 = vector.load %arg9[%c0_12, %c0_13] : memref<8x1xf32, #tpu.memory_space<vmem>>, vector<8x1xf32>
    %25 = vector.broadcast %24 : vector<8x1xf32> to vector<8x2xf32>
    %26 = arith.addf %23, %25 : vector<8x2xf32>
    %cst_14 = arith.constant dense<0xFF800000> : vector<8xf32>
    %27 = vector.multi_reduction <maximumf>, %26, %cst_14 [1] : vector<8x2xf32> to vector<8xf32>
    %28 = vector.shape_cast %27 : vector<8xf32> to vector<8x1xf32>
    %29 = vector.broadcast %28 : vector<8x1xf32> to vector<8x2xf32>
    %30 = arith.subf %26, %29 : vector<8x2xf32>
    %31 = math.exp %30 : vector<8x2xf32>
    %cst_15 = arith.constant dense<0.000000e+00> : vector<8xf32>
    %32 = vector.multi_reduction <add>, %31, %cst_15 [1] : vector<8x2xf32> to vector<8xf32>
    %33 = vector.shape_cast %32 : vector<8xf32> to vector<8x1xf32>
    %34 = vector.broadcast %33 : vector<8x1xf32> to vector<8x2xf32>
    %35 = arith.divf %31, %34 : vector<8x2xf32>
    %36 = tpu.iota {dimensions = array<i32: 1>} : vector<8x2xi32>
    %37 = vector.broadcast %arg0 : i32 to vector<8x2xi32>
    %38 = arith.cmpi eq, %36, %37 : vector<8x2xi32>
    %cst_16 = arith.constant 0.000000e+00 : f32
    %39 = vector.broadcast %cst_16 : f32 to vector<8x2xf32>
    %40 = arith.select %38, %35, %39 : vector<8x2xi1>, vector<8x2xf32>
    %cst_17 = arith.constant dense<0.000000e+00> : vector<8xf32>
    %41 = vector.multi_reduction <add>, %40, %cst_17 [1] : vector<8x2xf32> to vector<8xf32>
    %42 = vector.shape_cast %41 : vector<8xf32> to vector<8x1xf32>
    %c0_18 = arith.constant 0 : index
    %c0_19 = arith.constant 0 : index
    %c0_20 = arith.constant 0 : index
    %43 = vector.load %arg2[%c0_18, %c0_19, %c0_20] : memref<1x8x256xf32, #tpu.memory_space<vmem>>, vector<1x8x256xf32>
    %44 = vector.shape_cast %43 : vector<1x8x256xf32> to vector<8x256xf32>
    %45 = vector.broadcast %42 : vector<8x1xf32> to vector<8x256xf32>
    %46 = arith.mulf %44, %45 : vector<8x256xf32>
    %47 = vector.extract_strided_slice %46 {offsets = [0, 239], sizes = [8, 17], strides = [1, 1]} : vector<8x256xf32> to vector<8x17xf32>
    %48 = vector.extract_strided_slice %46 {offsets = [0, 0], sizes = [8, 239], strides = [1, 1]} : vector<8x256xf32> to vector<8x239xf32>
    %49 = tpu.concatenate %47, %48 in 1 : vector<8x17xf32>, vector<8x239xf32> -> vector<8x256xf32>
    %c0_21 = arith.constant 0 : index
    %c0_22 = arith.constant 0 : index
    %c0_23 = arith.constant 0 : index
    %50 = vector.load %arg12[%c0_21, %c0_22, %c0_23] : memref<9x1x256xf32, #tpu.memory_space<vmem>>, vector<1x1x256xf32>
    %51 = vector.shape_cast %50 : vector<1x1x256xf32> to vector<1x256xf32>
    %52 = vector.broadcast %51 : vector<1x256xf32> to vector<8x256xf32>
    %53 = arith.mulf %49, %52 : vector<8x256xf32>
    %c0_24 = arith.constant 0 : index
    %c0_25 = arith.constant 0 : index
    %54 = vector.load %arg14[%c0_24, %c0_25] : memref<72x256xf32, #tpu.memory_space<vmem>>, vector<8x256xf32>
    tpu.vector_store %arg14[%c0_24, %c0_25], %53 {strides = array<i32>} : memref<72x256xf32, #tpu.memory_space<vmem>>, vector<8x256xf32>,
    %55 = vector.extract_strided_slice %46 {offsets = [0, 240], sizes = [8, 16], strides = [1, 1]} : vector<8x256xf32> to vector<8x16xf32>
    %56 = vector.extract_strided_slice %46 {offsets = [0, 0], sizes = [8, 240], strides = [1, 1]} : vector<8x256xf32> to vector<8x240xf32>
    %57 = tpu.concatenate %55, %56 in 1 : vector<8x16xf32>, vector<8x240xf32> -> vector<8x256xf32>
    %c1 = arith.constant 1 : index
    %c0_26 = arith.constant 0 : index
    %c0_27 = arith.constant 0 : index
    %58 = vector.load %arg12[%c1, %c0_26, %c0_27] : memref<9x1x256xf32, #tpu.memory_space<vmem>>, vector<1x1x256xf32>
    %59 = vector.shape_cast %58 : vector<1x1x256xf32> to vector<1x256xf32>
    %60 = vector.broadcast %59 : vector<1x256xf32> to vector<8x256xf32>
    %61 = arith.mulf %57, %60 : vector<8x256xf32>
    %c8 = arith.constant 8 : index
    %c0_28 = arith.constant 0 : index
    %62 = vector.load %arg14[%c8, %c0_28] : memref<72x256xf32, #tpu.memory_space<vmem>>, vector<8x256xf32>
    tpu.vector_store %arg14[%c8, %c0_28], %61 {strides = array<i32>} : memref<72x256xf32, #tpu.memory_space<vmem>>, vector<8x256xf32>,
    %63 = vector.extract_strided_slice %46 {offsets = [0, 241], sizes = [8, 15], strides = [1, 1]} : vector<8x256xf32> to vector<8x15xf32>
    %64 = vector.extract_strided_slice %46 {offsets = [0, 0], sizes = [8, 241], strides = [1, 1]} : vector<8x256xf32> to vector<8x241xf32>
    %65 = tpu.concatenate %63, %64 in 1 : vector<8x15xf32>, vector<8x241xf32> -> vector<8x256xf32>
    %c2 = arith.constant 2 : index
    %c0_29 = arith.constant 0 : index
    %c0_30 = arith.constant 0 : index
    %66 = vector.load %arg12[%c2, %c0_29, %c0_30] : memref<9x1x256xf32, #tpu.memory_space<vmem>>, vector<1x1x256xf32>
    %67 = vector.shape_cast %66 : vector<1x1x256xf32> to vector<1x256xf32>
    %68 = vector.broadcast %67 : vector<1x256xf32> to vector<8x256xf32>
    %69 = arith.mulf %65, %68 : vector<8x256xf32>
    %c16 = arith.constant 16 : index
    %c0_31 = arith.constant 0 : index
    %70 = vector.load %arg14[%c16, %c0_31] : memref<72x256xf32, #tpu.memory_space<vmem>>, vector<8x256xf32>
    tpu.vector_store %arg14[%c16, %c0_31], %69 {strides = array<i32>} : memref<72x256xf32, #tpu.memory_space<vmem>>, vector<8x256xf32>,
    %71 = vector.extract_strided_slice %46 {offsets = [0, 255], sizes = [8, 1], strides = [1, 1]} : vector<8x256xf32> to vector<8x1xf32>
    %72 = vector.extract_strided_slice %46 {offsets = [0, 0], sizes = [8, 255], strides = [1, 1]} : vector<8x256xf32> to vector<8x255xf32>
    %73 = tpu.concatenate %71, %72 in 1 : vector<8x1xf32>, vector<8x255xf32> -> vector<8x256xf32>
    %c3 = arith.constant 3 : index
    %c0_32 = arith.constant 0 : index
    %c0_33 = arith.constant 0 : index
    %74 = vector.load %arg12[%c3, %c0_32, %c0_33] : memref<9x1x256xf32, #tpu.memory_space<vmem>>, vector<1x1x256xf32>
    %75 = vector.shape_cast %74 : vector<1x1x256xf32> to vector<1x256xf32>
    %76 = vector.broadcast %75 : vector<1x256xf32> to vector<8x256xf32>
    %77 = arith.mulf %73, %76 : vector<8x256xf32>
    %c24 = arith.constant 24 : index
    %c0_34 = arith.constant 0 : index
    %78 = vector.load %arg14[%c24, %c0_34] : memref<72x256xf32, #tpu.memory_space<vmem>>, vector<8x256xf32>
    tpu.vector_store %arg14[%c24, %c0_34], %77 {strides = array<i32>} : memref<72x256xf32, #tpu.memory_space<vmem>>, vector<8x256xf32>,
    %c4 = arith.constant 4 : index
    %c0_35 = arith.constant 0 : index
    %c0_36 = arith.constant 0 : index
    %79 = vector.load %arg12[%c4, %c0_35, %c0_36] : memref<9x1x256xf32, #tpu.memory_space<vmem>>, vector<1x1x256xf32>
    %80 = vector.shape_cast %79 : vector<1x1x256xf32> to vector<1x256xf32>
    %81 = vector.broadcast %80 : vector<1x256xf32> to vector<8x256xf32>
    %82 = arith.mulf %46, %81 : vector<8x256xf32>
    %c32 = arith.constant 32 : index
    %c0_37 = arith.constant 0 : index
    %83 = vector.load %arg14[%c32, %c0_37] : memref<72x256xf32, #tpu.memory_space<vmem>>, vector<8x256xf32>
    tpu.vector_store %arg14[%c32, %c0_37], %82 {strides = array<i32>} : memref<72x256xf32, #tpu.memory_space<vmem>>, vector<8x256xf32>,
    %84 = vector.extract_strided_slice %46 {offsets = [0, 1], sizes = [8, 255], strides = [1, 1]} : vector<8x256xf32> to vector<8x255xf32>
    %85 = vector.extract_strided_slice %46 {offsets = [0, 0], sizes = [8, 1], strides = [1, 1]} : vector<8x256xf32> to vector<8x1xf32>
    %86 = tpu.concatenate %84, %85 in 1 : vector<8x255xf32>, vector<8x1xf32> -> vector<8x256xf32>
    %c5 = arith.constant 5 : index
    %c0_38 = arith.constant 0 : index
    %c0_39 = arith.constant 0 : index
    %87 = vector.load %arg12[%c5, %c0_38, %c0_39] : memref<9x1x256xf32, #tpu.memory_space<vmem>>, vector<1x1x256xf32>
    %88 = vector.shape_cast %87 : vector<1x1x256xf32> to vector<1x256xf32>
    %89 = vector.broadcast %88 : vector<1x256xf32> to vector<8x256xf32>
    %90 = arith.mulf %86, %89 : vector<8x256xf32>
    %c40 = arith.constant 40 : index
    %c0_40 = arith.constant 0 : index
    %91 = vector.load %arg14[%c40, %c0_40] : memref<72x256xf32, #tpu.memory_space<vmem>>, vector<8x256xf32>
    tpu.vector_store %arg14[%c40, %c0_40], %90 {strides = array<i32>} : memref<72x256xf32, #tpu.memory_space<vmem>>, vector<8x256xf32>,
    %92 = vector.extract_strided_slice %46 {offsets = [0, 15], sizes = [8, 241], strides = [1, 1]} : vector<8x256xf32> to vector<8x241xf32>
    %93 = vector.extract_strided_slice %46 {offsets = [0, 0], sizes = [8, 15], strides = [1, 1]} : vector<8x256xf32> to vector<8x15xf32>
    %94 = tpu.concatenate %92, %93 in 1 : vector<8x241xf32>, vector<8x15xf32> -> vector<8x256xf32>
    %c6 = arith.constant 6 : index
    %c0_41 = arith.constant 0 : index
    %c0_42 = arith.constant 0 : index
    %95 = vector.load %arg12[%c6, %c0_41, %c0_42] : memref<9x1x256xf32, #tpu.memory_space<vmem>>, vector<1x1x256xf32>
    %96 = vector.shape_cast %95 : vector<1x1x256xf32> to vector<1x256xf32>
    %97 = vector.broadcast %96 : vector<1x256xf32> to vector<8x256xf32>
    %98 = arith.mulf %94, %97 : vector<8x256xf32>
    %c48 = arith.constant 48 : index
    %c0_43 = arith.constant 0 : index
    %99 = vector.load %arg14[%c48, %c0_43] : memref<72x256xf32, #tpu.memory_space<vmem>>, vector<8x256xf32>
    tpu.vector_store %arg14[%c48, %c0_43], %98 {strides = array<i32>} : memref<72x256xf32, #tpu.memory_space<vmem>>, vector<8x256xf32>,
    %100 = vector.extract_strided_slice %46 {offsets = [0, 16], sizes = [8, 240], strides = [1, 1]} : vector<8x256xf32> to vector<8x240xf32>
    %101 = vector.extract_strided_slice %46 {offsets = [0, 0], sizes = [8, 16], strides = [1, 1]} : vector<8x256xf32> to vector<8x16xf32>
    %102 = tpu.concatenate %100, %101 in 1 : vector<8x240xf32>, vector<8x16xf32> -> vector<8x256xf32>
    %c7 = arith.constant 7 : index
    %c0_44 = arith.constant 0 : index
    %c0_45 = arith.constant 0 : index
    %103 = vector.load %arg12[%c7, %c0_44, %c0_45] : memref<9x1x256xf32, #tpu.memory_space<vmem>>, vector<1x1x256xf32>
    %104 = vector.shape_cast %103 : vector<1x1x256xf32> to vector<1x256xf32>
    %105 = vector.broadcast %104 : vector<1x256xf32> to vector<8x256xf32>
    %106 = arith.mulf %102, %105 : vector<8x256xf32>
    %c56 = arith.constant 56 : index
    %c0_46 = arith.constant 0 : index
    %107 = vector.load %arg14[%c56, %c0_46] : memref<72x256xf32, #tpu.memory_space<vmem>>, vector<8x256xf32>
    tpu.vector_store %arg14[%c56, %c0_46], %106 {strides = array<i32>} : memref<72x256xf32, #tpu.memory_space<vmem>>, vector<8x256xf32>,
    %108 = vector.extract_strided_slice %46 {offsets = [0, 17], sizes = [8, 239], strides = [1, 1]} : vector<8x256xf32> to vector<8x239xf32>
    %109 = vector.extract_strided_slice %46 {offsets = [0, 0], sizes = [8, 17], strides = [1, 1]} : vector<8x256xf32> to vector<8x17xf32>
    %110 = tpu.concatenate %108, %109 in 1 : vector<8x239xf32>, vector<8x17xf32> -> vector<8x256xf32>
    %c8_47 = arith.constant 8 : index
    %c0_48 = arith.constant 0 : index
    %c0_49 = arith.constant 0 : index
    %111 = vector.load %arg12[%c8_47, %c0_48, %c0_49] : memref<9x1x256xf32, #tpu.memory_space<vmem>>, vector<1x1x256xf32>
    %112 = vector.shape_cast %111 : vector<1x1x256xf32> to vector<1x256xf32>
    %113 = vector.broadcast %112 : vector<1x256xf32> to vector<8x256xf32>
    %114 = arith.mulf %110, %113 : vector<8x256xf32>
    %c64 = arith.constant 64 : index
    %c0_50 = arith.constant 0 : index
    %115 = vector.load %arg14[%c64, %c0_50] : memref<72x256xf32, #tpu.memory_space<vmem>>, vector<8x256xf32>
    tpu.vector_store %arg14[%c64, %c0_50], %114 {strides = array<i32>} : memref<72x256xf32, #tpu.memory_space<vmem>>, vector<8x256xf32>,
    %c0_51 = arith.constant 0 : index
    %c0_52 = arith.constant 0 : index
    %116 = vector.load %arg10[%c0_51, %c0_52] : memref<4x72xf32, #tpu.memory_space<vmem>>, vector<4x72xf32>
    %c0_53 = arith.constant 0 : index
    %c0_54 = arith.constant 0 : index
    %117 = vector.load %arg14[%c0_53, %c0_54] : memref<72x256xf32, #tpu.memory_space<vmem>>, vector<72x256xf32>
    %cst_55 = arith.constant dense<0.000000e+00> : vector<4x256xf32>
    %118 = tpu.matmul %116, %117, %cst_55 {dimension_numbers = #tpu.dot_dimension_numbers<[1], [0], [0], [1], [0, 0, 1, 1], [], []>} : vector<4x72xf32>, vector<72x256xf32>, vector<4x256xf32> -> vector<4x256xf32>
    %c0_56 = arith.constant 0 : index
    %c0_57 = arith.constant 0 : index
    %119 = vector.load %arg11[%c0_56, %c0_57] : memref<4x1xf32, #tpu.memory_space<vmem>>, vector<4x1xf32>
    %120 = vector.broadcast %119 : vector<4x1xf32> to vector<4x256xf32>
    %121 = arith.addf %118, %120 : vector<4x256xf32>
    %c0_58 = arith.constant 0 : index
    %c0_59 = arith.constant 0 : index
    %c0_60 = arith.constant 0 : index
    %122 = vector.load %arg1[%c0_58, %c0_59, %c0_60] : memref<1x4x256xf32, #tpu.memory_space<vmem>>, vector<1x4x256xf32>
    %123 = vector.shape_cast %122 : vector<1x4x256xf32> to vector<4x256xf32>
    %124 = arith.addf %123, %121 : vector<4x256xf32>
    %c0_61 = arith.constant 0 : index
    %c0_62 = arith.constant 0 : index
    %c0_63 = arith.constant 0 : index
    %125 = vector.load %arg13[%c0_61, %c0_62, %c0_63] : memref<1x4x256xf32, #tpu.memory_space<vmem>>, vector<1x4x256xf32>
    %126 = vector.shape_cast %125 : vector<1x4x256xf32> to vector<4x256xf32>
    %127 = vector.shape_cast %124 : vector<4x256xf32> to vector<1x4x256xf32>
    tpu.vector_store %arg13[%c0_61, %c0_62, %c0_63], %127 {strides = array<i32>} : memref<1x4x256xf32, #tpu.memory_space<vmem>>, vector<1x4x256xf32>,
    return
  }
  func.func @transform_0(%arg0: i32) -> (i32, i32, i32) {
    %c0_i32 = arith.constant 0 : i32
    %c0_i32_0 = arith.constant 0 : i32
    %c0_i32_1 = arith.constant 0 : i32
    return %arg0, %c0_i32, %c0_i32_0 : i32, i32, i32
  }
  func.func @transform_1(%arg0: i32) -> (i32, i32, i32) {
    %c0_i32 = arith.constant 0 : i32
    %c0_i32_0 = arith.constant 0 : i32
    %c0_i32_1 = arith.constant 0 : i32
    return %arg0, %c0_i32, %c0_i32_0 : i32, i32, i32
  }
  func.func @transform_2(%arg0: i32) -> (i32, i32) {
    %c0_i32 = arith.constant 0 : i32
    %c0_i32_0 = arith.constant 0 : i32
    %c0_i32_1 = arith.constant 0 : i32
    return %c0_i32, %c0_i32_0 : i32, i32
  }
  func.func @transform_3(%arg0: i32) -> (i32, i32) {
    %c0_i32 = arith.constant 0 : i32
    %c0_i32_0 = arith.constant 0 : i32
    %c0_i32_1 = arith.constant 0 : i32
    return %c0_i32, %c0_i32_0 : i32, i32
  }
  func.func @transform_4(%arg0: i32) -> (i32, i32) {
    %c0_i32 = arith.constant 0 : i32
    %c0_i32_0 = arith.constant 0 : i32
    %c0_i32_1 = arith.constant 0 : i32
    return %c0_i32, %c0_i32_0 : i32, i32
  }
  func.func @transform_5(%arg0: i32) -> (i32, i32) {
    %c0_i32 = arith.constant 0 : i32
    %c0_i32_0 = arith.constant 0 : i32
    %c0_i32_1 = arith.constant 0 : i32
    return %c0_i32, %c0_i32_0 : i32, i32
  }
  func.func @transform_6(%arg0: i32) -> (i32, i32) {
    %c0_i32 = arith.constant 0 : i32
    %c0_i32_0 = arith.constant 0 : i32
    %c0_i32_1 = arith.constant 0 : i32
    return %c0_i32, %c0_i32_0 : i32, i32
  }
  func.func @transform_7(%arg0: i32) -> (i32, i32) {
    %c0_i32 = arith.constant 0 : i32
    %c0_i32_0 = arith.constant 0 : i32
    %c0_i32_1 = arith.constant 0 : i32
    return %c0_i32, %c0_i32_0 : i32, i32
  }
  func.func @transform_8(%arg0: i32) -> (i32, i32) {
    %c0_i32 = arith.constant 0 : i32
    %c0_i32_0 = arith.constant 0 : i32
    %c0_i32_1 = arith.constant 0 : i32
    return %c0_i32, %c0_i32_0 : i32, i32
  }
  func.func @transform_9(%arg0: i32) -> (i32, i32) {
    %c0_i32 = arith.constant 0 : i32
    %c0_i32_0 = arith.constant 0 : i32
    %c0_i32_1 = arith.constant 0 : i32
    return %c0_i32, %c0_i32_0 : i32, i32
  }
  func.func @transform_10(%arg0: i32) -> (i32, i32) {
    %c0_i32 = arith.constant 0 : i32
    %c0_i32_0 = arith.constant 0 : i32
    %c0_i32_1 = arith.constant 0 : i32
    return %c0_i32, %c0_i32_0 : i32, i32
  }
  func.func @transform_11(%arg0: i32) -> (i32, i32, i32) {
    %c0_i32 = arith.constant 0 : i32
    %c0_i32_0 = arith.constant 0 : i32
    %c0_i32_1 = arith.constant 0 : i32
    %c0_i32_2 = arith.constant 0 : i32
    return %c0_i32, %c0_i32_0, %c0_i32_1 : i32, i32, i32
  }
  func.func @transform_12(%arg0: i32) -> (i32, i32, i32) {
    %c0_i32 = arith.constant 0 : i32
    %c0_i32_0 = arith.constant 0 : i32
    %c0_i32_1 = arith.constant 0 : i32
    return %arg0, %c0_i32, %c0_i32_0 : i32, i32, i32
  }
}

</mosaic_0001>

<llo_original>
// kernel: msk_forward.3
$region0: #{msk_forward.3}
  #allocation0 [shape = 'u32[]', space=smem, size = 0x4, offset = 0x4, fixed_abs, tag = 'smem constant byte address 0x4 - core index']
  #allocation1 [shape = 'u32[144,128]{1,0:T(1,128)}', space=vmem, size = 0x12000, scoped, tag = 'internal scratch']
  #allocation2 [shape = 'f32[72,256]{1,0:T(8,128)}', space=vmem, size = 0x12000, scoped, tag = 'scratch operand']
  %s0 = inlined_call_operand.vmem [shape: f32[2,4,256], index: 0, kind: input, shape index: {}]
  %s1 = inlined_call_operand.vmem [shape: f32[2,8,256], index: 1, kind: input, shape index: {}]
  %s2 = inlined_call_operand.vmem [shape: f32[8,2], index: 2, kind: input, shape index: {}]
  %s3 = inlined_call_operand.vmem [shape: f32[8,8], index: 3, kind: input, shape index: {}]
  %s4 = inlined_call_operand.vmem [shape: f32[8,1], index: 4, kind: input, shape index: {}]
  %s5 = inlined_call_operand.vmem [shape: f32[8,8], index: 5, kind: input, shape index: {}]
  %s6 = inlined_call_operand.vmem [shape: f32[8,1], index: 6, kind: input, shape index: {}]
  %s7 = inlined_call_operand.vmem [shape: f32[8,1], index: 7, kind: input, shape index: {}]
  %s8 = inlined_call_operand.vmem [shape: f32[8,1], index: 8, kind: input, shape index: {}]
  %s9 = inlined_call_operand.vmem [shape: f32[4,72], index: 9, kind: input, shape index: {}]
  %s10 = inlined_call_operand.vmem [shape: f32[4,1], index: 10, kind: input, shape index: {}]
  %s11 = inlined_call_operand.vmem [shape: f32[9,1,256], index: 11, kind: input, shape index: {}]
  %s12 = inlined_call_operand.vmem [shape: f32[2,4,256], index: 12, kind: output, shape index: {}]
  %s13 = sld [smem:[#allocation0]]
  $region81: #{msk_forward.3} parent=0
    _
  %s15 = ssub.s32 1, %s13
  %s16 = scalar_select 0, %s15, %s13
  loop: start=0, step=1, limit=4
  $region2: #{msk_forward.3} parent=0 // loop_pre_header
    _
  $region3: #{msk_forward.3} parent=0 // loop_header
    %s18 = sphi 0, %s22
    %p19 = scmp.ge.s32.totalorder %s18, 4
    %s28 = sphi 0, %s30
    %s31 = sphi 0, %s28
    %s32 = sphi 0, %s31
    %s48 = sphi 0, %s32
    %s54 = sphi 0, %s56
    %s57 = sphi 0, %s54
    %s58 = sphi 0, %s57
    %s74 = sphi 0, %s58
    %s78 = sphi 0, %s78
    %s80 = sphi 0, %s78
    %s81 = sphi 0, %s80
    %s95 = sphi 0, %s81
    %s99 = sphi 0, %s99
    %s101 = sphi 0, %s99
    %s102 = sphi 0, %s101
    %s116 = sphi 0, %s102
    %s120 = sphi 0, %s120
    %s122 = sphi 0, %s120
    %s123 = sphi 0, %s122
    %s137 = sphi 0, %s123
    %s141 = sphi 0, %s141
    %s143 = sphi 0, %s141
    %s144 = sphi 0, %s143
    %s158 = sphi 0, %s144
    %s162 = sphi 0, %s162
    %s164 = sphi 0, %s162
    %s165 = sphi 0, %s164
    %s179 = sphi 0, %s165
    %s183 = sphi 0, %s183
    %s185 = sphi 0, %s183
    %s186 = sphi 0, %s185
    %s200 = sphi 0, %s186
    %s204 = sphi 0, %s204
    %s206 = sphi 0, %s204
    %s207 = sphi 0, %s206
    %s221 = sphi 0, %s207
    %s225 = sphi 0, %s225
    %s227 = sphi 0, %s225
    %s228 = sphi 0, %s227
    %s242 = sphi 0, %s228
    %s246 = sphi 0, %s246
    %s248 = sphi 0, %s246
    %s249 = sphi 0, %s248
    %s263 = sphi 0, %s249
    %s267 = sphi 0, %s267
    %s269 = sphi 0, %s267
    %s270 = sphi 0, %s269
    %s284 = sphi 0, %s270
    %s290 = sphi 0, %s292
    %s293 = sphi 0, %s290
    %s294 = sphi 0, %s293
    %s310 = sphi 0, %s294
  $region4: #{msk_forward.3} parent=0 // loop_header_branch
    %21 = sbr.rel (%p19) target = $region8
  $region5: #{msk_forward.3} parent=0 // loop_body
    %s23 = ssub.s32 %s18, 1
    %s24 = ssub.s32 %s18, 2
    %s25 = sadd.s32 %s18, 1
    %s26 = ssub.s32 %s18, %s25
    %p27 = scmp.eq.s32.totalorder %s26, 0
    %s29 = sadd.s32 %s28, 1
    %s30 = scalar_select %p27, %s28, %s29
    %p33 = pneg %p27
    %p34 = scmp.eq.s32.totalorder %s18, 1
    %p35 = por %p33, %p34
    %p36 = scmp.ne.s32.totalorder %s28, %s31
    %p37 = scmp.eq.s32.totalorder %s18, 0
    %p38 = por %p36, %p37
    %p39 = scmp.ne.s32.totalorder %s28, %s31
    %p40 = scmp.eq.s32.totalorder %s23, 1
    %p41 = por %p39, %p40
    %p42 = scmp.ne.s32.totalorder %s31, %s32
    %p43 = scmp.eq.s32.totalorder %s23, 0
    %p44 = por %p42, %p43
    %p45 = scmp.ne.s32.totalorder %s31, %s32
    %p46 = scmp.eq.s32.totalorder %s24, 1
    %p47 = por %p45, %p46
    %p49 = scmp.ne.s32.totalorder %s32, %s48
    %p50 = scmp.eq.s32.totalorder %s24, 0
    %p51 = por %p49, %p50
    %s52 = ssub.s32 %s18, %s25
    %p53 = scmp.eq.s32.totalorder %s52, 0
    %s55 = sadd.s32 %s54, 1
    %s56 = scalar_select %p53, %s54, %s55
    %p59 = pneg %p53
    %p60 = scmp.eq.s32.totalorder %s18, 1
    %p61 = por %p59, %p60
    %p62 = scmp.ne.s32.totalorder %s54, %s57
    %p63 = scmp.eq.s32.totalorder %s18, 0
    %p64 = por %p62, %p63
    %p65 = scmp.ne.s32.totalorder %s54, %s57
    %p66 = scmp.eq.s32.totalorder %s23, 1
    %p67 = por %p65, %p66
    %p68 = scmp.ne.s32.totalorder %s57, %s58
    %p69 = scmp.eq.s32.totalorder %s23, 0
    %p70 = por %p68, %p69
    %p71 = scmp.ne.s32.totalorder %s57, %s58
    %p72 = scmp.eq.s32.totalorder %s24, 1
    %p73 = por %p71, %p72
    %p75 = scmp.ne.s32.totalorder %s58, %s74
    %p76 = scmp.eq.s32.totalorder %s24, 0
    %p77 = por %p75, %p76
    %s79 = sadd.s32 %s78, 1
    %p82 = scmp.eq.s32.totalorder %s18, 1
    %p83 = scmp.ne.s32.totalorder %s78, %s80
    %p84 = scmp.eq.s32.totalorder %s18, 0
    %p85 = por %p83, %p84
    %p86 = scmp.ne.s32.totalorder %s78, %s80
    %p87 = scmp.eq.s32.totalorder %s23, 1
    %p88 = por %p86, %p87
    %p89 = scmp.ne.s32.totalorder %s80, %s81
    %p90 = scmp.eq.s32.totalorder %s23, 0
    %p91 = por %p89, %p90
    %p92 = scmp.ne.s32.totalorder %s80, %s81
    %p93 = scmp.eq.s32.totalorder %s24, 1
    %p94 = por %p92, %p93
    %p96 = scmp.ne.s32.totalorder %s81, %s95
    %p97 = scmp.eq.s32.totalorder %s24, 0
    %p98 = por %p96, %p97
    %s100 = sadd.s32 %s99, 1
    %p103 = scmp.eq.s32.totalorder %s18, 1
    %p104 = scmp.ne.s32.totalorder %s99, %s101
    %p105 = scmp.eq.s32.totalorder %s18, 0
    %p106 = por %p104, %p105
    %p107 = scmp.ne.s32.totalorder %s99, %s101
    %p108 = scmp.eq.s32.totalorder %s23, 1
    %p109 = por %p107, %p108
    %p110 = scmp.ne.s32.totalorder %s101, %s102
    %p111 = scmp.eq.s32.totalorder %s23, 0
    %p112 = por %p110, %p111
    %p113 = scmp.ne.s32.totalorder %s101, %s102
    %p114 = scmp.eq.s32.totalorder %s24, 1
    %p115 = por %p113, %p114
    %p117 = scmp.ne.s32.totalorder %s102, %s116
    %p118 = scmp.eq.s32.totalorder %s24, 0
    %p119 = por %p117, %p118
    %s121 = sadd.s32 %s120, 1
    %p124 = scmp.eq.s32.totalorder %s18, 1
    %p125 = scmp.ne.s32.totalorder %s120, %s122
    %p126 = scmp.eq.s32.totalorder %s18, 0
    %p127 = por %p125, %p126
    %p128 = scmp.ne.s32.totalorder %s120, %s122
    %p129 = scmp.eq.s32.totalorder %s23, 1
    %p130 = por %p128, %p129
    %p131 = scmp.ne.s32.totalorder %s122, %s123
    %p132 = scmp.eq.s32.totalorder %s23, 0
    %p133 = por %p131, %p132
    %p134 = scmp.ne.s32.totalorder %s122, %s123
    %p135 = scmp.eq.s32.totalorder %s24, 1
    %p136 = por %p134, %p135
    %p138 = scmp.ne.s32.totalorder %s123, %s137
    %p139 = scmp.eq.s32.totalorder %s24, 0
    %p140 = por %p138, %p139
    %s142 = sadd.s32 %s141, 1
    %p145 = scmp.eq.s32.totalorder %s18, 1
    %p146 = scmp.ne.s32.totalorder %s141, %s143
    %p147 = scmp.eq.s32.totalorder %s18, 0
    %p148 = por %p146, %p147
    %p149 = scmp.ne.s32.totalorder %s141, %s143
    %p150 = scmp.eq.s32.totalorder %s23, 1
    %p151 = por %p149, %p150
    %p152 = scmp.ne.s32.totalorder %s143, %s144
    %p153 = scmp.eq.s32.totalorder %s23, 0
    %p154 = por %p152, %p153
    %p155 = scmp.ne.s32.totalorder %s143, %s144
    %p156 = scmp.eq.s32.totalorder %s24, 1
    %p157 = por %p155, %p156
    %p159 = scmp.ne.s32.totalorder %s144, %s158
    %p160 = scmp.eq.s32.totalorder %s24, 0
    %p161 = por %p159, %p160
    %s163 = sadd.s32 %s162, 1
    %p166 = scmp.eq.s32.totalorder %s18, 1
    %p167 = scmp.ne.s32.totalorder %s162, %s164
    %p168 = scmp.eq.s32.totalorder %s18, 0
    %p169 = por %p167, %p168
    %p170 = scmp.ne.s32.totalorder %s162, %s164
    %p171 = scmp.eq.s32.totalorder %s23, 1
    %p172 = por %p170, %p171
    %p173 = scmp.ne.s32.totalorder %s164, %s165
    %p174 = scmp.eq.s32.totalorder %s23, 0
    %p175 = por %p173, %p174
    %p176 = scmp.ne.s32.totalorder %s164, %s165
    %p177 = scmp.eq.s32.totalorder %s24, 1
    %p178 = por %p176, %p177
    %p180 = scmp.ne.s32.totalorder %s165, %s179
    %p181 = scmp.eq.s32.totalorder %s24, 0
    %p182 = por %p180, %p181
    %s184 = sadd.s32 %s183, 1
    %p187 = scmp.eq.s32.totalorder %s18, 1
    %p188 = scmp.ne.s32.totalorder %s183, %s185
    %p189 = scmp.eq.s32.totalorder %s18, 0
    %p190 = por %p188, %p189
    %p191 = scmp.ne.s32.totalorder %s183, %s185
    %p192 = scmp.eq.s32.totalorder %s23, 1
    %p193 = por %p191, %p192
    %p194 = scmp.ne.s32.totalorder %s185, %s186
    %p195 = scmp.eq.s32.totalorder %s23, 0
    %p196 = por %p194, %p195
    %p197 = scmp.ne.s32.totalorder %s185, %s186
    %p198 = scmp.eq.s32.totalorder %s24, 1
    %p199 = por %p197, %p198
    %p201 = scmp.ne.s32.totalorder %s186, %s200
    %p202 = scmp.eq.s32.totalorder %s24, 0
    %p203 = por %p201, %p202
    %s205 = sadd.s32 %s204, 1
    %p208 = scmp.eq.s32.totalorder %s18, 1
    %p209 = scmp.ne.s32.totalorder %s204, %s206
    %p210 = scmp.eq.s32.totalorder %s18, 0
    %p211 = por %p209, %p210
    %p212 = scmp.ne.s32.totalorder %s204, %s206
    %p213 = scmp.eq.s32.totalorder %s23, 1
    %p214 = por %p212, %p213
    %p215 = scmp.ne.s32.totalorder %s206, %s207
    %p216 = scmp.eq.s32.totalorder %s23, 0
    %p217 = por %p215, %p216
    %p218 = scmp.ne.s32.totalorder %s206, %s207
    %p219 = scmp.eq.s32.totalorder %s24, 1
    %p220 = por %p218, %p219
    %p222 = scmp.ne.s32.totalorder %s207, %s221
    %p223 = scmp.eq.s32.totalorder %s24, 0
    %p224 = por %p222, %p223
    %s226 = sadd.s32 %s225, 1
    %p229 = scmp.eq.s32.totalorder %s18, 1
    %p230 = scmp.ne.s32.totalorder %s225, %s227
    %p231 = scmp.eq.s32.totalorder %s18, 0
    %p232 = por %p230, %p231
    %p233 = scmp.ne.s32.totalorder %s225, %s227
    %p234 = scmp.eq.s32.totalorder %s23, 1
    %p235 = por %p233, %p234
    %p236 = scmp.ne.s32.totalorder %s227, %s228
    %p237 = scmp.eq.s32.totalorder %s23, 0
    %p238 = por %p236, %p237
    %p239 = scmp.ne.s32.totalorder %s227, %s228
    %p240 = scmp.eq.s32.totalorder %s24, 1
    %p241 = por %p239, %p240
    %p243 = scmp.ne.s32.totalorder %s228, %s242
    %p244 = scmp.eq.s32.totalorder %s24, 0
    %p245 = por %p243, %p244
    %s247 = sadd.s32 %s246, 1
    %p250 = scmp.eq.s32.totalorder %s18, 1
    %p251 = scmp.ne.s32.totalorder %s246, %s248
    %p252 = scmp.eq.s32.totalorder %s18, 0
    %p253 = por %p251, %p252
    %p254 = scmp.ne.s32.totalorder %s246, %s248
    %p255 = scmp.eq.s32.totalorder %s23, 1
    %p256 = por %p254, %p255
    %p257 = scmp.ne.s32.totalorder %s248, %s249
    %p258 = scmp.eq.s32.totalorder %s23, 0
    %p259 = por %p257, %p258
    %p260 = scmp.ne.s32.totalorder %s248, %s249
    %p261 = scmp.eq.s32.totalorder %s24, 1
    %p262 = por %p260, %p261
    %p264 = scmp.ne.s32.totalorder %s249, %s263
    %p265 = scmp.eq.s32.totalorder %s24, 0
    %p266 = por %p264, %p265
    %s268 = sadd.s32 %s267, 1
    %p271 = scmp.eq.s32.totalorder %s18, 1
    %p272 = scmp.ne.s32.totalorder %s267, %s269
    %p273 = scmp.eq.s32.totalorder %s18, 0
    %p274 = por %p272, %p273
    %p275 = scmp.ne.s32.totalorder %s267, %s269
    %p276 = scmp.eq.s32.totalorder %s23, 1
    %p277 = por %p275, %p276
    %p278 = scmp.ne.s32.totalorder %s269, %s270
    %p279 = scmp.eq.s32.totalorder %s23, 0
    %p280 = por %p278, %p279
    %p281 = scmp.ne.s32.totalorder %s269, %s270
    %p282 = scmp.eq.s32.totalorder %s24, 1
    %p283 = por %p281, %p282
    %p285 = scmp.ne.s32.totalorder %s270, %s284
    %p286 = scmp.eq.s32.totalorder %s24, 0
    %p287 = por %p285, %p286
    %s288 = ssub.s32 %s18, %s25
    %p289 = scmp.eq.s32.totalorder %s288, 0
    %s291 = sadd.s32 %s290, 1
    %s292 = scalar_select %p289, %s290, %s291
    %p295 = pneg %p289
    %p296 = scmp.eq.s32.totalorder %s18, 1
    %p297 = por %p295, %p296
    %p298 = scmp.ne.s32.totalorder %s290, %s293
    %p299 = scmp.eq.s32.totalorder %s18, 0
    %p300 = por %p298, %p299
    %p301 = scmp.ne.s32.totalorder %s290, %s293
    %p302 = scmp.eq.s32.totalorder %s23, 1
    %p303 = por %p301, %p302
    %p304 = scmp.ne.s32.totalorder %s293, %s294
    %p305 = scmp.eq.s32.totalorder %s23, 0
    %p306 = por %p304, %p305
    %p307 = scmp.ne.s32.totalorder %s293, %s294
    %p308 = scmp.eq.s32.totalorder %s24, 1
    %p309 = por %p307, %p308
    %p311 = scmp.ne.s32.totalorder %s294, %s310
    %p312 = scmp.eq.s32.totalorder %s24, 0
    %p313 = por %p311, %p312
    %p314 = scmp.le.s32.totalorder 1, %s18
    %p315 = scmp.lt.s32.totalorder %s18, 3
    %p316 = pnand %p314, %p315
    %p317 = pneg %p316
    // Predicated region
    $region9: #{msk_forward.3} parent=5 // pred_check
      _
    $region10: #{msk_forward.3} parent=5 // pred_check_branch
      %319 = sbr.rel (%p316) target = $region12
    $region11: #{msk_forward.3} parent=5 // pred_region
      %s320 = ssub.s32 %s18, 1
      // Predicated region
      $region13: #{msk_forward.3} parent=11 // pred_check
        %p321 = pneg %p91
      $region14: #{msk_forward.3} parent=11 // pred_check_branch
        %323 = sbr.rel (%p321) target = $region16
      $region15: #{msk_forward.3} parent=11 // pred_region
        _
      $region16: #{msk_forward.3} parent=11 // pred_fallthru
        _
      // Predicated region
      $region17: #{msk_forward.3} parent=11 // pred_check
        %p324 = pneg %p112
      $region18: #{msk_forward.3} parent=11 // pred_check_branch
        %326 = sbr.rel (%p324) target = $region20
      $region19: #{msk_forward.3} parent=11 // pred_region
        _
      $region20: #{msk_forward.3} parent=11 // pred_fallthru
        _
      // Predicated region
      $region21: #{msk_forward.3} parent=11 // pred_check
        %p327 = pneg %p133
      $region22: #{msk_forward.3} parent=11 // pred_check_branch
        %329 = sbr.rel (%p327) target = $region24
      $region23: #{msk_forward.3} parent=11 // pred_region
        _
      $region24: #{msk_forward.3} parent=11 // pred_fallthru
        _
      // Predicated region
      $region25: #{msk_forward.3} parent=11 // pred_check
        %p330 = pneg %p154
      $region26: #{msk_forward.3} parent=11 // pred_check_branch
        %332 = sbr.rel (%p330) target = $region28
      $region27: #{msk_forward.3} parent=11 // pred_region
        _
      $region28: #{msk_forward.3} parent=11 // pred_fallthru
        _
      // Predicated region
      $region29: #{msk_forward.3} parent=11 // pred_check
        %p333 = pneg %p175
      $region30: #{msk_forward.3} parent=11 // pred_check_branch
        %335 = sbr.rel (%p333) target = $region32
      $region31: #{msk_forward.3} parent=11 // pred_region
        _
      $region32: #{msk_forward.3} parent=11 // pred_fallthru
        _
      // Predicated region
      $region33: #{msk_forward.3} parent=11 // pred_check
        %p336 = pneg %p196
      $region34: #{msk_forward.3} parent=11 // pred_check_branch
        %338 = sbr.rel (%p336) target = $region36
      $region35: #{msk_forward.3} parent=11 // pred_region
        _
      $region36: #{msk_forward.3} parent=11 // pred_fallthru
        _
      // Predicated region
      $region37: #{msk_forward.3} parent=11 // pred_check
        %p339 = pneg %p217
      $region38: #{msk_forward.3} parent=11 // pred_check_branch
        %341 = sbr.rel (%p339) target = $region40
      $region39: #{msk_forward.3} parent=11 // pred_region
        _
      $region40: #{msk_forward.3} parent=11 // pred_fallthru
        _
      // Predicated region
      $region41: #{msk_forward.3} parent=11 // pred_check
        %p342 = pneg %p238
      $region42: #{msk_forward.3} parent=11 // pred_check_branch
        %344 = sbr.rel (%p342) target = $region44
      $region43: #{msk_forward.3} parent=11 // pred_region
        _
      $region44: #{msk_forward.3} parent=11 // pred_fallthru
        _
      // Predicated region
      $region45: #{msk_forward.3} parent=11 // pred_check
        %p345 = pneg %p259
      $region46: #{msk_forward.3} parent=11 // pred_check_branch
        %347 = sbr.rel (%p345) target = $region48
      $region47: #{msk_forward.3} parent=11 // pred_region
        _
      $region48: #{msk_forward.3} parent=11 // pred_fallthru
        _
      // Predicated region
      $region49: #{msk_forward.3} parent=11 // pred_check
        %p348 = pneg %p280
      $region50: #{msk_forward.3} parent=11 // pred_check_branch
        %350 = sbr.rel (%p348) target = $region52
      $region51: #{msk_forward.3} parent=11 // pred_region
        _
      $region52: #{msk_forward.3} parent=11 // pred_fallthru
        _
    $region12: #{msk_forward.3} parent=5 // pred_fallthru
      _
    %p351 = scmp.lt.s32.totalorder %s18, 2
    // Predicated region
    $region53: #{msk_forward.3} parent=5 // pred_check
      %p352 = pneg %p351
    $region54: #{msk_forward.3} parent=5 // pred_check_branch
      %354 = sbr.rel (%p352) target = $region56
    $region55: #{msk_forward.3} parent=5 // pred_region
      // Predicated region
      $region57: #{msk_forward.3} parent=55 // pred_check
        %p355 = pneg %p38
      $region58: #{msk_forward.3} parent=55 // pred_check_branch
        %357 = sbr.rel (%p355) target = $region60
      $region59: #{msk_forward.3} parent=55 // pred_region
        %p358 = scmp.lt.s32.totalorder %s18, 1
        %s359 = scalar_select %p358, %s18, 1
        %s360 = smul.addr %s359, 2
        %s361 = smul.addr %s360, 4
        %s362 = scalar_lea.vmem %s0, %s361
      $region60: #{msk_forward.3} parent=55 // pred_fallthru
        _
      // Predicated region
      $region61: #{msk_forward.3} parent=55 // pred_check
        %p363 = pneg %p64
      $region62: #{msk_forward.3} parent=55 // pred_check_branch
        %365 = sbr.rel (%p363) target = $region64
      $region63: #{msk_forward.3} parent=55 // pred_region
        %p366 = scmp.lt.s32.totalorder %s18, 1
        %s367 = scalar_select %p366, %s18, 1
        %s368 = smul.addr %s367, 2
        %s369 = smul.addr %s368, 8
        %s370 = scalar_lea.vmem %s1, %s369
      $region64: #{msk_forward.3} parent=55 // pred_fallthru
        _
    $region56: #{msk_forward.3} parent=5 // pred_fallthru
      _
    %p371 = scmp.le.s32.totalorder 1, %s18
    %p372 = scmp.lt.s32.totalorder %s18, 3
    %p373 = pnand %p371, %p372
    %p374 = pneg %p373
    // Predicated region
    $region65: #{msk_forward.3} parent=5 // pred_check
      _
    $region66: #{msk_forward.3} parent=5 // pred_check_branch
      %376 = sbr.rel (%p373) target = $region68
    $region67: #{msk_forward.3} parent=5 // pred_region
      %s377 = ssub.s32 %s18, 1
      %p378 = scmp.lt.s32.totalorder %s23, 1
      %s379 = scalar_select %p378, %s23, 1
      %s380 = smul.addr %s379, 2
      %s381 = smul.addr %s380, 4
      %s382 = scalar_lea.vmem %s0, %s381
      %p383 = pneg %p44
      %p384 = pneg %p41
      %p385 = scmp.lt.s32.totalorder %s23, 1
      %s386 = scalar_select %p385, %s23, 1
      %s387 = smul.addr %s386, 2
      %s388 = smul.addr %s387, 8
      %s389 = scalar_lea.vmem %s1, %s388
      %p390 = pneg %p70
      %p391 = pneg %p67
      %p392 = pneg %p91
      %p393 = pneg %p88
      %p394 = pneg %p112
      %p395 = pneg %p109
      %p396 = pneg %p133
      %p397 = pneg %p130
      %p398 = pneg %p154
      %p399 = pneg %p151
      %p400 = pneg %p175
      %p401 = pneg %p172
      %p402 = pneg %p196
      %p403 = pneg %p193
      %p404 = pneg %p217
      %p405 = pneg %p214
      %p406 = pneg %p238
      %p407 = pneg %p235
      %p408 = pneg %p259
      %p409 = pneg %p256
      %p410 = pneg %p280
      %p411 = pneg %p277
      %p412 = pneg %p306
      %p413 = pneg %p303
      %p414 = scmp.lt.s32.totalorder %s23, 1
      %s415 = scalar_select %p414, %s23, 1
      %s416 = smul.addr %s415, 2
      %s417 = smul.addr %s416, 4
      %s418 = scalar_lea.vmem %s12, %s417
      %p419 = scmp.lt.s32.totalorder %s23, 1
      %s420 = scalar_select %p419, %s23, 1
      %s421 = smul.addr %s420, 2
      %s422 = smul.addr %s421, 4
      %s423 = scalar_lea.vmem %s0, %s422
      %p424 = scmp.lt.s32.totalorder %s23, 1
      %s425 = scalar_select %p424, %s23, 1
      %s426 = smul.addr %s425, 2
      %s427 = smul.addr %s426, 8
      %s428 = scalar_lea.vmem %s1, %s427
      %p429 = scmp.lt.s32.totalorder %s23, 1
      %s430 = scalar_select %p429, %s23, 1
      %s431 = smul.addr %s430, 2
      %s432 = smul.addr %s431, 4
      %s433 = scalar_lea.vmem %s12, %s432
      %v434 = vld [vmem:[%s2] sm:$0xff]
      %v435 = vld [vmem:[%s3] sm:$0xff]
      %v436 = vlaneseq
      %v437 = vshrl.u32 %v436, 7
      %v438 = vsub.s32 0, %v437
      %v439 = vrot.slane %v435, %v438
      %441 = vbcast.lane.b32.xlu0 %v439, 256
      %v442 = vpop.permute.xlu0 %441
      %v443 = vlaneseq
      %v444 = vshrl.u32 %v443, 7
      %v445 = vsub.s32 1, %v444
      %v446 = vrot.slane %v435, %v445
      %448 = vbcast.lane.b32.xlu0 %v446, 256
      %v449 = vpop.permute.xlu0 %448
      %v450 = vlaneseq
      %v451 = vshrl.u32 %v450, 7
      %v452 = vsub.s32 2, %v451
      %v453 = vrot.slane %v435, %v452
      %455 = vbcast.lane.b32.xlu0 %v453, 256
      %v456 = vpop.permute.xlu0 %455
      %v457 = vlaneseq
      %v458 = vshrl.u32 %v457, 7
      %v459 = vsub.s32 3, %v458
      %v460 = vrot.slane %v435, %v459
      %462 = vbcast.lane.b32.xlu0 %v460, 256
      %v463 = vpop.permute.xlu0 %462
      %v464 = vlaneseq
      %v465 = vshrl.u32 %v464, 7
      %v466 = vsub.s32 4, %v465
      %v467 = vrot.slane %v435, %v466
      %469 = vbcast.lane.b32.xlu0 %v467, 256
      %v470 = vpop.permute.xlu0 %469
      %v471 = vlaneseq
      %v472 = vshrl.u32 %v471, 7
      %v473 = vsub.s32 5, %v472
      %v474 = vrot.slane %v435, %v473
      %476 = vbcast.lane.b32.xlu0 %v474, 256
      %v477 = vpop.permute.xlu0 %476
      %v478 = vlaneseq
      %v479 = vshrl.u32 %v478, 7
      %v480 = vsub.s32 6, %v479
      %v481 = vrot.slane %v435, %v480
      %483 = vbcast.lane.b32.xlu0 %v481, 256
      %v484 = vpop.permute.xlu0 %483
      %v485 = vlaneseq
      %v486 = vshrl.u32 %v485, 7
      %v487 = vsub.s32 7, %v486
      %v488 = vrot.slane %v435, %v487
      %490 = vbcast.lane.b32.xlu0 %v488, 256
      %v491 = vpop.permute.xlu0 %490
      %v492 = vmul.f32 %v442, %v434
      %v493 = vmul.f32 %v449, %v434
      %v494 = vmul.f32 %v456, %v434
      %v495 = vmul.f32 %v463, %v434
      %v496 = vmul.f32 %v470, %v434
      %v497 = vmul.f32 %v477, %v434
      %v498 = vmul.f32 %v484, %v434
      %v499 = vmul.f32 %v491, %v434
      %vm500 = vcmask 15360
      %v501 = vsel %vm500, %v492, 0.0
      %v502 = vrot.slane %v501, 4
      %v503 = vadd.f32 %v501, %v502
      %v504 = vrot.slane %v503, 2
      %v505 = vadd.f32 %v503, %v504
      %v506 = vrot.slane %v505, 1
      %v507 = vadd.f32 %v505, %v506
      %v508 = vsel %vm500, %v493, 0.0
      %v509 = vrot.slane %v508, 4
      %v510 = vadd.f32 %v508, %v509
      %v511 = vrot.slane %v510, 2
      %v512 = vadd.f32 %v510, %v511
      %v513 = vrot.slane %v512, 1
      %v514 = vadd.f32 %v512, %v513
      %v515 = vsel %vm500, %v494, 0.0
      %v516 = vrot.slane %v515, 4
      %v517 = vadd.f32 %v515, %v516
      %v518 = vrot.slane %v517, 2
      %v519 = vadd.f32 %v517, %v518
      %v520 = vrot.slane %v519, 1
      %v521 = vadd.f32 %v519, %v520
      %v522 = vsel %vm500, %v495, 0.0
      %v523 = vrot.slane %v522, 4
      %v524 = vadd.f32 %v522, %v523
      %v525 = vrot.slane %v524, 2
      %v526 = vadd.f32 %v524, %v525
      %v527 = vrot.slane %v526, 1
      %v528 = vadd.f32 %v526, %v527
      %v529 = vsel %vm500, %v496, 0.0
      %v530 = vrot.slane %v529, 4
      %v531 = vadd.f32 %v529, %v530
      %v532 = vrot.slane %v531, 2
      %v533 = vadd.f32 %v531, %v532
      %v534 = vrot.slane %v533, 1
      %v535 = vadd.f32 %v533, %v534
      %v536 = vsel %vm500, %v497, 0.0
      %v537 = vrot.slane %v536, 4
      %v538 = vadd.f32 %v536, %v537
      %v539 = vrot.slane %v538, 2
      %v540 = vadd.f32 %v538, %v539
      %v541 = vrot.slane %v540, 1
      %v542 = vadd.f32 %v540, %v541
      %v543 = vsel %vm500, %v498, 0.0
      %v544 = vrot.slane %v543, 4
      %v545 = vadd.f32 %v543, %v544
      %v546 = vrot.slane %v545, 2
      %v547 = vadd.f32 %v545, %v546
      %v548 = vrot.slane %v547, 1
      %v549 = vadd.f32 %v547, %v548
      %v550 = vsel %vm500, %v499, 0.0
      %v551 = vrot.slane %v550, 4
      %v552 = vadd.f32 %v550, %v551
      %v553 = vrot.slane %v552, 2
      %v554 = vadd.f32 %v552, %v553
      %v555 = vrot.slane %v554, 1
      %v556 = vadd.f32 %v554, %v555
      %v557 = vld [vmem:[%s4] sm:$0xff]
      %559 = vset.pattern.permute.xlu0 0
      %560 = vperm.xlu0 %559, %v557
      %v561 = vpop.permute.xlu0 %560
      %v562 = vrot.slane %v561, 1
      %v563 = vrot.slane %v561, 2
      %v564 = vrot.slane %v561, 3
      %v565 = vrot.slane %v561, 4
      %v566 = vrot.slane %v561, 5
      %v567 = vrot.slane %v561, 6
      %v568 = vrot.slane %v561, 7
      %v577 = vadd.f32 %v507, %v561
      %v578 = vadd.f32 %v514, %v562
      %v579 = vadd.f32 %v521, %v563
      %v580 = vadd.f32 %v528, %v564
      %v581 = vadd.f32 %v535, %v565
      %v582 = vadd.f32 %v542, %v566
      %v583 = vadd.f32 %v549, %v567
      %v584 = vadd.f32 %v556, %v568
      %v585 = vld [vmem:[%s5] sm:$0xff]
      %v586 = vlaneseq
      %v587 = vshrl.u32 %v586, 7
      %v588 = vsub.s32 0, %v587
      %v589 = vrot.slane %v585, %v588
      %591 = vbcast.lane.b32.xlu0 %v589, 256
      %v592 = vpop.permute.xlu0 %591
      %v593 = vlaneseq
      %v594 = vshrl.u32 %v593, 7
      %v595 = vsub.s32 1, %v594
      %v596 = vrot.slane %v585, %v595
      %598 = vbcast.lane.b32.xlu0 %v596, 256
      %v599 = vpop.permute.xlu0 %598
      %v600 = vlaneseq
      %v601 = vshrl.u32 %v600, 7
      %v602 = vsub.s32 2, %v601
      %v603 = vrot.slane %v585, %v602
      %605 = vbcast.lane.b32.xlu0 %v603, 256
      %v606 = vpop.permute.xlu0 %605
      %v607 = vlaneseq
      %v608 = vshrl.u32 %v607, 7
      %v609 = vsub.s32 3, %v608
      %v610 = vrot.slane %v585, %v609
      %612 = vbcast.lane.b32.xlu0 %v610, 256
      %v613 = vpop.permute.xlu0 %612
      %v614 = vlaneseq
      %v615 = vshrl.u32 %v614, 7
      %v616 = vsub.s32 4, %v615
      %v617 = vrot.slane %v585, %v616
      %619 = vbcast.lane.b32.xlu0 %v617, 256
      %v620 = vpop.permute.xlu0 %619
      %v621 = vlaneseq
      %v622 = vshrl.u32 %v621, 7
      %v623 = vsub.s32 5, %v622
      %v624 = vrot.slane %v585, %v623
      %626 = vbcast.lane.b32.xlu0 %v624, 256
      %v627 = vpop.permute.xlu0 %626
      %v628 = vlaneseq
      %v629 = vshrl.u32 %v628, 7
      %v630 = vsub.s32 6, %v629
      %v631 = vrot.slane %v585, %v630
      %633 = vbcast.lane.b32.xlu0 %v631, 256
      %v634 = vpop.permute.xlu0 %633
      %v635 = vlaneseq
      %v636 = vshrl.u32 %v635, 7
      %v637 = vsub.s32 7, %v636
      %v638 = vrot.slane %v585, %v637
      %640 = vbcast.lane.b32.xlu0 %v638, 256
      %v641 = vpop.permute.xlu0 %640
      %v650 = vrot.slane %v578, 7
      %vm651 = vcmask 1041409
      %v652 = vsel %vm651, %v650, %v577
      %v653 = vrot.slane %v579, 6
      %vm654 = vcmask 1042434
      %v655 = vsel %vm654, %v653, %v652
      %v656 = vrot.slane %v580, 5
      %vm657 = vcmask 1043459
      %v658 = vsel %vm657, %v656, %v655
      %v659 = vrot.slane %v581, 4
      %vm660 = vcmask 1044484
      %v661 = vsel %vm660, %v659, %v658
      %v662 = vrot.slane %v582, 3
      %vm663 = vcmask 1045509
      %v664 = vsel %vm663, %v662, %v661
      %v665 = vrot.slane %v583, 2
      %vm666 = vcmask 1046534
      %v667 = vsel %vm666, %v665, %v664
      %v668 = vrot.slane %v584, 1
      %vm669 = vcmask 1047559
      %v670 = vsel %vm669, %v668, %v667
      %v672 = vmul.f32 %v592, %v670
      %v673 = vmul.f32 %v599, %v670
      %v674 = vmul.f32 %v606, %v670
      %v675 = vmul.f32 %v613, %v670
      %v676 = vmul.f32 %v620, %v670
      %v677 = vmul.f32 %v627, %v670
      %v678 = vmul.f32 %v634, %v670
      %v679 = vmul.f32 %v641, %v670
      %v680 = vsel %vm500, %v672, 0.0
      %v681 = vrot.slane %v680, 4
      %v682 = vadd.f32 %v680, %v681
      %v683 = vrot.slane %v682, 2
      %v684 = vadd.f32 %v682, %v683
      %v685 = vrot.slane %v684, 1
      %v686 = vadd.f32 %v684, %v685
      %v687 = vsel %vm500, %v673, 0.0
      %v688 = vrot.slane %v687, 4
      %v689 = vadd.f32 %v687, %v688
      %v690 = vrot.slane %v689, 2
      %v691 = vadd.f32 %v689, %v690
      %v692 = vrot.slane %v691, 1
      %v693 = vadd.f32 %v691, %v692
      %v694 = vsel %vm500, %v674, 0.0
      %v695 = vrot.slane %v694, 4
      %v696 = vadd.f32 %v694, %v695
      %v697 = vrot.slane %v696, 2
      %v698 = vadd.f32 %v696, %v697
      %v699 = vrot.slane %v698, 1
      %v700 = vadd.f32 %v698, %v699
      %v701 = vsel %vm500, %v675, 0.0
      %v702 = vrot.slane %v701, 4
      %v703 = vadd.f32 %v701, %v702
      %v704 = vrot.slane %v703, 2
      %v705 = vadd.f32 %v703, %v704
      %v706 = vrot.slane %v705, 1
      %v707 = vadd.f32 %v705, %v706
      %v708 = vsel %vm500, %v676, 0.0
      %v709 = vrot.slane %v708, 4
      %v710 = vadd.f32 %v708, %v709
      %v711 = vrot.slane %v710, 2
      %v712 = vadd.f32 %v710, %v711
      %v713 = vrot.slane %v712, 1
      %v714 = vadd.f32 %v712, %v713
      %v715 = vsel %vm500, %v677, 0.0
      %v716 = vrot.slane %v715, 4
      %v717 = vadd.f32 %v715, %v716
      %v718 = vrot.slane %v717, 2
      %v719 = vadd.f32 %v717, %v718
      %v720 = vrot.slane %v719, 1
      %v721 = vadd.f32 %v719, %v720
      %v722 = vsel %vm500, %v678, 0.0
      %v723 = vrot.slane %v722, 4
      %v724 = vadd.f32 %v722, %v723
      %v725 = vrot.slane %v724, 2
      %v726 = vadd.f32 %v724, %v725
      %v727 = vrot.slane %v726, 1
      %v728 = vadd.f32 %v726, %v727
      %v729 = vsel %vm500, %v679, 0.0
      %v730 = vrot.slane %v729, 4
      %v731 = vadd.f32 %v729, %v730
      %v732 = vrot.slane %v731, 2
      %v733 = vadd.f32 %v731, %v732
      %v734 = vrot.slane %v733, 1
      %v735 = vadd.f32 %v733, %v734
      %v736 = vld [vmem:[%s6] sm:$0xff]
      %738 = vset.pattern.permute.xlu0 0
      %739 = vperm.xlu0 %738, %v736
      %v740 = vpop.permute.xlu0 %739
      %v741 = vrot.slane %v740, 1
      %v742 = vrot.slane %v740, 2
      %v743 = vrot.slane %v740, 3
      %v744 = vrot.slane %v740, 4
      %v745 = vrot.slane %v740, 5
      %v746 = vrot.slane %v740, 6
      %v747 = vrot.slane %v740, 7
      %v756 = vadd.f32 %v686, %v740
      %v757 = vadd.f32 %v693, %v741
      %v758 = vadd.f32 %v700, %v742
      %v759 = vadd.f32 %v707, %v743
      %v760 = vadd.f32 %v714, %v744
      %v761 = vadd.f32 %v721, %v745
      %v762 = vadd.f32 %v728, %v746
      %v763 = vadd.f32 %v735, %v747
      %v764 = vld [vmem:[%s7] sm:$0xff]
      %766 = vset.pattern.permute.xlu0 0
      %767 = vperm.xlu0 %766, %v764
      %v768 = vpop.permute.xlu0 %767
      %v769 = vrot.slane %v768, 1
      %v770 = vrot.slane %v768, 2
      %v771 = vrot.slane %v768, 3
      %v772 = vrot.slane %v768, 4
      %v773 = vrot.slane %v768, 5
      %v774 = vrot.slane %v768, 6
      %v775 = vrot.slane %v768, 7
      %v784 = vmul.f32 %v756, %v768
      %v785 = vmul.f32 %v757, %v769
      %v786 = vmul.f32 %v758, %v770
      %v787 = vmul.f32 %v759, %v771
      %v788 = vmul.f32 %v760, %v772
      %v789 = vmul.f32 %v761, %v773
      %v790 = vmul.f32 %v762, %v774
      %v791 = vmul.f32 %v763, %v775
      %v792 = vld [vmem:[%s8] sm:$0xff]
      %794 = vset.pattern.permute.xlu0 0
      %795 = vperm.xlu0 %794, %v792
      %v796 = vpop.permute.xlu0 %795
      %v797 = vrot.slane %v796, 1
      %v798 = vrot.slane %v796, 2
      %v799 = vrot.slane %v796, 3
      %v800 = vrot.slane %v796, 4
      %v801 = vrot.slane %v796, 5
      %v802 = vrot.slane %v796, 6
      %v803 = vrot.slane %v796, 7
      %v812 = vadd.f32 %v784, %v796
      %v813 = vadd.f32 %v785, %v797
      %v814 = vadd.f32 %v786, %v798
      %v815 = vadd.f32 %v787, %v799
      %v816 = vadd.f32 %v788, %v800
      %v817 = vadd.f32 %v789, %v801
      %v818 = vadd.f32 %v790, %v802
      %v819 = vadd.f32 %v791, %v803
      %v828 = vrot.slane %v813, 7
      %v829 = vsel %vm651, %v828, %v812
      %v830 = vrot.slane %v814, 6
      %v831 = vsel %vm654, %v830, %v829
      %v832 = vrot.slane %v815, 5
      %v833 = vsel %vm657, %v832, %v831
      %v834 = vrot.slane %v816, 4
      %v835 = vsel %vm660, %v834, %v833
      %v836 = vrot.slane %v817, 3
      %v837 = vsel %vm663, %v836, %v835
      %v838 = vrot.slane %v818, 2
      %v839 = vsel %vm666, %v838, %v837
      %v840 = vrot.slane %v819, 1
      %v841 = vsel %vm669, %v840, %v839
      %v843 = vsel %vm500, %v841, -inf
      %844 = vmax.xlane.f32.xlu0 %v843
      %v845 = vpop.xlane.xlu0 %844
      %v847 = vrot.slane %v845, 1
      %v848 = vrot.slane %v845, 2
      %v849 = vrot.slane %v845, 3
      %v850 = vrot.slane %v845, 4
      %v851 = vrot.slane %v845, 5
      %v852 = vrot.slane %v845, 6
      %v853 = vrot.slane %v845, 7
      %v862 = vsub.f32 %v812, %v845
      %v863 = vsub.f32 %v813, %v847
      %v864 = vsub.f32 %v814, %v848
      %v865 = vsub.f32 %v815, %v849
      %v866 = vsub.f32 %v816, %v850
      %v867 = vsub.f32 %v817, %v851
      %v868 = vsub.f32 %v818, %v852
      %v869 = vsub.f32 %v819, %v853
      %v870 = vmul.f32 %v862, 1.442695
      %v871 = vpow.pop %v870
      %v872 = vmul.f32 %v863, 1.442695
      %v873 = vpow.pop %v872
      %v874 = vmul.f32 %v864, 1.442695
      %v875 = vpow.pop %v874
      %v876 = vmul.f32 %v865, 1.442695
      %v877 = vpow.pop %v876
      %v878 = vmul.f32 %v866, 1.442695
      %v879 = vpow.pop %v878
      %v880 = vmul.f32 %v867, 1.442695
      %v881 = vpow.pop %v880
      %v882 = vmul.f32 %v868, 1.442695
      %v883 = vpow.pop %v882
      %v884 = vmul.f32 %v869, 1.442695
      %v885 = vpow.pop %v884
      %v894 = vrot.slane %v873, 7
      %v895 = vsel %vm651, %v894, %v871
      %v896 = vrot.slane %v875, 6
      %v897 = vsel %vm654, %v896, %v895
      %v898 = vrot.slane %v877, 5
      %v899 = vsel %vm657, %v898, %v897
      %v900 = vrot.slane %v879, 4
      %v901 = vsel %vm660, %v900, %v899
      %v902 = vrot.slane %v881, 3
      %v903 = vsel %vm663, %v902, %v901
      %v904 = vrot.slane %v883, 2
      %v905 = vsel %vm666, %v904, %v903
      %v906 = vrot.slane %v885, 1
      %v907 = vsel %vm669, %v906, %v905
      %v909 = vsel %vm500, %v907, 0.0
      %910 = vadd.xlane.f32.xlu0 %v909
      %v911 = vpop.xlane.xlu0 %910
      %v913 = vrot.slane %v911, 1
      %v914 = vrot.slane %v911, 2
      %v915 = vrot.slane %v911, 3
      %v916 = vrot.slane %v911, 4
      %v917 = vrot.slane %v911, 5
      %v918 = vrot.slane %v911, 6
      %v919 = vrot.slane %v911, 7
      %v928 = vrcp.pop %v911
      %v929 = vmul.f32 %v871, %v928
      %v930 = vrcp.pop %v913
      %v931 = vmul.f32 %v873, %v930
      %v932 = vrcp.pop %v914
      %v933 = vmul.f32 %v875, %v932
      %v934 = vrcp.pop %v915
      %v935 = vmul.f32 %v877, %v934
      %v936 = vrcp.pop %v916
      %v937 = vmul.f32 %v879, %v936
      %v938 = vrcp.pop %v917
      %v939 = vmul.f32 %v881, %v938
      %v940 = vrcp.pop %v918
      %v941 = vmul.f32 %v883, %v940
      %v942 = vrcp.pop %v919
      %v943 = vmul.f32 %v885, %v942
      %v944 = vlaneseq
      %v945 = vand.u32 %v944, 127
      %v946 = vstv %s23
      %vm947 = vcmp.eq.s32.totalorder %v945, %v946
      %v956 = vrot.slane %v931, 7
      %v957 = vsel %vm651, %v956, %v929
      %v958 = vrot.slane %v933, 6
      %v959 = vsel %vm654, %v958, %v957
      %v960 = vrot.slane %v935, 5
      %v961 = vsel %vm657, %v960, %v959
      %v962 = vrot.slane %v937, 4
      %v963 = vsel %vm660, %v962, %v961
      %v964 = vrot.slane %v939, 3
      %v965 = vsel %vm663, %v964, %v963
      %v966 = vrot.slane %v941, 2
      %v967 = vsel %vm666, %v966, %v965
      %v968 = vrot.slane %v943, 1
      %v969 = vsel %vm669, %v968, %v967
      %v971 = vsel %vm947, %v969, 0.0
      %v972 = vsel %vm500, %v971, 0.0
      %973 = vadd.xlane.f32.xlu0 %v972
      %v974 = vpop.xlane.xlu0 %973
      %v975 = vld [vmem:[%s428] sm:$0xff]
      %v976 = vld [vmem:[%s428 + $0x8] sm:$0xff]
      %v977 = vmul.f32 %v975, %v974
      %v978 = vmul.f32 %v976, %v974
      %980 = vrot.lane.b32.xlu0 %v978, 17
      %v981 = vpop.permute.xlu0 %980
      %984 = vrot.lane.b32.xlu0 %v977, 17
      %v985 = vpop.permute.xlu0 %984
      %vm986 = vcmask 138240
      %v987 = vsel %vm986, %v985, %v981
      %v990 = vsel %vm986, %v981, %v985
      %v991 = vld [vmem:[%s11] sm:$0x3]
      %v993 = vlaneseq
      %v994 = vshrl.u32 %v993, 7
      %v995 = vsub.s32 0, %v994
      %v996 = vrot.slane %v991, %v995
      %v997 = vlaneseq
      %v998 = vshrl.u32 %v997, 7
      %v999 = vsub.s32 1, %v998
      %v1000 = vrot.slane %v991, %v999
      %v1003 = vmul.f32 %v990, %v996
      %v1004 = vmul.f32 %v987, %v1000
      %1005 = vst [vmem:[#allocation2] sm:$0xff] %v1003
      %1006 = vst [vmem:[#allocation2 + $0x8] sm:$0xff] %v1004
      %1007 = vrot.lane.b32.xlu0 %v978, 16
      %v1008 = vpop.permute.xlu0 %1007
      %1010 = vrot.lane.b32.xlu0 %v977, 16
      %v1011 = vpop.permute.xlu0 %1010
      %vm1012 = vcmask 130048
      %v1013 = vsel %vm1012, %v1011, %v1008
      %v1016 = vsel %vm1012, %v1008, %v1011
      %s1017 = scalar_lea.vmem %s11, 2
      %v1018 = vld [vmem:[%s1017] sm:$0x3]
      %v1020 = vlaneseq
      %v1021 = vshrl.u32 %v1020, 7
      %v1022 = vsub.s32 0, %v1021
      %v1023 = vrot.slane %v1018, %v1022
      %v1024 = vlaneseq
      %v1025 = vshrl.u32 %v1024, 7
      %v1026 = vsub.s32 1, %v1025
      %v1027 = vrot.slane %v1018, %v1026
      %v1030 = vmul.f32 %v1016, %v1023
      %v1031 = vmul.f32 %v1013, %v1027
      %1032 = vst [vmem:[#allocation2 + $0x10] sm:$0xff] %v1030
      %1033 = vst [vmem:[#allocation2 + $0x18] sm:$0xff] %v1031
      %1034 = vrot.lane.b32.xlu0 %v978, 15
      %v1035 = vpop.permute.xlu0 %1034
      %1037 = vrot.lane.b32.xlu0 %v977, 15
      %v1038 = vpop.permute.xlu0 %1037
      %vm1039 = vcmask 121856
      %v1040 = vsel %vm1039, %v1038, %v1035
      %v1043 = vsel %vm1039, %v1035, %v1038
      %s1044 = scalar_lea.vmem %s11, 4
      %v1045 = vld [vmem:[%s1044] sm:$0x3]
      %v1047 = vlaneseq
      %v1048 = vshrl.u32 %v1047, 7
      %v1049 = vsub.s32 0, %v1048
      %v1050 = vrot.slane %v1045, %v1049
      %v1051 = vlaneseq
      %v1052 = vshrl.u32 %v1051, 7
      %v1053 = vsub.s32 1, %v1052
      %v1054 = vrot.slane %v1045, %v1053
      %v1057 = vmul.f32 %v1043, %v1050
      %v1058 = vmul.f32 %v1040, %v1054
      %1059 = vst [vmem:[#allocation2 + $0x20] sm:$0xff] %v1057
      %1060 = vst [vmem:[#allocation2 + $0x28] sm:$0xff] %v1058
      %1061 = vrot.lane.b32.xlu0 %v978, 1
      %v1062 = vpop.permute.xlu0 %1061
      %1064 = vrot.lane.b32.xlu0 %v977, 1
      %v1065 = vpop.permute.xlu0 %1064
      %vm1066 = vcmask 7168
      %v1067 = vsel %vm1066, %v1065, %v1062
      %v1070 = vsel %vm1066, %v1062, %v1065
      %s1071 = scalar_lea.vmem %s11, 6
      %v1072 = vld [vmem:[%s1071] sm:$0x3]
      %v1074 = vlaneseq
      %v1075 = vshrl.u32 %v1074, 7
      %v1076 = vsub.s32 0, %v1075
      %v1077 = vrot.slane %v1072, %v1076
      %v1078 = vlaneseq
      %v1079 = vshrl.u32 %v1078, 7
      %v1080 = vsub.s32 1, %v1079
      %v1081 = vrot.slane %v1072, %v1080
      %v1084 = vmul.f32 %v1070, %v1077
      %v1085 = vmul.f32 %v1067, %v1081
      %1086 = vst [vmem:[#allocation2 + $0x30] sm:$0xff] %v1084
      %1087 = vst [vmem:[#allocation2 + $0x38] sm:$0xff] %v1085
      %s1088 = scalar_lea.vmem %s11, 8
      %v1089 = vld [vmem:[%s1088] sm:$0x3]
      %v1091 = vlaneseq
      %v1092 = vshrl.u32 %v1091, 7
      %v1093 = vsub.s32 0, %v1092
      %v1094 = vrot.slane %v1089, %v1093
      %v1095 = vlaneseq
      %v1096 = vshrl.u32 %v1095, 7
      %v1097 = vsub.s32 1, %v1096
      %v1098 = vrot.slane %v1089, %v1097
      %v1101 = vmul.f32 %v977, %v1094
      %v1102 = vmul.f32 %v978, %v1098
      %1103 = vst [vmem:[#allocation2 + $0x40] sm:$0xff] %v1101
      %1104 = vst [vmem:[#allocation2 + $0x48] sm:$0xff] %v1102
      %1105 = vrot.lane.b32.xlu0 %v977, 127
      %v1106 = vpop.permute.xlu0 %1105
      %1107 = vrot.lane.b32.xlu0 %v978, 127
      %v1108 = vpop.permute.xlu0 %1107
      %vm1109 = vcmask 1039360
      %v1110 = vsel %vm1109, %v1106, %v1108
      %v1114 = vsel %vm1109, %v1108, %v1106
      %s1115 = scalar_lea.vmem %s11, 10
      %v1116 = vld [vmem:[%s1115] sm:$0x3]
      %v1118 = vlaneseq
      %v1119 = vshrl.u32 %v1118, 7
      %v1120 = vsub.s32 0, %v1119
      %v1121 = vrot.slane %v1116, %v1120
      %v1122 = vlaneseq
      %v1123 = vshrl.u32 %v1122, 7
      %v1124 = vsub.s32 1, %v1123
      %v1125 = vrot.slane %v1116, %v1124
      %v1128 = vmul.f32 %v1110, %v1121
      %v1129 = vmul.f32 %v1114, %v1125
      %1130 = vst [vmem:[#allocation2 + $0x50] sm:$0xff] %v1128
      %1131 = vst [vmem:[#allocation2 + $0x58] sm:$0xff] %v1129
      %1132 = vrot.lane.b32.xlu0 %v977, 113
      %v1133 = vpop.permute.xlu0 %1132
      %1134 = vrot.lane.b32.xlu0 %v978, 113
      %v1135 = vpop.permute.xlu0 %1134
      %vm1136 = vcmask 924672
      %v1137 = vsel %vm1136, %v1133, %v1135
      %v1141 = vsel %vm1136, %v1135, %v1133
      %s1142 = scalar_lea.vmem %s11, 12
      %v1143 = vld [vmem:[%s1142] sm:$0x3]
      %v1145 = vlaneseq
      %v1146 = vshrl.u32 %v1145, 7
      %v1147 = vsub.s32 0, %v1146
      %v1148 = vrot.slane %v1143, %v1147
      %v1149 = vlaneseq
      %v1150 = vshrl.u32 %v1149, 7
      %v1151 = vsub.s32 1, %v1150
      %v1152 = vrot.slane %v1143, %v1151
      %v1155 = vmul.f32 %v1137, %v1148
      %v1156 = vmul.f32 %v1141, %v1152
      %1157 = vst [vmem:[#allocation2 + $0x60] sm:$0xff] %v1155
      %1158 = vst [vmem:[#allocation2 + $0x68] sm:$0xff] %v1156
      %1159 = vrot.lane.b32.xlu0 %v977, 112
      %v1160 = vpop.permute.xlu0 %1159
      %1161 = vrot.lane.b32.xlu0 %v978, 112
      %v1162 = vpop.permute.xlu0 %1161
      %vm1163 = vcmask 916480
      %v1164 = vsel %vm1163, %v1160, %v1162
      %v1168 = vsel %vm1163, %v1162, %v1160
      %s1169 = scalar_lea.vmem %s11, 14
      %v1170 = vld [vmem:[%s1169] sm:$0x3]
      %v1172 = vlaneseq
      %v1173 = vshrl.u32 %v1172, 7
      %v1174 = vsub.s32 0, %v1173
      %v1175 = vrot.slane %v1170, %v1174
      %v1176 = vlaneseq
      %v1177 = vshrl.u32 %v1176, 7
      %v1178 = vsub.s32 1, %v1177
      %v1179 = vrot.slane %v1170, %v1178
      %v1182 = vmul.f32 %v1164, %v1175
      %v1183 = vmul.f32 %v1168, %v1179
      %1184 = vst [vmem:[#allocation2 + $0x70] sm:$0xff] %v1182
      %1185 = vst [vmem:[#allocation2 + $0x78] sm:$0xff] %v1183
      %1186 = vrot.lane.b32.xlu0 %v977, 111
      %v1187 = vpop.permute.xlu0 %1186
      %1188 = vrot.lane.b32.xlu0 %v978, 111
      %v1189 = vpop.permute.xlu0 %1188
      %vm1190 = vcmask 908288
      %v1191 = vsel %vm1190, %v1187, %v1189
      %v1195 = vsel %vm1190, %v1189, %v1187
      %s1196 = scalar_lea.vmem %s11, 16
      %v1197 = vld [vmem:[%s1196] sm:$0x3]
      %v1199 = vlaneseq
      %v1200 = vshrl.u32 %v1199, 7
      %v1201 = vsub.s32 0, %v1200
      %v1202 = vrot.slane %v1197, %v1201
      %v1203 = vlaneseq
      %v1204 = vshrl.u32 %v1203, 7
      %v1205 = vsub.s32 1, %v1204
      %v1206 = vrot.slane %v1197, %v1205
      %v1209 = vmul.f32 %v1191, %v1202
      %v1210 = vmul.f32 %v1195, %v1206
      %1211 = vst [vmem:[#allocation2 + $0x80] sm:$0xff] %v1209
      %1212 = vst [vmem:[#allocation2 + $0x88] sm:$0xff] %v1210
      %v1213 = vld [vmem:[%s9] sm:$0xf]
      %v1214 = vld [vmem:[#allocation2] sm:$0xff]
      %v1215 = vld [vmem:[#allocation2 + $0x8] sm:$0xff]
      %v1216 = vld [vmem:[#allocation2 + $0x10] sm:$0xff]
      %v1217 = vld [vmem:[#allocation2 + $0x18] sm:$0xff]
      %v1218 = vld [vmem:[#allocation2 + $0x20] sm:$0xff]
      %v1219 = vld [vmem:[#allocation2 + $0x28] sm:$0xff]
      %v1220 = vld [vmem:[#allocation2 + $0x30] sm:$0xff]
      %v1221 = vld [vmem:[#allocation2 + $0x38] sm:$0xff]
      %v1222 = vld [vmem:[#allocation2 + $0x40] sm:$0xff]
      %v1223 = vld [vmem:[#allocation2 + $0x48] sm:$0xff]
      %v1224 = vld [vmem:[#allocation2 + $0x50] sm:$0xff]
      %v1225 = vld [vmem:[#allocation2 + $0x58] sm:$0xff]
      %v1226 = vld [vmem:[#allocation2 + $0x60] sm:$0xff]
      %v1227 = vld [vmem:[#allocation2 + $0x68] sm:$0xff]
      %v1228 = vld [vmem:[#allocation2 + $0x70] sm:$0xff]
      %v1229 = vld [vmem:[#allocation2 + $0x78] sm:$0xff]
      %v1230 = vld [vmem:[#allocation2 + $0x80] sm:$0xff]
      %v1231 = vld [vmem:[#allocation2 + $0x88] sm:$0xff]
      %v1232 = vld [vmem:[%s10] sm:$0xf]
      %1234 = vset.pattern.permute.xlu0 0
      %1235 = vperm.xlu0 %1234, %v1232
      %v1236 = vpop.permute.xlu0 %1235
      %vm1238 = vcmask 588800
      %v1240 = vsel %vm1238, %v1213, 0
      %1242 = vmatprep.subr.mxu0 %v1215
      %1243 = vmatpush1.msra.mxu0 %v1214
      %1244 = vmatprep.subr.mxu0 %v1217
      %1245 = vmatpush1.msra.mxu0 %v1216
      %1246 = vmatprep.subr.mxu0 %v1219
      %1247 = vmatpush1.msra.mxu0 %v1218
      %1248 = vmatprep.subr.mxu0 %v1221
      %1249 = vmatpush1.msra.mxu0 %v1220
      %1250 = vmatprep.subr.mxu0 %v1223
      %1251 = vmatpush1.msra.mxu0 %v1222
      %1252 = vmatprep.subr.mxu0 %v1225
      %1253 = vmatpush1.msra.mxu0 %v1224
      %1254 = vmatprep.subr.mxu0 %v1227
      %1255 = vmatpush1.msra.mxu0 %v1226
      %1256 = vmatprep.subr.mxu0 %v1229
      %1257 = vmatpush1.msra.mxu0 %v1228
      %1258 = vmatprep.subr.mxu0 %v1231
      %1259 = vmatpush1.msra.mxu0 %v1230
      %1260 = vmatprep.subr.mxu0 0.0
      %1261 = vmatpush1.msra.mxu0 0.0
      %1262 = vmatprep.subr.mxu0 0.0
      %1263 = vmatpush1.msra.mxu0 0.0
      %1264 = vmatprep.subr.mxu0 0.0
      %1265 = vmatpush1.msra.mxu0 0.0
      %1266 = vmatprep.subr.mxu0 0.0
      %1267 = vmatpush1.msra.mxu0 0.0
      %1268 = vmatprep.subr.mxu0 0.0
      %1269 = vmatpush1.msra.mxu0 0.0
      %1270 = vmatprep.subr.mxu0 0.0
      %1271 = vmatpush1.msra.mxu0 0.0
      %1272 = vmatprep.subr.mxu0 0.0
      %1273 = vmatpush1.msra.mxu0 0.0
      %1274 = vmatprep.subr.mxu0 0.0
      %1275 = vmatpush1.msra.mxu0 0.0
      %1276 = vmatprep.subr.mxu0 0.0
      %1277 = vmatpush1.msra.mxu0 0.0
      %1278 = vmatprep.subr.mxu0 0.0
      %1279 = vmatpush1.msra.mxu0 0.0
      %1280 = vmatprep.subr.mxu0 0.0
      %1281 = vmatpush1.msra.mxu0 0.0
      %1282 = vmatprep.subr.mxu0 0.0
      %1283 = vmatpush1.msra.mxu0 0.0
      %1284 = vmatprep.subr.mxu0 0.0
      %1285 = vmatpush1.msra.mxu0 0.0
      %1286 = vmatprep.subr.mxu0 0.0
      %1287 = vmatpush1.msra.mxu0 0.0
      %1288 = vmatprep.subr.mxu0 0.0
      %1289 = vmatpush1.msra.mxu0 0.0
      %1290 = vmatprep.subr.mxu0 0.0
      %1291 = vmatpush1.msra.mxu0 0.0
      %1292 = vmatprep.subr.mxu0 0.0
      %1293 = vmatpush1.msra.mxu0 0.0
      %1294 = vmatprep.subr.mxu0 0.0
      %1295 = vmatpush1.msra.mxu0 0.0
      %1296 = vmatprep.subr.mxu0 0.0
      %1297 = vmatpush1.msra.mxu0 0.0
      %1298 = vmatprep.subr.mxu0 0.0
      %1299 = vmatpush1.msra.mxu0 0.0
      %1300 = vmatprep.subr.mxu0 0.0
      %1301 = vmatpush1.msra.mxu0 0.0
      %1302 = vmatprep.subr.mxu0 0.0
      %1303 = vmatpush1.msra.mxu0 0.0
      %1304 = vmatprep.subr.mxu0 0.0
      %1305 = vmatpush1.msra.mxu0 0.0
      %1306 = vmatprep.mubr.f32.mxu0 0.0
      %1307 = vmatmul.mubr.f32.gmra.mrb[0].mxu0 %v1240
      %v1308 = vpop.f32.mrb[0].mxu0
      %v1309 = vadd.f32 %v1236, %v1308
      %v1310 = vpop.f32.mrb[0].mxu0
      %v1311 = vadd.f32 %v1236, %v1310
      %1312 = vdwg.mxu0
      %v1313 = vld [vmem:[%s423] sm:$0xff]
      %v1316 = vcombine.low %v1309, %v1311
      %v1318 = vadd.f32 %v1313, %v1316
      %1319 = vst [vmem:[%s433] sm:$0xff] %v1318
      %p1320 = scmp.lt.s32.totalorder %s23, 1
      %s1321 = scalar_select %p1320, %s23, 1
      %s1322 = smul.addr %s1321, 2
      %s1323 = smul.addr %s1322, 4
      %s1324 = scalar_lea.vmem %s12, %s1323
      // Predicated region
      $region69: #{msk_forward.3} parent=67 // pred_check
        %p1325 = pneg %p303
      $region70: #{msk_forward.3} parent=67 // pred_check_branch
        %1327 = sbr.rel (%p1325) target = $region72
      $region71: #{msk_forward.3} parent=67 // pred_region
        _
      $region72: #{msk_forward.3} parent=67 // pred_fallthru
        _
    $region68: #{msk_forward.3} parent=5 // pred_fallthru
      _
    %p1328 = scmp.le.s32.totalorder 2, %s18
    // Predicated region
    $region73: #{msk_forward.3} parent=5 // pred_check
      %p1329 = pneg %p1328
    $region74: #{msk_forward.3} parent=5 // pred_check_branch
      %1331 = sbr.rel (%p1329) target = $region76
    $region75: #{msk_forward.3} parent=5 // pred_region
      %s1332 = ssub.s32 %s18, 2
      // Predicated region
      $region77: #{msk_forward.3} parent=75 // pred_check
        %p1333 = pneg %p309
      $region78: #{msk_forward.3} parent=75 // pred_check_branch
        %1335 = sbr.rel (%p1333) target = $region80
      $region79: #{msk_forward.3} parent=75 // pred_region
        %p1336 = scmp.lt.s32.totalorder %s24, 1
        %s1337 = scalar_select %p1336, %s24, 1
        %s1338 = smul.addr %s1337, 2
        %s1339 = smul.addr %s1338, 4
        %s1340 = scalar_lea.vmem %s12, %s1339
      $region80: #{msk_forward.3} parent=75 // pred_fallthru
        _
    $region76: #{msk_forward.3} parent=5 // pred_fallthru
      _
  $region6: #{msk_forward.3} parent=0 // loop_footer
    %s22 = sadd.s32 1, %s18
  $region7: #{msk_forward.3} parent=0 // loop_footer_branch
    %17 = sbr.rel target = $region3
  $region8: #{msk_forward.3} parent=0 // loop_exit
    _

// kernel: msk_forward.2
$region0: #{msk_forward.2}
  #allocation0 [shape = 'u32[]', space=smem, size = 0x4, offset = 0x4, fixed_abs, tag = 'smem constant byte address 0x4 - core index']
  #allocation1 [shape = 'u32[144,128]{1,0:T(1,128)}', space=vmem, size = 0x12000, scoped, tag = 'internal scratch']
  #allocation2 [shape = 'f32[8,256]{1,0:T(8,128)}', space=vmem, size = 0x2000, scoped, tag = 'scratch operand']
  #allocation3 [shape = 'f32[200,256]{1,0:T(8,128)}', space=vmem, size = 0x32000, scoped, tag = 'scratch operand']
  %s0 = inlined_call_operand.vmem [shape: f32[2,4,256], index: 0, kind: input, shape index: {}]
  %s1 = inlined_call_operand.vmem [shape: f32[2,4,256], index: 1, kind: input, shape index: {}]
  %s2 = inlined_call_operand.vmem [shape: f32[8,200], index: 2, kind: input, shape index: {}]
  %s3 = inlined_call_operand.vmem [shape: f32[8,1], index: 3, kind: input, shape index: {}]
  %s4 = inlined_call_operand.vmem [shape: f32[25,1,256], index: 4, kind: input, shape index: {}]
  %s5 = inlined_call_operand.vmem [shape: f32[2,8,256], index: 5, kind: output, shape index: {0}]
  %s6 = inlined_call_operand.vmem [shape: f32[2,8,1], index: 6, kind: output, shape index: {1}]
  %7 = xla_tuple %s5, %s6
  %s8 = sld [smem:[#allocation0]]
  $region61: #{msk_forward.2} parent=0
    _
  %s10 = ssub.s32 1, %s8
  %s11 = scalar_select 0, %s10, %s8
  loop: start=0, step=1, limit=4
  $region2: #{msk_forward.2} parent=0 // loop_pre_header
    _
  $region3: #{msk_forward.2} parent=0 // loop_header
    %s13 = sphi 0, %s17
    %p14 = scmp.ge.s32.totalorder %s13, 4
    %s23 = sphi 0, %s25
    %s26 = sphi 0, %s23
    %s27 = sphi 0, %s26
    %s43 = sphi 0, %s27
    %s49 = sphi 0, %s51
    %s52 = sphi 0, %s49
    %s53 = sphi 0, %s52
    %s69 = sphi 0, %s53
    %s73 = sphi 0, %s73
    %s75 = sphi 0, %s73
    %s76 = sphi 0, %s75
    %s90 = sphi 0, %s76
    %s94 = sphi 0, %s94
    %s96 = sphi 0, %s94
    %s97 = sphi 0, %s96
    %s111 = sphi 0, %s97
    %s115 = sphi 0, %s115
    %s117 = sphi 0, %s115
    %s118 = sphi 0, %s117
    %s132 = sphi 0, %s118
    %s138 = sphi 0, %s140
    %s141 = sphi 0, %s138
    %s142 = sphi 0, %s141
    %s158 = sphi 0, %s142
    %s164 = sphi 0, %s166
    %s167 = sphi 0, %s164
    %s168 = sphi 0, %s167
    %s184 = sphi 0, %s168
  $region4: #{msk_forward.2} parent=0 // loop_header_branch
    %16 = sbr.rel (%p14) target = $region8
  $region5: #{msk_forward.2} parent=0 // loop_body
    %s18 = ssub.s32 %s13, 1
    %s19 = ssub.s32 %s13, 2
    %s20 = sadd.s32 %s13, 1
    %s21 = ssub.s32 %s13, %s20
    %p22 = scmp.eq.s32.totalorder %s21, 0
    %s24 = sadd.s32 %s23, 1
    %s25 = scalar_select %p22, %s23, %s24
    %p28 = pneg %p22
    %p29 = scmp.eq.s32.totalorder %s13, 1
    %p30 = por %p28, %p29
    %p31 = scmp.ne.s32.totalorder %s23, %s26
    %p32 = scmp.eq.s32.totalorder %s13, 0
    %p33 = por %p31, %p32
    %p34 = scmp.ne.s32.totalorder %s23, %s26
    %p35 = scmp.eq.s32.totalorder %s18, 1
    %p36 = por %p34, %p35
    %p37 = scmp.ne.s32.totalorder %s26, %s27
    %p38 = scmp.eq.s32.totalorder %s18, 0
    %p39 = por %p37, %p38
    %p40 = scmp.ne.s32.totalorder %s26, %s27
    %p41 = scmp.eq.s32.totalorder %s19, 1
    %p42 = por %p40, %p41
    %p44 = scmp.ne.s32.totalorder %s27, %s43
    %p45 = scmp.eq.s32.totalorder %s19, 0
    %p46 = por %p44, %p45
    %s47 = ssub.s32 %s13, %s20
    %p48 = scmp.eq.s32.totalorder %s47, 0
    %s50 = sadd.s32 %s49, 1
    %s51 = scalar_select %p48, %s49, %s50
    %p54 = pneg %p48
    %p55 = scmp.eq.s32.totalorder %s13, 1
    %p56 = por %p54, %p55
    %p57 = scmp.ne.s32.totalorder %s49, %s52
    %p58 = scmp.eq.s32.totalorder %s13, 0
    %p59 = por %p57, %p58
    %p60 = scmp.ne.s32.totalorder %s49, %s52
    %p61 = scmp.eq.s32.totalorder %s18, 1
    %p62 = por %p60, %p61
    %p63 = scmp.ne.s32.totalorder %s52, %s53
    %p64 = scmp.eq.s32.totalorder %s18, 0
    %p65 = por %p63, %p64
    %p66 = scmp.ne.s32.totalorder %s52, %s53
    %p67 = scmp.eq.s32.totalorder %s19, 1
    %p68 = por %p66, %p67
    %p70 = scmp.ne.s32.totalorder %s53, %s69
    %p71 = scmp.eq.s32.totalorder %s19, 0
    %p72 = por %p70, %p71
    %s74 = sadd.s32 %s73, 1
    %p77 = scmp.eq.s32.totalorder %s13, 1
    %p78 = scmp.ne.s32.totalorder %s73, %s75
    %p79 = scmp.eq.s32.totalorder %s13, 0
    %p80 = por %p78, %p79
    %p81 = scmp.ne.s32.totalorder %s73, %s75
    %p82 = scmp.eq.s32.totalorder %s18, 1
    %p83 = por %p81, %p82
    %p84 = scmp.ne.s32.totalorder %s75, %s76
    %p85 = scmp.eq.s32.totalorder %s18, 0
    %p86 = por %p84, %p85
    %p87 = scmp.ne.s32.totalorder %s75, %s76
    %p88 = scmp.eq.s32.totalorder %s19, 1
    %p89 = por %p87, %p88
    %p91 = scmp.ne.s32.totalorder %s76, %s90
    %p92 = scmp.eq.s32.totalorder %s19, 0
    %p93 = por %p91, %p92
    %s95 = sadd.s32 %s94, 1
    %p98 = scmp.eq.s32.totalorder %s13, 1
    %p99 = scmp.ne.s32.totalorder %s94, %s96
    %p100 = scmp.eq.s32.totalorder %s13, 0
    %p101 = por %p99, %p100
    %p102 = scmp.ne.s32.totalorder %s94, %s96
    %p103 = scmp.eq.s32.totalorder %s18, 1
    %p104 = por %p102, %p103
    %p105 = scmp.ne.s32.totalorder %s96, %s97
    %p106 = scmp.eq.s32.totalorder %s18, 0
    %p107 = por %p105, %p106
    %p108 = scmp.ne.s32.totalorder %s96, %s97
    %p109 = scmp.eq.s32.totalorder %s19, 1
    %p110 = por %p108, %p109
    %p112 = scmp.ne.s32.totalorder %s97, %s111
    %p113 = scmp.eq.s32.totalorder %s19, 0
    %p114 = por %p112, %p113
    %s116 = sadd.s32 %s115, 1
    %p119 = scmp.eq.s32.totalorder %s13, 1
    %p120 = scmp.ne.s32.totalorder %s115, %s117
    %p121 = scmp.eq.s32.totalorder %s13, 0
    %p122 = por %p120, %p121
    %p123 = scmp.ne.s32.totalorder %s115, %s117
    %p124 = scmp.eq.s32.totalorder %s18, 1
    %p125 = por %p123, %p124
    %p126 = scmp.ne.s32.totalorder %s117, %s118
    %p127 = scmp.eq.s32.totalorder %s18, 0
    %p128 = por %p126, %p127
    %p129 = scmp.ne.s32.totalorder %s117, %s118
    %p130 = scmp.eq.s32.totalorder %s19, 1
    %p131 = por %p129, %p130
    %p133 = scmp.ne.s32.totalorder %s118, %s132
    %p134 = scmp.eq.s32.totalorder %s19, 0
    %p135 = por %p133, %p134
    %s136 = ssub.s32 %s13, %s20
    %p137 = scmp.eq.s32.totalorder %s136, 0
    %s139 = sadd.s32 %s138, 1
    %s140 = scalar_select %p137, %s138, %s139
    %p143 = pneg %p137
    %p144 = scmp.eq.s32.totalorder %s13, 1
    %p145 = por %p143, %p144
    %p146 = scmp.ne.s32.totalorder %s138, %s141
    %p147 = scmp.eq.s32.totalorder %s13, 0
    %p148 = por %p146, %p147
    %p149 = scmp.ne.s32.totalorder %s138, %s141
    %p150 = scmp.eq.s32.totalorder %s18, 1
    %p151 = por %p149, %p150
    %p152 = scmp.ne.s32.totalorder %s141, %s142
    %p153 = scmp.eq.s32.totalorder %s18, 0
    %p154 = por %p152, %p153
    %p155 = scmp.ne.s32.totalorder %s141, %s142
    %p156 = scmp.eq.s32.totalorder %s19, 1
    %p157 = por %p155, %p156
    %p159 = scmp.ne.s32.totalorder %s142, %s158
    %p160 = scmp.eq.s32.totalorder %s19, 0
    %p161 = por %p159, %p160
    %s162 = ssub.s32 %s13, %s20
    %p163 = scmp.eq.s32.totalorder %s162, 0
    %s165 = sadd.s32 %s164, 1
    %s166 = scalar_select %p163, %s164, %s165
    %p169 = pneg %p163
    %p170 = scmp.eq.s32.totalorder %s13, 1
    %p171 = por %p169, %p170
    %p172 = scmp.ne.s32.totalorder %s164, %s167
    %p173 = scmp.eq.s32.totalorder %s13, 0
    %p174 = por %p172, %p173
    %p175 = scmp.ne.s32.totalorder %s164, %s167
    %p176 = scmp.eq.s32.totalorder %s18, 1
    %p177 = por %p175, %p176
    %p178 = scmp.ne.s32.totalorder %s167, %s168
    %p179 = scmp.eq.s32.totalorder %s18, 0
    %p180 = por %p178, %p179
    %p181 = scmp.ne.s32.totalorder %s167, %s168
    %p182 = scmp.eq.s32.totalorder %s19, 1
    %p183 = por %p181, %p182
    %p185 = scmp.ne.s32.totalorder %s168, %s184
    %p186 = scmp.eq.s32.totalorder %s19, 0
    %p187 = por %p185, %p186
    %p188 = scmp.le.s32.totalorder 1, %s13
    %p189 = scmp.lt.s32.totalorder %s13, 3
    %p190 = pnand %p188, %p189
    %p191 = pneg %p190
    // Predicated region
    $region9: #{msk_forward.2} parent=5 // pred_check
      _
    $region10: #{msk_forward.2} parent=5 // pred_check_branch
      %193 = sbr.rel (%p190) target = $region12
    $region11: #{msk_forward.2} parent=5 // pred_region
      %s194 = ssub.s32 %s13, 1
      // Predicated region
      $region13: #{msk_forward.2} parent=11 // pred_check
        %p195 = pneg %p86
      $region14: #{msk_forward.2} parent=11 // pred_check_branch
        %197 = sbr.rel (%p195) target = $region16
      $region15: #{msk_forward.2} parent=11 // pred_region
        _
      $region16: #{msk_forward.2} parent=11 // pred_fallthru
        _
      // Predicated region
      $region17: #{msk_forward.2} parent=11 // pred_check
        %p198 = pneg %p107
      $region18: #{msk_forward.2} parent=11 // pred_check_branch
        %200 = sbr.rel (%p198) target = $region20
      $region19: #{msk_forward.2} parent=11 // pred_region
        _
      $region20: #{msk_forward.2} parent=11 // pred_fallthru
        _
      // Predicated region
      $region21: #{msk_forward.2} parent=11 // pred_check
        %p201 = pneg %p128
      $region22: #{msk_forward.2} parent=11 // pred_check_branch
        %203 = sbr.rel (%p201) target = $region24
      $region23: #{msk_forward.2} parent=11 // pred_region
        _
      $region24: #{msk_forward.2} parent=11 // pred_fallthru
        _
    $region12: #{msk_forward.2} parent=5 // pred_fallthru
      _
    %p204 = scmp.lt.s32.totalorder %s13, 2
    // Predicated region
    $region25: #{msk_forward.2} parent=5 // pred_check
      %p205 = pneg %p204
    $region26: #{msk_forward.2} parent=5 // pred_check_branch
      %207 = sbr.rel (%p205) target = $region28
    $region27: #{msk_forward.2} parent=5 // pred_region
      // Predicated region
      $region29: #{msk_forward.2} parent=27 // pred_check
        %p208 = pneg %p33
      $region30: #{msk_forward.2} parent=27 // pred_check_branch
        %210 = sbr.rel (%p208) target = $region32
      $region31: #{msk_forward.2} parent=27 // pred_region
        %p211 = scmp.lt.s32.totalorder %s13, 1
        %s212 = scalar_select %p211, %s13, 1
        %s213 = smul.addr %s212, 2
        %s214 = smul.addr %s213, 4
        %s215 = scalar_lea.vmem %s0, %s214
      $region32: #{msk_forward.2} parent=27 // pred_fallthru
        _
      // Predicated region
      $region33: #{msk_forward.2} parent=27 // pred_check
        %p216 = pneg %p59
      $region34: #{msk_forward.2} parent=27 // pred_check_branch
        %218 = sbr.rel (%p216) target = $region36
      $region35: #{msk_forward.2} parent=27 // pred_region
        %p219 = scmp.lt.s32.totalorder %s13, 1
        %s220 = scalar_select %p219, %s13, 1
        %s221 = smul.addr %s220, 2
        %s222 = smul.addr %s221, 4
        %s223 = scalar_lea.vmem %s1, %s222
      $region36: #{msk_forward.2} parent=27 // pred_fallthru
        _
    $region28: #{msk_forward.2} parent=5 // pred_fallthru
      _
    %p224 = scmp.le.s32.totalorder 1, %s13
    %p225 = scmp.lt.s32.totalorder %s13, 3
    %p226 = pnand %p224, %p225
    %p227 = pneg %p226
    // Predicated region
    $region37: #{msk_forward.2} parent=5 // pred_check
      _
    $region38: #{msk_forward.2} parent=5 // pred_check_branch
      %229 = sbr.rel (%p226) target = $region40
    $region39: #{msk_forward.2} parent=5 // pred_region
      %s230 = ssub.s32 %s13, 1
      %p231 = scmp.lt.s32.totalorder %s18, 1
      %s232 = scalar_select %p231, %s18, 1
      %s233 = smul.addr %s232, 2
      %s234 = smul.addr %s233, 4
      %s235 = scalar_lea.vmem %s0, %s234
      %p236 = pneg %p39
      %p237 = pneg %p36
      %p238 = scmp.lt.s32.totalorder %s18, 1
      %s239 = scalar_select %p238, %s18, 1
      %s240 = smul.addr %s239, 2
      %s241 = smul.addr %s240, 4
      %s242 = scalar_lea.vmem %s1, %s241
      %p243 = pneg %p65
      %p244 = pneg %p62
      %p245 = pneg %p86
      %p246 = pneg %p83
      %p247 = pneg %p107
      %p248 = pneg %p104
      %p249 = pneg %p128
      %p250 = pneg %p125
      %p251 = pneg %p154
      %p252 = pneg %p151
      %p253 = scmp.lt.s32.totalorder %s18, 1
      %s254 = scalar_select %p253, %s18, 1
      %s255 = smul.addr %s254, 2
      %s256 = smul.addr %s255, 8
      %s257 = scalar_lea.vmem %s5, %s256
      %p258 = pneg %p180
      %p259 = pneg %p177
      %p260 = scmp.lt.s32.totalorder %s18, 1
      %s261 = scalar_select %p260, %s18, 1
      %s262 = smul.addr %s261, 8
      %s263 = scalar_lea.vmem %s6, %s262
      %p264 = scmp.lt.s32.totalorder %s18, 1
      %s265 = scalar_select %p264, %s18, 1
      %s266 = smul.addr %s265, 2
      %s267 = smul.addr %s266, 4
      %s268 = scalar_lea.vmem %s0, %s267
      %p269 = scmp.lt.s32.totalorder %s18, 1
      %s270 = scalar_select %p269, %s18, 1
      %s271 = smul.addr %s270, 2
      %s272 = smul.addr %s271, 4
      %s273 = scalar_lea.vmem %s1, %s272
      %p274 = scmp.lt.s32.totalorder %s18, 1
      %s275 = scalar_select %p274, %s18, 1
      %s276 = smul.addr %s275, 2
      %s277 = smul.addr %s276, 8
      %s278 = scalar_lea.vmem %s5, %s277
      %p279 = scmp.lt.s32.totalorder %s18, 1
      %s280 = scalar_select %p279, %s18, 1
      %s281 = smul.addr %s280, 8
      %s282 = scalar_lea.vmem %s6, %s281
      %v283 = vld [vmem:[%s268] sm:$0xff]
      %v285 = vcombine.high %v283, %v283
      %287 = vst [vmem:[#allocation2] sm:$0xf] %v283
      %288 = vst [vmem:[#allocation2 + $0x8] sm:$0xf] %v285
      %v289 = vld [vmem:[%s273] sm:$0xff]
      %v291 = vcombine.low %v289, %v289
      %293 = vst [vmem:[#allocation2] sm:$0xf0] %v291
      %294 = vst [vmem:[#allocation2 + $0x8] sm:$0xf0] %v289
      %v295 = vld [vmem:[#allocation2] sm:$0xff]
      %v296 = vld [vmem:[#allocation2 + $0x8] sm:$0xff]
      %298 = vrot.lane.b32.xlu0 %v296, 34
      %v299 = vpop.permute.xlu0 %298
      %302 = vrot.lane.b32.xlu0 %v295, 34
      %v303 = vpop.permute.xlu0 %302
      %vm304 = vcmask 277504
      %v305 = vsel %vm304, %v303, %v299
      %v308 = vsel %vm304, %v299, %v303
      %v309 = vld [vmem:[%s4] sm:$0x3]
      %v311 = vlaneseq
      %v312 = vshrl.u32 %v311, 7
      %v313 = vsub.s32 0, %v312
      %v314 = vrot.slane %v309, %v313
      %v315 = vlaneseq
      %v316 = vshrl.u32 %v315, 7
      %v317 = vsub.s32 1, %v316
      %v318 = vrot.slane %v309, %v317
      %v321 = vmul.f32 %v308, %v314
      %v322 = vmul.f32 %v305, %v318
      %323 = vst [vmem:[#allocation3] sm:$0xff] %v321
      %324 = vst [vmem:[#allocation3 + $0x8] sm:$0xff] %v322
      %325 = vrot.lane.b32.xlu0 %v296, 33
      %v326 = vpop.permute.xlu0 %325
      %328 = vrot.lane.b32.xlu0 %v295, 33
      %v329 = vpop.permute.xlu0 %328
      %vm330 = vcmask 269312
      %v331 = vsel %vm330, %v329, %v326
      %v334 = vsel %vm330, %v326, %v329
      %s335 = scalar_lea.vmem %s4, 2
      %v336 = vld [vmem:[%s335] sm:$0x3]
      %v338 = vlaneseq
      %v339 = vshrl.u32 %v338, 7
      %v340 = vsub.s32 0, %v339
      %v341 = vrot.slane %v336, %v340
      %v342 = vlaneseq
      %v343 = vshrl.u32 %v342, 7
      %v344 = vsub.s32 1, %v343
      %v345 = vrot.slane %v336, %v344
      %v348 = vmul.f32 %v334, %v341
      %v349 = vmul.f32 %v331, %v345
      %350 = vst [vmem:[#allocation3 + $0x10] sm:$0xff] %v348
      %351 = vst [vmem:[#allocation3 + $0x18] sm:$0xff] %v349
      %352 = vrot.lane.b32.xlu0 %v296, 32
      %v353 = vpop.permute.xlu0 %352
      %355 = vrot.lane.b32.xlu0 %v295, 32
      %v356 = vpop.permute.xlu0 %355
      %vm357 = vcmask 261120
      %v358 = vsel %vm357, %v356, %v353
      %v361 = vsel %vm357, %v353, %v356
      %s362 = scalar_lea.vmem %s4, 4
      %v363 = vld [vmem:[%s362] sm:$0x3]
      %v365 = vlaneseq
      %v366 = vshrl.u32 %v365, 7
      %v367 = vsub.s32 0, %v366
      %v368 = vrot.slane %v363, %v367
      %v369 = vlaneseq
      %v370 = vshrl.u32 %v369, 7
      %v371 = vsub.s32 1, %v370
      %v372 = vrot.slane %v363, %v371
      %v375 = vmul.f32 %v361, %v368
      %v376 = vmul.f32 %v358, %v372
      %377 = vst [vmem:[#allocation3 + $0x20] sm:$0xff] %v375
      %378 = vst [vmem:[#allocation3 + $0x28] sm:$0xff] %v376
      %379 = vrot.lane.b32.xlu0 %v296, 31
      %v380 = vpop.permute.xlu0 %379
      %382 = vrot.lane.b32.xlu0 %v295, 31
      %v383 = vpop.permute.xlu0 %382
      %vm384 = vcmask 252928
      %v385 = vsel %vm384, %v383, %v380
      %v388 = vsel %vm384, %v380, %v383
      %s389 = scalar_lea.vmem %s4, 6
      %v390 = vld [vmem:[%s389] sm:$0x3]
      %v392 = vlaneseq
      %v393 = vshrl.u32 %v392, 7
      %v394 = vsub.s32 0, %v393
      %v395 = vrot.slane %v390, %v394
      %v396 = vlaneseq
      %v397 = vshrl.u32 %v396, 7
      %v398 = vsub.s32 1, %v397
      %v399 = vrot.slane %v390, %v398
      %v402 = vmul.f32 %v388, %v395
      %v403 = vmul.f32 %v385, %v399
      %404 = vst [vmem:[#allocation3 + $0x30] sm:$0xff] %v402
      %405 = vst [vmem:[#allocation3 + $0x38] sm:$0xff] %v403
      %406 = vrot.lane.b32.xlu0 %v296, 30
      %v407 = vpop.permute.xlu0 %406
      %409 = vrot.lane.b32.xlu0 %v295, 30
      %v410 = vpop.permute.xlu0 %409
      %vm411 = vcmask 244736
      %v412 = vsel %vm411, %v410, %v407
      %v415 = vsel %vm411, %v407, %v410
      %s416 = scalar_lea.vmem %s4, 8
      %v417 = vld [vmem:[%s416] sm:$0x3]
      %v419 = vlaneseq
      %v420 = vshrl.u32 %v419, 7
      %v421 = vsub.s32 0, %v420
      %v422 = vrot.slane %v417, %v421
      %v423 = vlaneseq
      %v424 = vshrl.u32 %v423, 7
      %v425 = vsub.s32 1, %v424
      %v426 = vrot.slane %v417, %v425
      %v429 = vmul.f32 %v415, %v422
      %v430 = vmul.f32 %v412, %v426
      %431 = vst [vmem:[#allocation3 + $0x40] sm:$0xff] %v429
      %432 = vst [vmem:[#allocation3 + $0x48] sm:$0xff] %v430
      %433 = vrot.lane.b32.xlu0 %v296, 18
      %v434 = vpop.permute.xlu0 %433
      %436 = vrot.lane.b32.xlu0 %v295, 18
      %v437 = vpop.permute.xlu0 %436
      %vm438 = vcmask 146432
      %v439 = vsel %vm438, %v437, %v434
      %v442 = vsel %vm438, %v434, %v437
      %s443 = scalar_lea.vmem %s4, 10
      %v444 = vld [vmem:[%s443] sm:$0x3]
      %v446 = vlaneseq
      %v447 = vshrl.u32 %v446, 7
      %v448 = vsub.s32 0, %v447
      %v449 = vrot.slane %v444, %v448
      %v450 = vlaneseq
      %v451 = vshrl.u32 %v450, 7
      %v452 = vsub.s32 1, %v451
      %v453 = vrot.slane %v444, %v452
      %v456 = vmul.f32 %v442, %v449
      %v457 = vmul.f32 %v439, %v453
      %458 = vst [vmem:[#allocation3 + $0x50] sm:$0xff] %v456
      %459 = vst [vmem:[#allocation3 + $0x58] sm:$0xff] %v457
      %460 = vrot.lane.b32.xlu0 %v296, 17
      %v461 = vpop.permute.xlu0 %460
      %463 = vrot.lane.b32.xlu0 %v295, 17
      %v464 = vpop.permute.xlu0 %463
      %vm465 = vcmask 138240
      %v466 = vsel %vm465, %v464, %v461
      %v469 = vsel %vm465, %v461, %v464
      %s470 = scalar_lea.vmem %s4, 12
      %v471 = vld [vmem:[%s470] sm:$0x3]
      %v473 = vlaneseq
      %v474 = vshrl.u32 %v473, 7
      %v475 = vsub.s32 0, %v474
      %v476 = vrot.slane %v471, %v475
      %v477 = vlaneseq
      %v478 = vshrl.u32 %v477, 7
      %v479 = vsub.s32 1, %v478
      %v480 = vrot.slane %v471, %v479
      %v483 = vmul.f32 %v469, %v476
      %v484 = vmul.f32 %v466, %v480
      %485 = vst [vmem:[#allocation3 + $0x60] sm:$0xff] %v483
      %486 = vst [vmem:[#allocation3 + $0x68] sm:$0xff] %v484
      %487 = vrot.lane.b32.xlu0 %v296, 16
      %v488 = vpop.permute.xlu0 %487
      %490 = vrot.lane.b32.xlu0 %v295, 16
      %v491 = vpop.permute.xlu0 %490
      %vm492 = vcmask 130048
      %v493 = vsel %vm492, %v491, %v488
      %v496 = vsel %vm492, %v488, %v491
      %s497 = scalar_lea.vmem %s4, 14
      %v498 = vld [vmem:[%s497] sm:$0x3]
      %v500 = vlaneseq
      %v501 = vshrl.u32 %v500, 7
      %v502 = vsub.s32 0, %v501
      %v503 = vrot.slane %v498, %v502
      %v504 = vlaneseq
      %v505 = vshrl.u32 %v504, 7
      %v506 = vsub.s32 1, %v505
      %v507 = vrot.slane %v498, %v506
      %v510 = vmul.f32 %v496, %v503
      %v511 = vmul.f32 %v493, %v507
      %512 = vst [vmem:[#allocation3 + $0x70] sm:$0xff] %v510
      %513 = vst [vmem:[#allocation3 + $0x78] sm:$0xff] %v511
      %514 = vrot.lane.b32.xlu0 %v296, 15
      %v515 = vpop.permute.xlu0 %514
      %517 = vrot.lane.b32.xlu0 %v295, 15
      %v518 = vpop.permute.xlu0 %517
      %vm519 = vcmask 121856
      %v520 = vsel %vm519, %v518, %v515
      %v523 = vsel %vm519, %v515, %v518
      %s524 = scalar_lea.vmem %s4, 16
      %v525 = vld [vmem:[%s524] sm:$0x3]
      %v527 = vlaneseq
      %v528 = vshrl.u32 %v527, 7
      %v529 = vsub.s32 0, %v528
      %v530 = vrot.slane %v525, %v529
      %v531 = vlaneseq
      %v532 = vshrl.u32 %v531, 7
      %v533 = vsub.s32 1, %v532
      %v534 = vrot.slane %v525, %v533
      %v537 = vmul.f32 %v523, %v530
      %v538 = vmul.f32 %v520, %v534
      %539 = vst [vmem:[#allocation3 + $0x80] sm:$0xff] %v537
      %540 = vst [vmem:[#allocation3 + $0x88] sm:$0xff] %v538
      %541 = vrot.lane.b32.xlu0 %v296, 14
      %v542 = vpop.permute.xlu0 %541
      %544 = vrot.lane.b32.xlu0 %v295, 14
      %v545 = vpop.permute.xlu0 %544
      %vm546 = vcmask 113664
      %v547 = vsel %vm546, %v545, %v542
      %v550 = vsel %vm546, %v542, %v545
      %s551 = scalar_lea.vmem %s4, 18
      %v552 = vld [vmem:[%s551] sm:$0x3]
      %v554 = vlaneseq
      %v555 = vshrl.u32 %v554, 7
      %v556 = vsub.s32 0, %v555
      %v557 = vrot.slane %v552, %v556
      %v558 = vlaneseq
      %v559 = vshrl.u32 %v558, 7
      %v560 = vsub.s32 1, %v559
      %v561 = vrot.slane %v552, %v560
      %v564 = vmul.f32 %v550, %v557
      %v565 = vmul.f32 %v547, %v561
      %566 = vst [vmem:[#allocation3 + $0x90] sm:$0xff] %v564
      %567 = vst [vmem:[#allocation3 + $0x98] sm:$0xff] %v565
      %568 = vrot.lane.b32.xlu0 %v296, 2
      %v569 = vpop.permute.xlu0 %568
      %571 = vrot.lane.b32.xlu0 %v295, 2
      %v572 = vpop.permute.xlu0 %571
      %vm573 = vcmask 15360
      %v574 = vsel %vm573, %v572, %v569
      %v577 = vsel %vm573, %v569, %v572
      %s578 = scalar_lea.vmem %s4, 20
      %v579 = vld [vmem:[%s578] sm:$0x3]
      %v581 = vlaneseq
      %v582 = vshrl.u32 %v581, 7
      %v583 = vsub.s32 0, %v582
      %v584 = vrot.slane %v579, %v583
      %v585 = vlaneseq
      %v586 = vshrl.u32 %v585, 7
      %v587 = vsub.s32 1, %v586
      %v588 = vrot.slane %v579, %v587
      %v591 = vmul.f32 %v577, %v584
      %v592 = vmul.f32 %v574, %v588
      %593 = vst [vmem:[#allocation3 + $0xa0] sm:$0xff] %v591
      %594 = vst [vmem:[#allocation3 + $0xa8] sm:$0xff] %v592
      %595 = vrot.lane.b32.xlu0 %v296, 1
      %v596 = vpop.permute.xlu0 %595
      %598 = vrot.lane.b32.xlu0 %v295, 1
      %v599 = vpop.permute.xlu0 %598
      %vm600 = vcmask 7168
      %v601 = vsel %vm600, %v599, %v596
      %v604 = vsel %vm600, %v596, %v599
      %s605 = scalar_lea.vmem %s4, 22
      %v606 = vld [vmem:[%s605] sm:$0x3]
      %v608 = vlaneseq
      %v609 = vshrl.u32 %v608, 7
      %v610 = vsub.s32 0, %v609
      %v611 = vrot.slane %v606, %v610
      %v612 = vlaneseq
      %v613 = vshrl.u32 %v612, 7
      %v614 = vsub.s32 1, %v613
      %v615 = vrot.slane %v606, %v614
      %v618 = vmul.f32 %v604, %v611
      %v619 = vmul.f32 %v601, %v615
      %620 = vst [vmem:[#allocation3 + $0xb0] sm:$0xff] %v618
      %621 = vst [vmem:[#allocation3 + $0xb8] sm:$0xff] %v619
      %s622 = scalar_lea.vmem %s4, 24
      %v623 = vld [vmem:[%s622] sm:$0x3]
      %v625 = vlaneseq
      %v626 = vshrl.u32 %v625, 7
      %v627 = vsub.s32 0, %v626
      %v628 = vrot.slane %v623, %v627
      %v629 = vlaneseq
      %v630 = vshrl.u32 %v629, 7
      %v631 = vsub.s32 1, %v630
      %v632 = vrot.slane %v623, %v631
      %v635 = vmul.f32 %v295, %v628
      %v636 = vmul.f32 %v296, %v632
      %637 = vst [vmem:[#allocation3 + $0xc0] sm:$0xff] %v635
      %638 = vst [vmem:[#allocation3 + $0xc8] sm:$0xff] %v636
      %639 = vrot.lane.b32.xlu0 %v295, 127
      %v640 = vpop.permute.xlu0 %639
      %641 = vrot.lane.b32.xlu0 %v296, 127
      %v642 = vpop.permute.xlu0 %641
      %vm643 = vcmask 1039360
      %v644 = vsel %vm643, %v640, %v642
      %v648 = vsel %vm643, %v642, %v640
      %s649 = scalar_lea.vmem %s4, 26
      %v650 = vld [vmem:[%s649] sm:$0x3]
      %v652 = vlaneseq
      %v653 = vshrl.u32 %v652, 7
      %v654 = vsub.s32 0, %v653
      %v655 = vrot.slane %v650, %v654
      %v656 = vlaneseq
      %v657 = vshrl.u32 %v656, 7
      %v658 = vsub.s32 1, %v657
      %v659 = vrot.slane %v650, %v658
      %v662 = vmul.f32 %v644, %v655
      %v663 = vmul.f32 %v648, %v659
      %664 = vst [vmem:[#allocation3 + $0xd0] sm:$0xff] %v662
      %665 = vst [vmem:[#allocation3 + $0xd8] sm:$0xff] %v663
      %666 = vrot.lane.b32.xlu0 %v295, 126
      %v667 = vpop.permute.xlu0 %666
      %668 = vrot.lane.b32.xlu0 %v296, 126
      %v669 = vpop.permute.xlu0 %668
      %vm670 = vcmask 1031168
      %v671 = vsel %vm670, %v667, %v669
      %v675 = vsel %vm670, %v669, %v667
      %s676 = scalar_lea.vmem %s4, 28
      %v677 = vld [vmem:[%s676] sm:$0x3]
      %v679 = vlaneseq
      %v680 = vshrl.u32 %v679, 7
      %v681 = vsub.s32 0, %v680
      %v682 = vrot.slane %v677, %v681
      %v683 = vlaneseq
      %v684 = vshrl.u32 %v683, 7
      %v685 = vsub.s32 1, %v684
      %v686 = vrot.slane %v677, %v685
      %v689 = vmul.f32 %v671, %v682
      %v690 = vmul.f32 %v675, %v686
      %691 = vst [vmem:[#allocation3 + $0xe0] sm:$0xff] %v689
      %692 = vst [vmem:[#allocation3 + $0xe8] sm:$0xff] %v690
      %693 = vrot.lane.b32.xlu0 %v295, 114
      %v694 = vpop.permute.xlu0 %693
      %695 = vrot.lane.b32.xlu0 %v296, 114
      %v696 = vpop.permute.xlu0 %695
      %vm697 = vcmask 932864
      %v698 = vsel %vm697, %v694, %v696
      %v702 = vsel %vm697, %v696, %v694
      %s703 = scalar_lea.vmem %s4, 30
      %v704 = vld [vmem:[%s703] sm:$0x3]
      %v706 = vlaneseq
      %v707 = vshrl.u32 %v706, 7
      %v708 = vsub.s32 0, %v707
      %v709 = vrot.slane %v704, %v708
      %v710 = vlaneseq
      %v711 = vshrl.u32 %v710, 7
      %v712 = vsub.s32 1, %v711
      %v713 = vrot.slane %v704, %v712
      %v716 = vmul.f32 %v698, %v709
      %v717 = vmul.f32 %v702, %v713
      %718 = vst [vmem:[#allocation3 + $0xf0] sm:$0xff] %v716
      %719 = vst [vmem:[#allocation3 + $0xf8] sm:$0xff] %v717
      %720 = vrot.lane.b32.xlu0 %v295, 113
      %v721 = vpop.permute.xlu0 %720
      %722 = vrot.lane.b32.xlu0 %v296, 113
      %v723 = vpop.permute.xlu0 %722
      %vm724 = vcmask 924672
      %v725 = vsel %vm724, %v721, %v723
      %v729 = vsel %vm724, %v723, %v721
      %s730 = scalar_lea.vmem %s4, 32
      %v731 = vld [vmem:[%s730] sm:$0x3]
      %v733 = vlaneseq
      %v734 = vshrl.u32 %v733, 7
      %v735 = vsub.s32 0, %v734
      %v736 = vrot.slane %v731, %v735
      %v737 = vlaneseq
      %v738 = vshrl.u32 %v737, 7
      %v739 = vsub.s32 1, %v738
      %v740 = vrot.slane %v731, %v739
      %v743 = vmul.f32 %v725, %v736
      %v744 = vmul.f32 %v729, %v740
      %745 = vst [vmem:[#allocation3 + $0x100] sm:$0xff] %v743
      %746 = vst [vmem:[#allocation3 + $0x108] sm:$0xff] %v744
      %747 = vrot.lane.b32.xlu0 %v295, 112
      %v748 = vpop.permute.xlu0 %747
      %749 = vrot.lane.b32.xlu0 %v296, 112
      %v750 = vpop.permute.xlu0 %749
      %vm751 = vcmask 916480
      %v752 = vsel %vm751, %v748, %v750
      %v756 = vsel %vm751, %v750, %v748
      %s757 = scalar_lea.vmem %s4, 34
      %v758 = vld [vmem:[%s757] sm:$0x3]
      %v760 = vlaneseq
      %v761 = vshrl.u32 %v760, 7
      %v762 = vsub.s32 0, %v761
      %v763 = vrot.slane %v758, %v762
      %v764 = vlaneseq
      %v765 = vshrl.u32 %v764, 7
      %v766 = vsub.s32 1, %v765
      %v767 = vrot.slane %v758, %v766
      %v770 = vmul.f32 %v752, %v763
      %v771 = vmul.f32 %v756, %v767
      %772 = vst [vmem:[#allocation3 + $0x110] sm:$0xff] %v770
      %773 = vst [vmem:[#allocation3 + $0x118] sm:$0xff] %v771
      %774 = vrot.lane.b32.xlu0 %v295, 111
      %v775 = vpop.permute.xlu0 %774
      %776 = vrot.lane.b32.xlu0 %v296, 111
      %v777 = vpop.permute.xlu0 %776
      %vm778 = vcmask 908288
      %v779 = vsel %vm778, %v775, %v777
      %v783 = vsel %vm778, %v777, %v775
      %s784 = scalar_lea.vmem %s4, 36
      %v785 = vld [vmem:[%s784] sm:$0x3]
      %v787 = vlaneseq
      %v788 = vshrl.u32 %v787, 7
      %v789 = vsub.s32 0, %v788
      %v790 = vrot.slane %v785, %v789
      %v791 = vlaneseq
      %v792 = vshrl.u32 %v791, 7
      %v793 = vsub.s32 1, %v792
      %v794 = vrot.slane %v785, %v793
      %v797 = vmul.f32 %v779, %v790
      %v798 = vmul.f32 %v783, %v794
      %799 = vst [vmem:[#allocation3 + $0x120] sm:$0xff] %v797
      %800 = vst [vmem:[#allocation3 + $0x128] sm:$0xff] %v798
      %801 = vrot.lane.b32.xlu0 %v295, 110
      %v802 = vpop.permute.xlu0 %801
      %803 = vrot.lane.b32.xlu0 %v296, 110
      %v804 = vpop.permute.xlu0 %803
      %vm805 = vcmask 900096
      %v806 = vsel %vm805, %v802, %v804
      %v810 = vsel %vm805, %v804, %v802
      %s811 = scalar_lea.vmem %s4, 38
      %v812 = vld [vmem:[%s811] sm:$0x3]
      %v814 = vlaneseq
      %v815 = vshrl.u32 %v814, 7
      %v816 = vsub.s32 0, %v815
      %v817 = vrot.slane %v812, %v816
      %v818 = vlaneseq
      %v819 = vshrl.u32 %v818, 7
      %v820 = vsub.s32 1, %v819
      %v821 = vrot.slane %v812, %v820
      %v824 = vmul.f32 %v806, %v817
      %v825 = vmul.f32 %v810, %v821
      %826 = vst [vmem:[#allocation3 + $0x130] sm:$0xff] %v824
      %827 = vst [vmem:[#allocation3 + $0x138] sm:$0xff] %v825
      %828 = vrot.lane.b32.xlu0 %v295, 98
      %v829 = vpop.permute.xlu0 %828
      %830 = vrot.lane.b32.xlu0 %v296, 98
      %v831 = vpop.permute.xlu0 %830
      %vm832 = vcmask 801792
      %v833 = vsel %vm832, %v829, %v831
      %v837 = vsel %vm832, %v831, %v829
      %s838 = scalar_lea.vmem %s4, 40
      %v839 = vld [vmem:[%s838] sm:$0x3]
      %v841 = vlaneseq
      %v842 = vshrl.u32 %v841, 7
      %v843 = vsub.s32 0, %v842
      %v844 = vrot.slane %v839, %v843
      %v845 = vlaneseq
      %v846 = vshrl.u32 %v845, 7
      %v847 = vsub.s32 1, %v846
      %v848 = vrot.slane %v839, %v847
      %v851 = vmul.f32 %v833, %v844
      %v852 = vmul.f32 %v837, %v848
      %853 = vst [vmem:[#allocation3 + $0x140] sm:$0xff] %v851
      %854 = vst [vmem:[#allocation3 + $0x148] sm:$0xff] %v852
      %855 = vrot.lane.b32.xlu0 %v295, 97
      %v856 = vpop.permute.xlu0 %855
      %857 = vrot.lane.b32.xlu0 %v296, 97
      %v858 = vpop.permute.xlu0 %857
      %vm859 = vcmask 793600
      %v860 = vsel %vm859, %v856, %v858
      %v864 = vsel %vm859, %v858, %v856
      %s865 = scalar_lea.vmem %s4, 42
      %v866 = vld [vmem:[%s865] sm:$0x3]
      %v868 = vlaneseq
      %v869 = vshrl.u32 %v868, 7
      %v870 = vsub.s32 0, %v869
      %v871 = vrot.slane %v866, %v870
      %v872 = vlaneseq
      %v873 = vshrl.u32 %v872, 7
      %v874 = vsub.s32 1, %v873
      %v875 = vrot.slane %v866, %v874
      %v878 = vmul.f32 %v860, %v871
      %v879 = vmul.f32 %v864, %v875
      %880 = vst [vmem:[#allocation3 + $0x150] sm:$0xff] %v878
      %881 = vst [vmem:[#allocation3 + $0x158] sm:$0xff] %v879
      %882 = vrot.lane.b32.xlu0 %v295, 96
      %v883 = vpop.permute.xlu0 %882
      %884 = vrot.lane.b32.xlu0 %v296, 96
      %v885 = vpop.permute.xlu0 %884
      %vm886 = vcmask 785408
      %v887 = vsel %vm886, %v883, %v885
      %v891 = vsel %vm886, %v885, %v883
      %s892 = scalar_lea.vmem %s4, 44
      %v893 = vld [vmem:[%s892] sm:$0x3]
      %v895 = vlaneseq
      %v896 = vshrl.u32 %v895, 7
      %v897 = vsub.s32 0, %v896
      %v898 = vrot.slane %v893, %v897
      %v899 = vlaneseq
      %v900 = vshrl.u32 %v899, 7
      %v901 = vsub.s32 1, %v900
      %v902 = vrot.slane %v893, %v901
      %v905 = vmul.f32 %v887, %v898
      %v906 = vmul.f32 %v891, %v902
      %907 = vst [vmem:[#allocation3 + $0x160] sm:$0xff] %v905
      %908 = vst [vmem:[#allocation3 + $0x168] sm:$0xff] %v906
      %909 = vrot.lane.b32.xlu0 %v295, 95
      %v910 = vpop.permute.xlu0 %909
      %911 = vrot.lane.b32.xlu0 %v296, 95
      %v912 = vpop.permute.xlu0 %911
      %vm913 = vcmask 777216
      %v914 = vsel %vm913, %v910, %v912
      %v918 = vsel %vm913, %v912, %v910
      %s919 = scalar_lea.vmem %s4, 46
      %v920 = vld [vmem:[%s919] sm:$0x3]
      %v922 = vlaneseq
      %v923 = vshrl.u32 %v922, 7
      %v924 = vsub.s32 0, %v923
      %v925 = vrot.slane %v920, %v924
      %v926 = vlaneseq
      %v927 = vshrl.u32 %v926, 7
      %v928 = vsub.s32 1, %v927
      %v929 = vrot.slane %v920, %v928
      %v932 = vmul.f32 %v914, %v925
      %v933 = vmul.f32 %v918, %v929
      %934 = vst [vmem:[#allocation3 + $0x170] sm:$0xff] %v932
      %935 = vst [vmem:[#allocation3 + $0x178] sm:$0xff] %v933
      %936 = vrot.lane.b32.xlu0 %v295, 94
      %v937 = vpop.permute.xlu0 %936
      %938 = vrot.lane.b32.xlu0 %v296, 94
      %v939 = vpop.permute.xlu0 %938
      %vm940 = vcmask 769024
      %v941 = vsel %vm940, %v937, %v939
      %v945 = vsel %vm940, %v939, %v937
      %s946 = scalar_lea.vmem %s4, 48
      %v947 = vld [vmem:[%s946] sm:$0x3]
      %v949 = vlaneseq
      %v950 = vshrl.u32 %v949, 7
      %v951 = vsub.s32 0, %v950
      %v952 = vrot.slane %v947, %v951
      %v953 = vlaneseq
      %v954 = vshrl.u32 %v953, 7
      %v955 = vsub.s32 1, %v954
      %v956 = vrot.slane %v947, %v955
      %v959 = vmul.f32 %v941, %v952
      %v960 = vmul.f32 %v945, %v956
      %961 = vst [vmem:[#allocation3 + $0x180] sm:$0xff] %v959
      %962 = vst [vmem:[#allocation3 + $0x188] sm:$0xff] %v960
      %v963 = vld [vmem:[%s2] sm:$0xff]
      %v964 = vld [vmem:[%s2 + $0x8] sm:$0xff]
      %v965 = vld [vmem:[#allocation3] sm:$0xff]
      %v966 = vld [vmem:[#allocation3 + $0x8] sm:$0xff]
      %v967 = vld [vmem:[#allocation3 + $0x10] sm:$0xff]
      %v968 = vld [vmem:[#allocation3 + $0x18] sm:$0xff]
      %v969 = vld [vmem:[#allocation3 + $0x20] sm:$0xff]
      %v970 = vld [vmem:[#allocation3 + $0x28] sm:$0xff]
      %v971 = vld [vmem:[#allocation3 + $0x30] sm:$0xff]
      %v972 = vld [vmem:[#allocation3 + $0x38] sm:$0xff]
      %v973 = vld [vmem:[#allocation3 + $0x40] sm:$0xff]
      %v974 = vld [vmem:[#allocation3 + $0x48] sm:$0xff]
      %v975 = vld [vmem:[#allocation3 + $0x50] sm:$0xff]
      %v976 = vld [vmem:[#allocation3 + $0x58] sm:$0xff]
      %v977 = vld [vmem:[#allocation3 + $0x60] sm:$0xff]
      %v978 = vld [vmem:[#allocation3 + $0x68] sm:$0xff]
      %v979 = vld [vmem:[#allocation3 + $0x70] sm:$0xff]
      %v980 = vld [vmem:[#allocation3 + $0x78] sm:$0xff]
      %v981 = vld [vmem:[#allocation3 + $0x80] sm:$0xff]
      %v982 = vld [vmem:[#allocation3 + $0x88] sm:$0xff]
      %v983 = vld [vmem:[#allocation3 + $0x90] sm:$0xff]
      %v984 = vld [vmem:[#allocation3 + $0x98] sm:$0xff]
      %v985 = vld [vmem:[#allocation3 + $0xa0] sm:$0xff]
      %v986 = vld [vmem:[#allocation3 + $0xa8] sm:$0xff]
      %v987 = vld [vmem:[#allocation3 + $0xb0] sm:$0xff]
      %v988 = vld [vmem:[#allocation3 + $0xb8] sm:$0xff]
      %v989 = vld [vmem:[#allocation3 + $0xc0] sm:$0xff]
      %v990 = vld [vmem:[#allocation3 + $0xc8] sm:$0xff]
      %v991 = vld [vmem:[#allocation3 + $0xd0] sm:$0xff]
      %v992 = vld [vmem:[#allocation3 + $0xd8] sm:$0xff]
      %v993 = vld [vmem:[#allocation3 + $0xe0] sm:$0xff]
      %v994 = vld [vmem:[#allocation3 + $0xe8] sm:$0xff]
      %v995 = vld [vmem:[#allocation3 + $0xf0] sm:$0xff]
      %v996 = vld [vmem:[#allocation3 + $0xf8] sm:$0xff]
      %v997 = vld [vmem:[#allocation3 + $0x100] sm:$0xff]
      %v998 = vld [vmem:[#allocation3 + $0x108] sm:$0xff]
      %v999 = vld [vmem:[#allocation3 + $0x110] sm:$0xff]
      %v1000 = vld [vmem:[#allocation3 + $0x118] sm:$0xff]
      %v1001 = vld [vmem:[#allocation3 + $0x120] sm:$0xff]
      %v1002 = vld [vmem:[#allocation3 + $0x128] sm:$0xff]
      %v1003 = vld [vmem:[#allocation3 + $0x130] sm:$0xff]
      %v1004 = vld [vmem:[#allocation3 + $0x138] sm:$0xff]
      %v1005 = vld [vmem:[#allocation3 + $0x140] sm:$0xff]
      %v1006 = vld [vmem:[#allocation3 + $0x148] sm:$0xff]
      %v1007 = vld [vmem:[#allocation3 + $0x150] sm:$0xff]
      %v1008 = vld [vmem:[#allocation3 + $0x158] sm:$0xff]
      %v1009 = vld [vmem:[#allocation3 + $0x160] sm:$0xff]
      %v1010 = vld [vmem:[#allocation3 + $0x168] sm:$0xff]
      %v1011 = vld [vmem:[#allocation3 + $0x170] sm:$0xff]
      %v1012 = vld [vmem:[#allocation3 + $0x178] sm:$0xff]
      %v1013 = vld [vmem:[#allocation3 + $0x180] sm:$0xff]
      %v1014 = vld [vmem:[#allocation3 + $0x188] sm:$0xff]
      %v1015 = vld [vmem:[%s3] sm:$0xff]
      %1017 = vset.pattern.permute.xlu0 0
      %1018 = vperm.xlu0 %1017, %v1015
      %v1019 = vpop.permute.xlu0 %1018
      %vm1021 = vcmask 588800
      %v1023 = vsel %vm1021, %v964, 0
      %1025 = vmatprep.subr.mxu0 %v966
      %1026 = vmatpush1.msra.mxu0 %v965
      %1027 = vmatprep.subr.mxu0 %v968
      %1028 = vmatpush1.msra.mxu0 %v967
      %1029 = vmatprep.subr.mxu0 %v970
      %1030 = vmatpush1.msra.mxu0 %v969
      %1031 = vmatprep.subr.mxu0 %v972
      %1032 = vmatpush1.msra.mxu0 %v971
      %1033 = vmatprep.subr.mxu0 %v974
      %1034 = vmatpush1.msra.mxu0 %v973
      %1035 = vmatprep.subr.mxu0 %v976
      %1036 = vmatpush1.msra.mxu0 %v975
      %1037 = vmatprep.subr.mxu0 %v978
      %1038 = vmatpush1.msra.mxu0 %v977
      %1039 = vmatprep.subr.mxu0 %v980
      %1040 = vmatpush1.msra.mxu0 %v979
      %1041 = vmatprep.subr.mxu0 %v982
      %1042 = vmatpush1.msra.mxu0 %v981
      %1043 = vmatprep.subr.mxu0 %v984
      %1044 = vmatpush1.msra.mxu0 %v983
      %1045 = vmatprep.subr.mxu0 %v986
      %1046 = vmatpush1.msra.mxu0 %v985
      %1047 = vmatprep.subr.mxu0 %v988
      %1048 = vmatpush1.msra.mxu0 %v987
      %1049 = vmatprep.subr.mxu0 %v990
      %1050 = vmatpush1.msra.mxu0 %v989
      %1051 = vmatprep.subr.mxu0 %v992
      %1052 = vmatpush1.msra.mxu0 %v991
      %1053 = vmatprep.subr.mxu0 %v994
      %1054 = vmatpush1.msra.mxu0 %v993
      %1055 = vmatprep.subr.mxu0 %v996
      %1056 = vmatpush1.msra.mxu0 %v995
      %1057 = vmatprep.subr.mxu0 %v998
      %1058 = vmatpush1.msra.mxu0 %v997
      %1059 = vmatprep.subr.mxu0 %v1000
      %1060 = vmatpush1.msra.mxu0 %v999
      %1061 = vmatprep.subr.mxu0 %v1002
      %1062 = vmatpush1.msra.mxu0 %v1001
      %1063 = vmatprep.subr.mxu0 %v1004
      %1064 = vmatpush1.msra.mxu0 %v1003
      %1065 = vmatprep.subr.mxu0 %v1006
      %1066 = vmatpush1.msra.mxu0 %v1005
      %1067 = vmatprep.subr.mxu0 %v1008
      %1068 = vmatpush1.msra.mxu0 %v1007
      %1069 = vmatprep.subr.mxu0 %v1010
      %1070 = vmatpush1.msra.mxu0 %v1009
      %1071 = vmatprep.subr.mxu0 %v1012
      %1072 = vmatpush1.msra.mxu0 %v1011
      %1073 = vmatprep.subr.mxu0 %v1014
      %1074 = vmatpush1.msra.mxu0 %v1013
      %1075 = vmatprep.subr.mxu0 0.0
      %1076 = vmatpush1.msra.mxu0 0.0
      %1077 = vmatprep.subr.mxu0 0.0
      %1078 = vmatpush1.msra.mxu0 0.0
      %1079 = vmatprep.subr.mxu0 0.0
      %1080 = vmatpush1.msra.mxu0 0.0
      %1081 = vmatprep.subr.mxu0 0.0
      %1082 = vmatpush1.msra.mxu0 0.0
      %1083 = vmatprep.subr.mxu0 0.0
      %1084 = vmatpush1.msra.mxu0 0.0
      %1085 = vmatprep.subr.mxu0 0.0
      %1086 = vmatpush1.msra.mxu0 0.0
      %1087 = vmatprep.subr.mxu0 0.0
      %1088 = vmatpush1.msra.mxu0 0.0
      %1089 = vmatprep.mubr.f32.mxu0 %v1023
      %1090 = vmatmul.mubr.f32.gmra.mrb[0].mxu0 %v963
      %v1091 = vpop.f32.mrb[0].mxu0
      %v1092 = vadd.f32 %v1019, %v1091
      %v1093 = vpop.f32.mrb[0].mxu0
      %v1094 = vadd.f32 %v1019, %v1093
      %1095 = vdwg.mxu0
      %1096 = vst [vmem:[%s278] sm:$0xff] %v1092
      %1097 = vst [vmem:[%s278 + $0x8] sm:$0xff] %v1094
      %v1098 = vadd.f32 %v1092, %v1094
      %1099 = vadd.xlane.f32.xlu0 %v1098
      %v1100 = vpop.xlane.xlu0 %1099
      %v1101 = vmul.f32 %v1100, 0.00390625
      %1102 = vst.msk [vmem:[%s282] sm:$0xff] %vm600, %v1101
      %p1103 = scmp.lt.s32.totalorder %s18, 1
      %s1104 = scalar_select %p1103, %s18, 1
      %s1105 = smul.addr %s1104, 2
      %s1106 = smul.addr %s1105, 8
      %s1107 = scalar_lea.vmem %s5, %s1106
      %p1108 = scmp.lt.s32.totalorder %s18, 1
      %s1109 = scalar_select %p1108, %s18, 1
      %s1110 = smul.addr %s1109, 8
      %s1111 = scalar_lea.vmem %s6, %s1110
      // Predicated region
      $region41: #{msk_forward.2} parent=39 // pred_check
        %p1112 = pneg %p151
      $region42: #{msk_forward.2} parent=39 // pred_check_branch
        %1114 = sbr.rel (%p1112) target = $region44
      $region43: #{msk_forward.2} parent=39 // pred_region
        _
      $region44: #{msk_forward.2} parent=39 // pred_fallthru
        _
      // Predicated region
      $region45: #{msk_forward.2} parent=39 // pred_check
        %p1115 = pneg %p177
      $region46: #{msk_forward.2} parent=39 // pred_check_branch
        %1117 = sbr.rel (%p1115) target = $region48
      $region47: #{msk_forward.2} parent=39 // pred_region
        _
      $region48: #{msk_forward.2} parent=39 // pred_fallthru
        _
    $region40: #{msk_forward.2} parent=5 // pred_fallthru
      _
    %p1118 = scmp.le.s32.totalorder 2, %s13
    // Predicated region
    $region49: #{msk_forward.2} parent=5 // pred_check
      %p1119 = pneg %p1118
    $region50: #{msk_forward.2} parent=5 // pred_check_branch
      %1121 = sbr.rel (%p1119) target = $region52
    $region51: #{msk_forward.2} parent=5 // pred_region
      %s1122 = ssub.s32 %s13, 2
      // Predicated region
      $region53: #{msk_forward.2} parent=51 // pred_check
        %p1123 = pneg %p157
      $region54: #{msk_forward.2} parent=51 // pred_check_branch
        %1125 = sbr.rel (%p1123) target = $region56
      $region55: #{msk_forward.2} parent=51 // pred_region
        %p1126 = scmp.lt.s32.totalorder %s19, 1
        %s1127 = scalar_select %p1126, %s19, 1
        %s1128 = smul.addr %s1127, 2
        %s1129 = smul.addr %s1128, 8
        %s1130 = scalar_lea.vmem %s5, %s1129
      $region56: #{msk_forward.2} parent=51 // pred_fallthru
        _
      // Predicated region
      $region57: #{msk_forward.2} parent=51 // pred_check
        %p1131 = pneg %p183
      $region58: #{msk_forward.2} parent=51 // pred_check_branch
        %1133 = sbr.rel (%p1131) target = $region60
      $region59: #{msk_forward.2} parent=51 // pred_region
        %p1134 = scmp.lt.s32.totalorder %s19, 1
        %s1135 = scalar_select %p1134, %s19, 1
        %s1136 = smul.addr %s1135, 8
        %s1137 = scalar_lea.vmem %s6, %s1136
      $region60: #{msk_forward.2} parent=51 // pred_fallthru
        _
    $region52: #{msk_forward.2} parent=5 // pred_fallthru
      _
  $region6: #{msk_forward.2} parent=0 // loop_footer
    %s17 = sadd.s32 1, %s13
  $region7: #{msk_forward.2} parent=0 // loop_footer_branch
    %12 = sbr.rel target = $region3
  $region8: #{msk_forward.2} parent=0 // loop_exit
    _

</llo_original>
